<compile_context>
chip_gen: v7x
topology: tpu7x:2x2x1
jax: 0.10.0
libtpu: 0.0.40
codegen_flags: <defaults>
</compile_context>

<pallas_src>
import jax
import jax.numpy as jnp
from jax import lax
from jax.experimental import pallas as pl
from jax.experimental.pallas import tpu as pltpu

# ----- model hyperparameters (small, consistent with the module) -----
B = 2            # batch
N = 16           # sequence length (tokens)
C = 32           # embedding dim
NUM_HEADS = 8
HEAD_DIM = C // NUM_HEADS
SCALE = HEAD_DIM ** (-0.5)
QKV_BIAS = False  # module default


def polarimetric_attention_kernel(x_ref, wqkv_ref, wproj_ref, bproj_ref,
                                  o_ref, slab_ref):
    # x_ref: (B*N, C); weights are full arrays resident in VMEM.
    x = x_ref[...]            # (B*N, C)  f32
    wqkv = wqkv_ref[...]      # (C, 3C)   pre-transposed, SCALE folded into q cols
    wproj = wproj_ref[...]    # (C, C)    pre-transposed
    bproj = bproj_ref[...]    # (1, C)

    # qkv projection for ALL tokens at once (one MXU pass).
    qkv = jnp.dot(x, wqkv, preferred_element_type=jnp.float32)   # (B*N, 3C)

    # Attention core, statically unrolled over the tiny batch and head dims.
    # Every operand is a 2-D static lane slice of qkv (natural (sublane, lane)
    # layout), so no reshapes/batched einsums and no XLU relayouts are needed;
    # each matmul is a plain 2-D MXU pass.
    for b in range(B):
        r0 = b * N
        for h in range(NUM_HEADS):
            c0 = h * HEAD_DIM
            q_h = qkv[r0:r0 + N, 0 * C + c0:0 * C + c0 + HEAD_DIM]   # (N, hd)
            k_h = qkv[r0:r0 + N, 1 * C + c0:1 * C + c0 + HEAD_DIM]   # (N, hd)
            v_h = qkv[r0:r0 + N, 2 * C + c0:2 * C + c0 + HEAD_DIM]   # (N, hd)

            # Scores: contract the head dim of q and k directly on the MXU
            # (no transpose op).  SCALE is already baked into q via the weights.
            s = lax.dot_general(q_h, k_h, (((1,), (1,)), ((), ())),
                                preferred_element_type=jnp.float32)  # (N, N)

            # Numerically-stable softmax; the divide goes to the EUP via the
            # approximate reciprocal (separate VLIW slot from the VALU).
            s_max = jnp.max(s, axis=-1, keepdims=True)
            p = jnp.exp(s - s_max)
            p = p * pl.reciprocal(jnp.sum(p, axis=-1, keepdims=True), approx=True)
            # attn_drop with p=0.0 -> identity.

            # Weighted sum of values: (N, N) @ (N, hd) -> (N, hd).
            o_h = jnp.dot(p, v_h, preferred_element_type=jnp.float32)

            # Head merge = direct column-block store into the (B*N, C) scratch
            # slab (no Python-list concatenate, no extra value-land copies).
            slab_ref[r0:r0 + N, c0:c0 + HEAD_DIM] = o_h

    # Output projection (+ bias) for all tokens at once (one MXU pass).
    out = jnp.dot(slab_ref[...], wproj, preferred_element_type=jnp.float32) + bproj
    # proj_drop with p=0.0 -> identity.
    o_ref[...] = out.astype(o_ref.dtype)


def polarimetric_attention(x, wqkv_t_scaled, wproj_t, bproj):
    """x: (B, N, C). wqkv_t_scaled: (C, 3C) with SCALE folded into the first C
    columns. wproj_t: (C, C). bproj: (1, C)."""
    Bx, Nx, Cx = x.shape
    x2d = x.reshape(Bx * Nx, Cx)                       # free layout plumbing
    out_2d = pl.pallas_call(
        polarimetric_attention_kernel,
        out_shape=jax.ShapeDtypeStruct((Bx * Nx, Cx), x.dtype),
        in_specs=[
            pl.BlockSpec(memory_space=pltpu.MemorySpace.VMEM),   # x (B*N, C)
            pl.BlockSpec(memory_space=pltpu.MemorySpace.VMEM),   # wqkv_t (scaled)
            pl.BlockSpec(memory_space=pltpu.MemorySpace.VMEM),   # wproj_t
            pl.BlockSpec(memory_space=pltpu.MemorySpace.VMEM),   # bproj
        ],
        out_specs=pl.BlockSpec(memory_space=pltpu.MemorySpace.VMEM),
        scratch_shapes=[pltpu.VMEM((Bx * Nx, Cx), jnp.float32)],  # head-merge slab
    )(x2d, wqkv_t_scaled, wproj_t, bproj)
    # TODO(synk): if B or N grows in production, add a leading "parallel" grid
    # axis over B (or 8x128-aligned token blocks) so v7x's 2 TensorCores both
    # get work; at ~0.3 MFLOP a second grid step costs more than it saves.
    return out_2d.reshape(Bx, Nx, Cx)                  # free layout plumbing


def reference(x, wqkv_t, wproj_t, bproj):
    """Pure-JAX reference mirroring the PyTorch forward (HIGHEST precision)."""
    hp = lax.Precision.HIGHEST
    qkv = jnp.einsum('bnc,cd->bnd', x, wqkv_t, precision=hp)      # (B, N, 3C)
    qkv = qkv.reshape(B, N, 3, NUM_HEADS, HEAD_DIM)
    qkv = jnp.transpose(qkv, (2, 0, 3, 1, 4))                     # (3, B, H, N, hd)
    q, k, v = qkv[0], qkv[1], qkv[2]
    attn = jnp.einsum('bhnd,bhmd->bhnm', q, k, precision=hp) * SCALE
    attn = jax.nn.softmax(attn, axis=-1)
    out = jnp.einsum('bhnm,bhmd->bhnd', attn, v, precision=hp)
    out = jnp.transpose(out, (0, 2, 1, 3)).reshape(B, N, C)
    return jnp.einsum('bnc,cd->bnd', out, wproj_t, precision=hp) + bproj


if __name__ == "__main__":
    key = jax.random.PRNGKey(0)
    kx, kqkv, kproj, kb = jax.random.split(key, 4)

    x = jax.random.normal(kx, (B, N, C), dtype=jnp.float32)

    # Deterministic parameter init (nn.Linear shapes: W is (out, in)).
    # Stored pre-transposed as (in, out) so the kernel does x @ W^T.
    w_qkv = jax.random.normal(kqkv, (3 * C, C), dtype=jnp.float32) * 0.05
    w_proj = jax.random.normal(kproj, (C, C), dtype=jnp.float32) * 0.05
    b_proj = jax.random.normal(kb, (C,), dtype=jnp.float32) * 0.05
    # qkv_bias=False -> no qkv bias.

    wqkv_t = jnp.transpose(w_qkv)          # (C, 3C)
    wproj_t = jnp.transpose(w_proj)        # (C, C)
    bproj = b_proj.reshape(1, C)           # (1, C)

    # Fold the attention scale into the q-columns of the qkv weight ONCE at
    # parameter-prep time (equivalent to scaling q, hence scaling the scores).
    wqkv_t_scaled = wqkv_t.at[:, :C].multiply(SCALE)

    out = polarimetric_attention(x, wqkv_t_scaled, wproj_t, bproj)
    out = jax.block_until_ready(out)

    ref = reference(x, wqkv_t, wproj_t, bproj)
    # Tolerance loosened only because the softmax denominator uses the
    # approximate (EUP) reciprocal (~1e-3 relative on row sums).
    assert jnp.allclose(out, ref, atol=2e-3, rtol=2e-3), "mismatch vs reference"

    print("KERNEL_OK")
</pallas_src>

<mosaic_0001>
module attributes {stable_mosaic.version = 11 : i64} {
  func.func @polarimetric_attention_kernel(%arg0: memref<32x32xf32, #tpu.memory_space<vmem>>, %arg1: memref<32x96xf32, #tpu.memory_space<vmem>>, %arg2: memref<32x32xf32, #tpu.memory_space<vmem>>, %arg3: memref<1x32xf32, #tpu.memory_space<vmem>>, %arg4: memref<32x32xf32, #tpu.memory_space<vmem>>, %arg5: memref<32x32xf32, #tpu.memory_space<vmem>>) attributes {dimension_semantics = [], scalar_prefetch = 0 : i64, scratch_operands = 1 : i64, tpu.core_type = #tpu.core_type<tc>} {
    %c0 = arith.constant 0 : index
    %c0_0 = arith.constant 0 : index
    %0 = vector.load %arg0[%c0, %c0_0] : memref<32x32xf32, #tpu.memory_space<vmem>>, vector<32x32xf32>
    %c0_1 = arith.constant 0 : index
    %c0_2 = arith.constant 0 : index
    %1 = vector.load %arg1[%c0_1, %c0_2] : memref<32x96xf32, #tpu.memory_space<vmem>>, vector<32x96xf32>
    %c0_3 = arith.constant 0 : index
    %c0_4 = arith.constant 0 : index
    %2 = vector.load %arg2[%c0_3, %c0_4] : memref<32x32xf32, #tpu.memory_space<vmem>>, vector<32x32xf32>
    %c0_5 = arith.constant 0 : index
    %c0_6 = arith.constant 0 : index
    %3 = vector.load %arg3[%c0_5, %c0_6] : memref<1x32xf32, #tpu.memory_space<vmem>>, vector<1x32xf32>
    %cst = arith.constant dense<0.000000e+00> : vector<32x96xf32>
    %4 = tpu.matmul %0, %1, %cst {dimension_numbers = #tpu.dot_dimension_numbers<[1], [0], [0], [1], [0, 0, 1, 1], [], []>} : vector<32x32xf32>, vector<32x96xf32>, vector<32x96xf32> -> vector<32x96xf32>
    %5 = vector.extract_strided_slice %4 {offsets = [0, 0], sizes = [16, 4], strides = [1, 1]} : vector<32x96xf32> to vector<16x4xf32>
    %6 = vector.extract_strided_slice %4 {offsets = [0, 32], sizes = [16, 4], strides = [1, 1]} : vector<32x96xf32> to vector<16x4xf32>
    %7 = vector.extract_strided_slice %4 {offsets = [0, 64], sizes = [16, 4], strides = [1, 1]} : vector<32x96xf32> to vector<16x4xf32>
    %cst_7 = arith.constant dense<0.000000e+00> : vector<16x16xf32>
    %8 = tpu.matmul %5, %6, %cst_7 {dimension_numbers = #tpu.dot_dimension_numbers<[1], [1], [0], [0], [0, 0, 1, 0], [], []>} : vector<16x4xf32>, vector<16x4xf32>, vector<16x16xf32> -> vector<16x16xf32>
    %cst_8 = arith.constant dense<0xFF800000> : vector<16xf32>
    %9 = vector.multi_reduction <maximumf>, %8, %cst_8 [1] : vector<16x16xf32> to vector<16xf32>
    %10 = vector.shape_cast %9 : vector<16xf32> to vector<16x1xf32>
    %11 = vector.broadcast %10 : vector<16x1xf32> to vector<16x16xf32>
    %12 = arith.subf %8, %11 : vector<16x16xf32>
    %13 = math.exp %12 : vector<16x16xf32>
    %cst_9 = arith.constant dense<0.000000e+00> : vector<16xf32>
    %14 = vector.multi_reduction <add>, %13, %cst_9 [1] : vector<16x16xf32> to vector<16xf32>
    %15 = vector.shape_cast %14 : vector<16xf32> to vector<16x1xf32>
    %16 = tpu.reciprocal %15 {approx = true} : vector<16x1xf32> -> vector<16x1xf32>
    %17 = vector.broadcast %16 : vector<16x1xf32> to vector<16x16xf32>
    %18 = arith.mulf %13, %17 : vector<16x16xf32>
    %cst_10 = arith.constant dense<0.000000e+00> : vector<16x4xf32>
    %19 = tpu.matmul %18, %7, %cst_10 {dimension_numbers = #tpu.dot_dimension_numbers<[1], [0], [0], [1], [0, 0, 1, 1], [], []>} : vector<16x16xf32>, vector<16x4xf32>, vector<16x4xf32> -> vector<16x4xf32>
    %c0_11 = arith.constant 0 : index
    %c0_12 = arith.constant 0 : index
    %20 = vector.load %arg5[%c0_11, %c0_12] : memref<32x32xf32, #tpu.memory_space<vmem>>, vector<16x4xf32>
    tpu.vector_store %arg5[%c0_11, %c0_12], %19 {strides = array<i32>} : memref<32x32xf32, #tpu.memory_space<vmem>>, vector<16x4xf32>,
    %21 = vector.extract_strided_slice %4 {offsets = [0, 4], sizes = [16, 4], strides = [1, 1]} : vector<32x96xf32> to vector<16x4xf32>
    %22 = vector.extract_strided_slice %4 {offsets = [0, 36], sizes = [16, 4], strides = [1, 1]} : vector<32x96xf32> to vector<16x4xf32>
    %23 = vector.extract_strided_slice %4 {offsets = [0, 68], sizes = [16, 4], strides = [1, 1]} : vector<32x96xf32> to vector<16x4xf32>
    %cst_13 = arith.constant dense<0.000000e+00> : vector<16x16xf32>
    %24 = tpu.matmul %21, %22, %cst_13 {dimension_numbers = #tpu.dot_dimension_numbers<[1], [1], [0], [0], [0, 0, 1, 0], [], []>} : vector<16x4xf32>, vector<16x4xf32>, vector<16x16xf32> -> vector<16x16xf32>
    %cst_14 = arith.constant dense<0xFF800000> : vector<16xf32>
    %25 = vector.multi_reduction <maximumf>, %24, %cst_14 [1] : vector<16x16xf32> to vector<16xf32>
    %26 = vector.shape_cast %25 : vector<16xf32> to vector<16x1xf32>
    %27 = vector.broadcast %26 : vector<16x1xf32> to vector<16x16xf32>
    %28 = arith.subf %24, %27 : vector<16x16xf32>
    %29 = math.exp %28 : vector<16x16xf32>
    %cst_15 = arith.constant dense<0.000000e+00> : vector<16xf32>
    %30 = vector.multi_reduction <add>, %29, %cst_15 [1] : vector<16x16xf32> to vector<16xf32>
    %31 = vector.shape_cast %30 : vector<16xf32> to vector<16x1xf32>
    %32 = tpu.reciprocal %31 {approx = true} : vector<16x1xf32> -> vector<16x1xf32>
    %33 = vector.broadcast %32 : vector<16x1xf32> to vector<16x16xf32>
    %34 = arith.mulf %29, %33 : vector<16x16xf32>
    %cst_16 = arith.constant dense<0.000000e+00> : vector<16x4xf32>
    %35 = tpu.matmul %34, %23, %cst_16 {dimension_numbers = #tpu.dot_dimension_numbers<[1], [0], [0], [1], [0, 0, 1, 1], [], []>} : vector<16x16xf32>, vector<16x4xf32>, vector<16x4xf32> -> vector<16x4xf32>
    %c0_17 = arith.constant 0 : index
    %c4 = arith.constant 4 : index
    %36 = vector.load %arg5[%c0_17, %c4] : memref<32x32xf32, #tpu.memory_space<vmem>>, vector<16x4xf32>
    tpu.vector_store %arg5[%c0_17, %c4], %35 {strides = array<i32>} : memref<32x32xf32, #tpu.memory_space<vmem>>, vector<16x4xf32>,
    %37 = vector.extract_strided_slice %4 {offsets = [0, 8], sizes = [16, 4], strides = [1, 1]} : vector<32x96xf32> to vector<16x4xf32>
    %38 = vector.extract_strided_slice %4 {offsets = [0, 40], sizes = [16, 4], strides = [1, 1]} : vector<32x96xf32> to vector<16x4xf32>
    %39 = vector.extract_strided_slice %4 {offsets = [0, 72], sizes = [16, 4], strides = [1, 1]} : vector<32x96xf32> to vector<16x4xf32>
    %cst_18 = arith.constant dense<0.000000e+00> : vector<16x16xf32>
    %40 = tpu.matmul %37, %38, %cst_18 {dimension_numbers = #tpu.dot_dimension_numbers<[1], [1], [0], [0], [0, 0, 1, 0], [], []>} : vector<16x4xf32>, vector<16x4xf32>, vector<16x16xf32> -> vector<16x16xf32>
    %cst_19 = arith.constant dense<0xFF800000> : vector<16xf32>
    %41 = vector.multi_reduction <maximumf>, %40, %cst_19 [1] : vector<16x16xf32> to vector<16xf32>
    %42 = vector.shape_cast %41 : vector<16xf32> to vector<16x1xf32>
    %43 = vector.broadcast %42 : vector<16x1xf32> to vector<16x16xf32>
    %44 = arith.subf %40, %43 : vector<16x16xf32>
    %45 = math.exp %44 : vector<16x16xf32>
    %cst_20 = arith.constant dense<0.000000e+00> : vector<16xf32>
    %46 = vector.multi_reduction <add>, %45, %cst_20 [1] : vector<16x16xf32> to vector<16xf32>
    %47 = vector.shape_cast %46 : vector<16xf32> to vector<16x1xf32>
    %48 = tpu.reciprocal %47 {approx = true} : vector<16x1xf32> -> vector<16x1xf32>
    %49 = vector.broadcast %48 : vector<16x1xf32> to vector<16x16xf32>
    %50 = arith.mulf %45, %49 : vector<16x16xf32>
    %cst_21 = arith.constant dense<0.000000e+00> : vector<16x4xf32>
    %51 = tpu.matmul %50, %39, %cst_21 {dimension_numbers = #tpu.dot_dimension_numbers<[1], [0], [0], [1], [0, 0, 1, 1], [], []>} : vector<16x16xf32>, vector<16x4xf32>, vector<16x4xf32> -> vector<16x4xf32>
    %c0_22 = arith.constant 0 : index
    %c8 = arith.constant 8 : index
    %52 = vector.load %arg5[%c0_22, %c8] : memref<32x32xf32, #tpu.memory_space<vmem>>, vector<16x4xf32>
    tpu.vector_store %arg5[%c0_22, %c8], %51 {strides = array<i32>} : memref<32x32xf32, #tpu.memory_space<vmem>>, vector<16x4xf32>,
    %53 = vector.extract_strided_slice %4 {offsets = [0, 12], sizes = [16, 4], strides = [1, 1]} : vector<32x96xf32> to vector<16x4xf32>
    %54 = vector.extract_strided_slice %4 {offsets = [0, 44], sizes = [16, 4], strides = [1, 1]} : vector<32x96xf32> to vector<16x4xf32>
    %55 = vector.extract_strided_slice %4 {offsets = [0, 76], sizes = [16, 4], strides = [1, 1]} : vector<32x96xf32> to vector<16x4xf32>
    %cst_23 = arith.constant dense<0.000000e+00> : vector<16x16xf32>
    %56 = tpu.matmul %53, %54, %cst_23 {dimension_numbers = #tpu.dot_dimension_numbers<[1], [1], [0], [0], [0, 0, 1, 0], [], []>} : vector<16x4xf32>, vector<16x4xf32>, vector<16x16xf32> -> vector<16x16xf32>
    %cst_24 = arith.constant dense<0xFF800000> : vector<16xf32>
    %57 = vector.multi_reduction <maximumf>, %56, %cst_24 [1] : vector<16x16xf32> to vector<16xf32>
    %58 = vector.shape_cast %57 : vector<16xf32> to vector<16x1xf32>
    %59 = vector.broadcast %58 : vector<16x1xf32> to vector<16x16xf32>
    %60 = arith.subf %56, %59 : vector<16x16xf32>
    %61 = math.exp %60 : vector<16x16xf32>
    %cst_25 = arith.constant dense<0.000000e+00> : vector<16xf32>
    %62 = vector.multi_reduction <add>, %61, %cst_25 [1] : vector<16x16xf32> to vector<16xf32>
    %63 = vector.shape_cast %62 : vector<16xf32> to vector<16x1xf32>
    %64 = tpu.reciprocal %63 {approx = true} : vector<16x1xf32> -> vector<16x1xf32>
    %65 = vector.broadcast %64 : vector<16x1xf32> to vector<16x16xf32>
    %66 = arith.mulf %61, %65 : vector<16x16xf32>
    %cst_26 = arith.constant dense<0.000000e+00> : vector<16x4xf32>
    %67 = tpu.matmul %66, %55, %cst_26 {dimension_numbers = #tpu.dot_dimension_numbers<[1], [0], [0], [1], [0, 0, 1, 1], [], []>} : vector<16x16xf32>, vector<16x4xf32>, vector<16x4xf32> -> vector<16x4xf32>
    %c0_27 = arith.constant 0 : index
    %c12 = arith.constant 12 : index
    %68 = vector.load %arg5[%c0_27, %c12] : memref<32x32xf32, #tpu.memory_space<vmem>>, vector<16x4xf32>
    tpu.vector_store %arg5[%c0_27, %c12], %67 {strides = array<i32>} : memref<32x32xf32, #tpu.memory_space<vmem>>, vector<16x4xf32>,
    %69 = vector.extract_strided_slice %4 {offsets = [0, 16], sizes = [16, 4], strides = [1, 1]} : vector<32x96xf32> to vector<16x4xf32>
    %70 = vector.extract_strided_slice %4 {offsets = [0, 48], sizes = [16, 4], strides = [1, 1]} : vector<32x96xf32> to vector<16x4xf32>
    %71 = vector.extract_strided_slice %4 {offsets = [0, 80], sizes = [16, 4], strides = [1, 1]} : vector<32x96xf32> to vector<16x4xf32>
    %cst_28 = arith.constant dense<0.000000e+00> : vector<16x16xf32>
    %72 = tpu.matmul %69, %70, %cst_28 {dimension_numbers = #tpu.dot_dimension_numbers<[1], [1], [0], [0], [0, 0, 1, 0], [], []>} : vector<16x4xf32>, vector<16x4xf32>, vector<16x16xf32> -> vector<16x16xf32>
    %cst_29 = arith.constant dense<0xFF800000> : vector<16xf32>
    %73 = vector.multi_reduction <maximumf>, %72, %cst_29 [1] : vector<16x16xf32> to vector<16xf32>
    %74 = vector.shape_cast %73 : vector<16xf32> to vector<16x1xf32>
    %75 = vector.broadcast %74 : vector<16x1xf32> to vector<16x16xf32>
    %76 = arith.subf %72, %75 : vector<16x16xf32>
    %77 = math.exp %76 : vector<16x16xf32>
    %cst_30 = arith.constant dense<0.000000e+00> : vector<16xf32>
    %78 = vector.multi_reduction <add>, %77, %cst_30 [1] : vector<16x16xf32> to vector<16xf32>
    %79 = vector.shape_cast %78 : vector<16xf32> to vector<16x1xf32>
    %80 = tpu.reciprocal %79 {approx = true} : vector<16x1xf32> -> vector<16x1xf32>
    %81 = vector.broadcast %80 : vector<16x1xf32> to vector<16x16xf32>
    %82 = arith.mulf %77, %81 : vector<16x16xf32>
    %cst_31 = arith.constant dense<0.000000e+00> : vector<16x4xf32>
    %83 = tpu.matmul %82, %71, %cst_31 {dimension_numbers = #tpu.dot_dimension_numbers<[1], [0], [0], [1], [0, 0, 1, 1], [], []>} : vector<16x16xf32>, vector<16x4xf32>, vector<16x4xf32> -> vector<16x4xf32>
    %c0_32 = arith.constant 0 : index
    %c16 = arith.constant 16 : index
    %84 = vector.load %arg5[%c0_32, %c16] : memref<32x32xf32, #tpu.memory_space<vmem>>, vector<16x4xf32>
    tpu.vector_store %arg5[%c0_32, %c16], %83 {strides = array<i32>} : memref<32x32xf32, #tpu.memory_space<vmem>>, vector<16x4xf32>,
    %85 = vector.extract_strided_slice %4 {offsets = [0, 20], sizes = [16, 4], strides = [1, 1]} : vector<32x96xf32> to vector<16x4xf32>
    %86 = vector.extract_strided_slice %4 {offsets = [0, 52], sizes = [16, 4], strides = [1, 1]} : vector<32x96xf32> to vector<16x4xf32>
    %87 = vector.extract_strided_slice %4 {offsets = [0, 84], sizes = [16, 4], strides = [1, 1]} : vector<32x96xf32> to vector<16x4xf32>
    %cst_33 = arith.constant dense<0.000000e+00> : vector<16x16xf32>
    %88 = tpu.matmul %85, %86, %cst_33 {dimension_numbers = #tpu.dot_dimension_numbers<[1], [1], [0], [0], [0, 0, 1, 0], [], []>} : vector<16x4xf32>, vector<16x4xf32>, vector<16x16xf32> -> vector<16x16xf32>
    %cst_34 = arith.constant dense<0xFF800000> : vector<16xf32>
    %89 = vector.multi_reduction <maximumf>, %88, %cst_34 [1] : vector<16x16xf32> to vector<16xf32>
    %90 = vector.shape_cast %89 : vector<16xf32> to vector<16x1xf32>
    %91 = vector.broadcast %90 : vector<16x1xf32> to vector<16x16xf32>
    %92 = arith.subf %88, %91 : vector<16x16xf32>
    %93 = math.exp %92 : vector<16x16xf32>
    %cst_35 = arith.constant dense<0.000000e+00> : vector<16xf32>
    %94 = vector.multi_reduction <add>, %93, %cst_35 [1] : vector<16x16xf32> to vector<16xf32>
    %95 = vector.shape_cast %94 : vector<16xf32> to vector<16x1xf32>
    %96 = tpu.reciprocal %95 {approx = true} : vector<16x1xf32> -> vector<16x1xf32>
    %97 = vector.broadcast %96 : vector<16x1xf32> to vector<16x16xf32>
    %98 = arith.mulf %93, %97 : vector<16x16xf32>
    %cst_36 = arith.constant dense<0.000000e+00> : vector<16x4xf32>
    %99 = tpu.matmul %98, %87, %cst_36 {dimension_numbers = #tpu.dot_dimension_numbers<[1], [0], [0], [1], [0, 0, 1, 1], [], []>} : vector<16x16xf32>, vector<16x4xf32>, vector<16x4xf32> -> vector<16x4xf32>
    %c0_37 = arith.constant 0 : index
    %c20 = arith.constant 20 : index
    %100 = vector.load %arg5[%c0_37, %c20] : memref<32x32xf32, #tpu.memory_space<vmem>>, vector<16x4xf32>
    tpu.vector_store %arg5[%c0_37, %c20], %99 {strides = array<i32>} : memref<32x32xf32, #tpu.memory_space<vmem>>, vector<16x4xf32>,
    %101 = vector.extract_strided_slice %4 {offsets = [0, 24], sizes = [16, 4], strides = [1, 1]} : vector<32x96xf32> to vector<16x4xf32>
    %102 = vector.extract_strided_slice %4 {offsets = [0, 56], sizes = [16, 4], strides = [1, 1]} : vector<32x96xf32> to vector<16x4xf32>
    %103 = vector.extract_strided_slice %4 {offsets = [0, 88], sizes = [16, 4], strides = [1, 1]} : vector<32x96xf32> to vector<16x4xf32>
    %cst_38 = arith.constant dense<0.000000e+00> : vector<16x16xf32>
    %104 = tpu.matmul %101, %102, %cst_38 {dimension_numbers = #tpu.dot_dimension_numbers<[1], [1], [0], [0], [0, 0, 1, 0], [], []>} : vector<16x4xf32>, vector<16x4xf32>, vector<16x16xf32> -> vector<16x16xf32>
    %cst_39 = arith.constant dense<0xFF800000> : vector<16xf32>
    %105 = vector.multi_reduction <maximumf>, %104, %cst_39 [1] : vector<16x16xf32> to vector<16xf32>
    %106 = vector.shape_cast %105 : vector<16xf32> to vector<16x1xf32>
    %107 = vector.broadcast %106 : vector<16x1xf32> to vector<16x16xf32>
    %108 = arith.subf %104, %107 : vector<16x16xf32>
    %109 = math.exp %108 : vector<16x16xf32>
    %cst_40 = arith.constant dense<0.000000e+00> : vector<16xf32>
    %110 = vector.multi_reduction <add>, %109, %cst_40 [1] : vector<16x16xf32> to vector<16xf32>
    %111 = vector.shape_cast %110 : vector<16xf32> to vector<16x1xf32>
    %112 = tpu.reciprocal %111 {approx = true} : vector<16x1xf32> -> vector<16x1xf32>
    %113 = vector.broadcast %112 : vector<16x1xf32> to vector<16x16xf32>
    %114 = arith.mulf %109, %113 : vector<16x16xf32>
    %cst_41 = arith.constant dense<0.000000e+00> : vector<16x4xf32>
    %115 = tpu.matmul %114, %103, %cst_41 {dimension_numbers = #tpu.dot_dimension_numbers<[1], [0], [0], [1], [0, 0, 1, 1], [], []>} : vector<16x16xf32>, vector<16x4xf32>, vector<16x4xf32> -> vector<16x4xf32>
    %c0_42 = arith.constant 0 : index
    %c24 = arith.constant 24 : index
    %116 = vector.load %arg5[%c0_42, %c24] : memref<32x32xf32, #tpu.memory_space<vmem>>, vector<16x4xf32>
    tpu.vector_store %arg5[%c0_42, %c24], %115 {strides = array<i32>} : memref<32x32xf32, #tpu.memory_space<vmem>>, vector<16x4xf32>,
    %117 = vector.extract_strided_slice %4 {offsets = [0, 28], sizes = [16, 4], strides = [1, 1]} : vector<32x96xf32> to vector<16x4xf32>
    %118 = vector.extract_strided_slice %4 {offsets = [0, 60], sizes = [16, 4], strides = [1, 1]} : vector<32x96xf32> to vector<16x4xf32>
    %119 = vector.extract_strided_slice %4 {offsets = [0, 92], sizes = [16, 4], strides = [1, 1]} : vector<32x96xf32> to vector<16x4xf32>
    %cst_43 = arith.constant dense<0.000000e+00> : vector<16x16xf32>
    %120 = tpu.matmul %117, %118, %cst_43 {dimension_numbers = #tpu.dot_dimension_numbers<[1], [1], [0], [0], [0, 0, 1, 0], [], []>} : vector<16x4xf32>, vector<16x4xf32>, vector<16x16xf32> -> vector<16x16xf32>
    %cst_44 = arith.constant dense<0xFF800000> : vector<16xf32>
    %121 = vector.multi_reduction <maximumf>, %120, %cst_44 [1] : vector<16x16xf32> to vector<16xf32>
    %122 = vector.shape_cast %121 : vector<16xf32> to vector<16x1xf32>
    %123 = vector.broadcast %122 : vector<16x1xf32> to vector<16x16xf32>
    %124 = arith.subf %120, %123 : vector<16x16xf32>
    %125 = math.exp %124 : vector<16x16xf32>
    %cst_45 = arith.constant dense<0.000000e+00> : vector<16xf32>
    %126 = vector.multi_reduction <add>, %125, %cst_45 [1] : vector<16x16xf32> to vector<16xf32>
    %127 = vector.shape_cast %126 : vector<16xf32> to vector<16x1xf32>
    %128 = tpu.reciprocal %127 {approx = true} : vector<16x1xf32> -> vector<16x1xf32>
    %129 = vector.broadcast %128 : vector<16x1xf32> to vector<16x16xf32>
    %130 = arith.mulf %125, %129 : vector<16x16xf32>
    %cst_46 = arith.constant dense<0.000000e+00> : vector<16x4xf32>
    %131 = tpu.matmul %130, %119, %cst_46 {dimension_numbers = #tpu.dot_dimension_numbers<[1], [0], [0], [1], [0, 0, 1, 1], [], []>} : vector<16x16xf32>, vector<16x4xf32>, vector<16x4xf32> -> vector<16x4xf32>
    %c0_47 = arith.constant 0 : index
    %c28 = arith.constant 28 : index
    %132 = vector.load %arg5[%c0_47, %c28] : memref<32x32xf32, #tpu.memory_space<vmem>>, vector<16x4xf32>
    tpu.vector_store %arg5[%c0_47, %c28], %131 {strides = array<i32>} : memref<32x32xf32, #tpu.memory_space<vmem>>, vector<16x4xf32>,
    %133 = vector.extract_strided_slice %4 {offsets = [16, 0], sizes = [16, 4], strides = [1, 1]} : vector<32x96xf32> to vector<16x4xf32>
    %134 = vector.extract_strided_slice %4 {offsets = [16, 32], sizes = [16, 4], strides = [1, 1]} : vector<32x96xf32> to vector<16x4xf32>
    %135 = vector.extract_strided_slice %4 {offsets = [16, 64], sizes = [16, 4], strides = [1, 1]} : vector<32x96xf32> to vector<16x4xf32>
    %cst_48 = arith.constant dense<0.000000e+00> : vector<16x16xf32>
    %136 = tpu.matmul %133, %134, %cst_48 {dimension_numbers = #tpu.dot_dimension_numbers<[1], [1], [0], [0], [0, 0, 1, 0], [], []>} : vector<16x4xf32>, vector<16x4xf32>, vector<16x16xf32> -> vector<16x16xf32>
    %cst_49 = arith.constant dense<0xFF800000> : vector<16xf32>
    %137 = vector.multi_reduction <maximumf>, %136, %cst_49 [1] : vector<16x16xf32> to vector<16xf32>
    %138 = vector.shape_cast %137 : vector<16xf32> to vector<16x1xf32>
    %139 = vector.broadcast %138 : vector<16x1xf32> to vector<16x16xf32>
    %140 = arith.subf %136, %139 : vector<16x16xf32>
    %141 = math.exp %140 : vector<16x16xf32>
    %cst_50 = arith.constant dense<0.000000e+00> : vector<16xf32>
    %142 = vector.multi_reduction <add>, %141, %cst_50 [1] : vector<16x16xf32> to vector<16xf32>
    %143 = vector.shape_cast %142 : vector<16xf32> to vector<16x1xf32>
    %144 = tpu.reciprocal %143 {approx = true} : vector<16x1xf32> -> vector<16x1xf32>
    %145 = vector.broadcast %144 : vector<16x1xf32> to vector<16x16xf32>
    %146 = arith.mulf %141, %145 : vector<16x16xf32>
    %cst_51 = arith.constant dense<0.000000e+00> : vector<16x4xf32>
    %147 = tpu.matmul %146, %135, %cst_51 {dimension_numbers = #tpu.dot_dimension_numbers<[1], [0], [0], [1], [0, 0, 1, 1], [], []>} : vector<16x16xf32>, vector<16x4xf32>, vector<16x4xf32> -> vector<16x4xf32>
    %c16_52 = arith.constant 16 : index
    %c0_53 = arith.constant 0 : index
    %148 = vector.load %arg5[%c16_52, %c0_53] : memref<32x32xf32, #tpu.memory_space<vmem>>, vector<16x4xf32>
    tpu.vector_store %arg5[%c16_52, %c0_53], %147 {strides = array<i32>} : memref<32x32xf32, #tpu.memory_space<vmem>>, vector<16x4xf32>,
    %149 = vector.extract_strided_slice %4 {offsets = [16, 4], sizes = [16, 4], strides = [1, 1]} : vector<32x96xf32> to vector<16x4xf32>
    %150 = vector.extract_strided_slice %4 {offsets = [16, 36], sizes = [16, 4], strides = [1, 1]} : vector<32x96xf32> to vector<16x4xf32>
    %151 = vector.extract_strided_slice %4 {offsets = [16, 68], sizes = [16, 4], strides = [1, 1]} : vector<32x96xf32> to vector<16x4xf32>
    %cst_54 = arith.constant dense<0.000000e+00> : vector<16x16xf32>
    %152 = tpu.matmul %149, %150, %cst_54 {dimension_numbers = #tpu.dot_dimension_numbers<[1], [1], [0], [0], [0, 0, 1, 0], [], []>} : vector<16x4xf32>, vector<16x4xf32>, vector<16x16xf32> -> vector<16x16xf32>
    %cst_55 = arith.constant dense<0xFF800000> : vector<16xf32>
    %153 = vector.multi_reduction <maximumf>, %152, %cst_55 [1] : vector<16x16xf32> to vector<16xf32>
    %154 = vector.shape_cast %153 : vector<16xf32> to vector<16x1xf32>
    %155 = vector.broadcast %154 : vector<16x1xf32> to vector<16x16xf32>
    %156 = arith.subf %152, %155 : vector<16x16xf32>
    %157 = math.exp %156 : vector<16x16xf32>
    %cst_56 = arith.constant dense<0.000000e+00> : vector<16xf32>
    %158 = vector.multi_reduction <add>, %157, %cst_56 [1] : vector<16x16xf32> to vector<16xf32>
    %159 = vector.shape_cast %158 : vector<16xf32> to vector<16x1xf32>
    %160 = tpu.reciprocal %159 {approx = true} : vector<16x1xf32> -> vector<16x1xf32>
    %161 = vector.broadcast %160 : vector<16x1xf32> to vector<16x16xf32>
    %162 = arith.mulf %157, %161 : vector<16x16xf32>
    %cst_57 = arith.constant dense<0.000000e+00> : vector<16x4xf32>
    %163 = tpu.matmul %162, %151, %cst_57 {dimension_numbers = #tpu.dot_dimension_numbers<[1], [0], [0], [1], [0, 0, 1, 1], [], []>} : vector<16x16xf32>, vector<16x4xf32>, vector<16x4xf32> -> vector<16x4xf32>
    %c16_58 = arith.constant 16 : index
    %c4_59 = arith.constant 4 : index
    %164 = vector.load %arg5[%c16_58, %c4_59] : memref<32x32xf32, #tpu.memory_space<vmem>>, vector<16x4xf32>
    tpu.vector_store %arg5[%c16_58, %c4_59], %163 {strides = array<i32>} : memref<32x32xf32, #tpu.memory_space<vmem>>, vector<16x4xf32>,
    %165 = vector.extract_strided_slice %4 {offsets = [16, 8], sizes = [16, 4], strides = [1, 1]} : vector<32x96xf32> to vector<16x4xf32>
    %166 = vector.extract_strided_slice %4 {offsets = [16, 40], sizes = [16, 4], strides = [1, 1]} : vector<32x96xf32> to vector<16x4xf32>
    %167 = vector.extract_strided_slice %4 {offsets = [16, 72], sizes = [16, 4], strides = [1, 1]} : vector<32x96xf32> to vector<16x4xf32>
    %cst_60 = arith.constant dense<0.000000e+00> : vector<16x16xf32>
    %168 = tpu.matmul %165, %166, %cst_60 {dimension_numbers = #tpu.dot_dimension_numbers<[1], [1], [0], [0], [0, 0, 1, 0], [], []>} : vector<16x4xf32>, vector<16x4xf32>, vector<16x16xf32> -> vector<16x16xf32>
    %cst_61 = arith.constant dense<0xFF800000> : vector<16xf32>
    %169 = vector.multi_reduction <maximumf>, %168, %cst_61 [1] : vector<16x16xf32> to vector<16xf32>
    %170 = vector.shape_cast %169 : vector<16xf32> to vector<16x1xf32>
    %171 = vector.broadcast %170 : vector<16x1xf32> to vector<16x16xf32>
    %172 = arith.subf %168, %171 : vector<16x16xf32>
    %173 = math.exp %172 : vector<16x16xf32>
    %cst_62 = arith.constant dense<0.000000e+00> : vector<16xf32>
    %174 = vector.multi_reduction <add>, %173, %cst_62 [1] : vector<16x16xf32> to vector<16xf32>
    %175 = vector.shape_cast %174 : vector<16xf32> to vector<16x1xf32>
    %176 = tpu.reciprocal %175 {approx = true} : vector<16x1xf32> -> vector<16x1xf32>
    %177 = vector.broadcast %176 : vector<16x1xf32> to vector<16x16xf32>
    %178 = arith.mulf %173, %177 : vector<16x16xf32>
    %cst_63 = arith.constant dense<0.000000e+00> : vector<16x4xf32>
    %179 = tpu.matmul %178, %167, %cst_63 {dimension_numbers = #tpu.dot_dimension_numbers<[1], [0], [0], [1], [0, 0, 1, 1], [], []>} : vector<16x16xf32>, vector<16x4xf32>, vector<16x4xf32> -> vector<16x4xf32>
    %c16_64 = arith.constant 16 : index
    %c8_65 = arith.constant 8 : index
    %180 = vector.load %arg5[%c16_64, %c8_65] : memref<32x32xf32, #tpu.memory_space<vmem>>, vector<16x4xf32>
    tpu.vector_store %arg5[%c16_64, %c8_65], %179 {strides = array<i32>} : memref<32x32xf32, #tpu.memory_space<vmem>>, vector<16x4xf32>,
    %181 = vector.extract_strided_slice %4 {offsets = [16, 12], sizes = [16, 4], strides = [1, 1]} : vector<32x96xf32> to vector<16x4xf32>
    %182 = vector.extract_strided_slice %4 {offsets = [16, 44], sizes = [16, 4], strides = [1, 1]} : vector<32x96xf32> to vector<16x4xf32>
    %183 = vector.extract_strided_slice %4 {offsets = [16, 76], sizes = [16, 4], strides = [1, 1]} : vector<32x96xf32> to vector<16x4xf32>
    %cst_66 = arith.constant dense<0.000000e+00> : vector<16x16xf32>
    %184 = tpu.matmul %181, %182, %cst_66 {dimension_numbers = #tpu.dot_dimension_numbers<[1], [1], [0], [0], [0, 0, 1, 0], [], []>} : vector<16x4xf32>, vector<16x4xf32>, vector<16x16xf32> -> vector<16x16xf32>
    %cst_67 = arith.constant dense<0xFF800000> : vector<16xf32>
    %185 = vector.multi_reduction <maximumf>, %184, %cst_67 [1] : vector<16x16xf32> to vector<16xf32>
    %186 = vector.shape_cast %185 : vector<16xf32> to vector<16x1xf32>
    %187 = vector.broadcast %186 : vector<16x1xf32> to vector<16x16xf32>
    %188 = arith.subf %184, %187 : vector<16x16xf32>
    %189 = math.exp %188 : vector<16x16xf32>
    %cst_68 = arith.constant dense<0.000000e+00> : vector<16xf32>
    %190 = vector.multi_reduction <add>, %189, %cst_68 [1] : vector<16x16xf32> to vector<16xf32>
    %191 = vector.shape_cast %190 : vector<16xf32> to vector<16x1xf32>
    %192 = tpu.reciprocal %191 {approx = true} : vector<16x1xf32> -> vector<16x1xf32>
    %193 = vector.broadcast %192 : vector<16x1xf32> to vector<16x16xf32>
    %194 = arith.mulf %189, %193 : vector<16x16xf32>
    %cst_69 = arith.constant dense<0.000000e+00> : vector<16x4xf32>
    %195 = tpu.matmul %194, %183, %cst_69 {dimension_numbers = #tpu.dot_dimension_numbers<[1], [0], [0], [1], [0, 0, 1, 1], [], []>} : vector<16x16xf32>, vector<16x4xf32>, vector<16x4xf32> -> vector<16x4xf32>
    %c16_70 = arith.constant 16 : index
    %c12_71 = arith.constant 12 : index
    %196 = vector.load %arg5[%c16_70, %c12_71] : memref<32x32xf32, #tpu.memory_space<vmem>>, vector<16x4xf32>
    tpu.vector_store %arg5[%c16_70, %c12_71], %195 {strides = array<i32>} : memref<32x32xf32, #tpu.memory_space<vmem>>, vector<16x4xf32>,
    %197 = vector.extract_strided_slice %4 {offsets = [16, 16], sizes = [16, 4], strides = [1, 1]} : vector<32x96xf32> to vector<16x4xf32>
    %198 = vector.extract_strided_slice %4 {offsets = [16, 48], sizes = [16, 4], strides = [1, 1]} : vector<32x96xf32> to vector<16x4xf32>
    %199 = vector.extract_strided_slice %4 {offsets = [16, 80], sizes = [16, 4], strides = [1, 1]} : vector<32x96xf32> to vector<16x4xf32>
    %cst_72 = arith.constant dense<0.000000e+00> : vector<16x16xf32>
    %200 = tpu.matmul %197, %198, %cst_72 {dimension_numbers = #tpu.dot_dimension_numbers<[1], [1], [0], [0], [0, 0, 1, 0], [], []>} : vector<16x4xf32>, vector<16x4xf32>, vector<16x16xf32> -> vector<16x16xf32>
    %cst_73 = arith.constant dense<0xFF800000> : vector<16xf32>
    %201 = vector.multi_reduction <maximumf>, %200, %cst_73 [1] : vector<16x16xf32> to vector<16xf32>
    %202 = vector.shape_cast %201 : vector<16xf32> to vector<16x1xf32>
    %203 = vector.broadcast %202 : vector<16x1xf32> to vector<16x16xf32>
    %204 = arith.subf %200, %203 : vector<16x16xf32>
    %205 = math.exp %204 : vector<16x16xf32>
    %cst_74 = arith.constant dense<0.000000e+00> : vector<16xf32>
    %206 = vector.multi_reduction <add>, %205, %cst_74 [1] : vector<16x16xf32> to vector<16xf32>
    %207 = vector.shape_cast %206 : vector<16xf32> to vector<16x1xf32>
    %208 = tpu.reciprocal %207 {approx = true} : vector<16x1xf32> -> vector<16x1xf32>
    %209 = vector.broadcast %208 : vector<16x1xf32> to vector<16x16xf32>
    %210 = arith.mulf %205, %209 : vector<16x16xf32>
    %cst_75 = arith.constant dense<0.000000e+00> : vector<16x4xf32>
    %211 = tpu.matmul %210, %199, %cst_75 {dimension_numbers = #tpu.dot_dimension_numbers<[1], [0], [0], [1], [0, 0, 1, 1], [], []>} : vector<16x16xf32>, vector<16x4xf32>, vector<16x4xf32> -> vector<16x4xf32>
    %c16_76 = arith.constant 16 : index
    %c16_77 = arith.constant 16 : index
    %212 = vector.load %arg5[%c16_76, %c16_77] : memref<32x32xf32, #tpu.memory_space<vmem>>, vector<16x4xf32>
    tpu.vector_store %arg5[%c16_76, %c16_77], %211 {strides = array<i32>} : memref<32x32xf32, #tpu.memory_space<vmem>>, vector<16x4xf32>,
    %213 = vector.extract_strided_slice %4 {offsets = [16, 20], sizes = [16, 4], strides = [1, 1]} : vector<32x96xf32> to vector<16x4xf32>
    %214 = vector.extract_strided_slice %4 {offsets = [16, 52], sizes = [16, 4], strides = [1, 1]} : vector<32x96xf32> to vector<16x4xf32>
    %215 = vector.extract_strided_slice %4 {offsets = [16, 84], sizes = [16, 4], strides = [1, 1]} : vector<32x96xf32> to vector<16x4xf32>
    %cst_78 = arith.constant dense<0.000000e+00> : vector<16x16xf32>
    %216 = tpu.matmul %213, %214, %cst_78 {dimension_numbers = #tpu.dot_dimension_numbers<[1], [1], [0], [0], [0, 0, 1, 0], [], []>} : vector<16x4xf32>, vector<16x4xf32>, vector<16x16xf32> -> vector<16x16xf32>
    %cst_79 = arith.constant dense<0xFF800000> : vector<16xf32>
    %217 = vector.multi_reduction <maximumf>, %216, %cst_79 [1] : vector<16x16xf32> to vector<16xf32>
    %218 = vector.shape_cast %217 : vector<16xf32> to vector<16x1xf32>
    %219 = vector.broadcast %218 : vector<16x1xf32> to vector<16x16xf32>
    %220 = arith.subf %216, %219 : vector<16x16xf32>
    %221 = math.exp %220 : vector<16x16xf32>
    %cst_80 = arith.constant dense<0.000000e+00> : vector<16xf32>
    %222 = vector.multi_reduction <add>, %221, %cst_80 [1] : vector<16x16xf32> to vector<16xf32>
    %223 = vector.shape_cast %222 : vector<16xf32> to vector<16x1xf32>
    %224 = tpu.reciprocal %223 {approx = true} : vector<16x1xf32> -> vector<16x1xf32>
    %225 = vector.broadcast %224 : vector<16x1xf32> to vector<16x16xf32>
    %226 = arith.mulf %221, %225 : vector<16x16xf32>
    %cst_81 = arith.constant dense<0.000000e+00> : vector<16x4xf32>
    %227 = tpu.matmul %226, %215, %cst_81 {dimension_numbers = #tpu.dot_dimension_numbers<[1], [0], [0], [1], [0, 0, 1, 1], [], []>} : vector<16x16xf32>, vector<16x4xf32>, vector<16x4xf32> -> vector<16x4xf32>
    %c16_82 = arith.constant 16 : index
    %c20_83 = arith.constant 20 : index
    %228 = vector.load %arg5[%c16_82, %c20_83] : memref<32x32xf32, #tpu.memory_space<vmem>>, vector<16x4xf32>
    tpu.vector_store %arg5[%c16_82, %c20_83], %227 {strides = array<i32>} : memref<32x32xf32, #tpu.memory_space<vmem>>, vector<16x4xf32>,
    %229 = vector.extract_strided_slice %4 {offsets = [16, 24], sizes = [16, 4], strides = [1, 1]} : vector<32x96xf32> to vector<16x4xf32>
    %230 = vector.extract_strided_slice %4 {offsets = [16, 56], sizes = [16, 4], strides = [1, 1]} : vector<32x96xf32> to vector<16x4xf32>
    %231 = vector.extract_strided_slice %4 {offsets = [16, 88], sizes = [16, 4], strides = [1, 1]} : vector<32x96xf32> to vector<16x4xf32>
    %cst_84 = arith.constant dense<0.000000e+00> : vector<16x16xf32>
    %232 = tpu.matmul %229, %230, %cst_84 {dimension_numbers = #tpu.dot_dimension_numbers<[1], [1], [0], [0], [0, 0, 1, 0], [], []>} : vector<16x4xf32>, vector<16x4xf32>, vector<16x16xf32> -> vector<16x16xf32>
    %cst_85 = arith.constant dense<0xFF800000> : vector<16xf32>
    %233 = vector.multi_reduction <maximumf>, %232, %cst_85 [1] : vector<16x16xf32> to vector<16xf32>
    %234 = vector.shape_cast %233 : vector<16xf32> to vector<16x1xf32>
    %235 = vector.broadcast %234 : vector<16x1xf32> to vector<16x16xf32>
    %236 = arith.subf %232, %235 : vector<16x16xf32>
    %237 = math.exp %236 : vector<16x16xf32>
    %cst_86 = arith.constant dense<0.000000e+00> : vector<16xf32>
    %238 = vector.multi_reduction <add>, %237, %cst_86 [1] : vector<16x16xf32> to vector<16xf32>
    %239 = vector.shape_cast %238 : vector<16xf32> to vector<16x1xf32>
    %240 = tpu.reciprocal %239 {approx = true} : vector<16x1xf32> -> vector<16x1xf32>
    %241 = vector.broadcast %240 : vector<16x1xf32> to vector<16x16xf32>
    %242 = arith.mulf %237, %241 : vector<16x16xf32>
    %cst_87 = arith.constant dense<0.000000e+00> : vector<16x4xf32>
    %243 = tpu.matmul %242, %231, %cst_87 {dimension_numbers = #tpu.dot_dimension_numbers<[1], [0], [0], [1], [0, 0, 1, 1], [], []>} : vector<16x16xf32>, vector<16x4xf32>, vector<16x4xf32> -> vector<16x4xf32>
    %c16_88 = arith.constant 16 : index
    %c24_89 = arith.constant 24 : index
    %244 = vector.load %arg5[%c16_88, %c24_89] : memref<32x32xf32, #tpu.memory_space<vmem>>, vector<16x4xf32>
    tpu.vector_store %arg5[%c16_88, %c24_89], %243 {strides = array<i32>} : memref<32x32xf32, #tpu.memory_space<vmem>>, vector<16x4xf32>,
    %245 = vector.extract_strided_slice %4 {offsets = [16, 28], sizes = [16, 4], strides = [1, 1]} : vector<32x96xf32> to vector<16x4xf32>
    %246 = vector.extract_strided_slice %4 {offsets = [16, 60], sizes = [16, 4], strides = [1, 1]} : vector<32x96xf32> to vector<16x4xf32>
    %247 = vector.extract_strided_slice %4 {offsets = [16, 92], sizes = [16, 4], strides = [1, 1]} : vector<32x96xf32> to vector<16x4xf32>
    %cst_90 = arith.constant dense<0.000000e+00> : vector<16x16xf32>
    %248 = tpu.matmul %245, %246, %cst_90 {dimension_numbers = #tpu.dot_dimension_numbers<[1], [1], [0], [0], [0, 0, 1, 0], [], []>} : vector<16x4xf32>, vector<16x4xf32>, vector<16x16xf32> -> vector<16x16xf32>
    %cst_91 = arith.constant dense<0xFF800000> : vector<16xf32>
    %249 = vector.multi_reduction <maximumf>, %248, %cst_91 [1] : vector<16x16xf32> to vector<16xf32>
    %250 = vector.shape_cast %249 : vector<16xf32> to vector<16x1xf32>
    %251 = vector.broadcast %250 : vector<16x1xf32> to vector<16x16xf32>
    %252 = arith.subf %248, %251 : vector<16x16xf32>
    %253 = math.exp %252 : vector<16x16xf32>
    %cst_92 = arith.constant dense<0.000000e+00> : vector<16xf32>
    %254 = vector.multi_reduction <add>, %253, %cst_92 [1] : vector<16x16xf32> to vector<16xf32>
    %255 = vector.shape_cast %254 : vector<16xf32> to vector<16x1xf32>
    %256 = tpu.reciprocal %255 {approx = true} : vector<16x1xf32> -> vector<16x1xf32>
    %257 = vector.broadcast %256 : vector<16x1xf32> to vector<16x16xf32>
    %258 = arith.mulf %253, %257 : vector<16x16xf32>
    %cst_93 = arith.constant dense<0.000000e+00> : vector<16x4xf32>
    %259 = tpu.matmul %258, %247, %cst_93 {dimension_numbers = #tpu.dot_dimension_numbers<[1], [0], [0], [1], [0, 0, 1, 1], [], []>} : vector<16x16xf32>, vector<16x4xf32>, vector<16x4xf32> -> vector<16x4xf32>
    %c16_94 = arith.constant 16 : index
    %c28_95 = arith.constant 28 : index
    %260 = vector.load %arg5[%c16_94, %c28_95] : memref<32x32xf32, #tpu.memory_space<vmem>>, vector<16x4xf32>
    tpu.vector_store %arg5[%c16_94, %c28_95], %259 {strides = array<i32>} : memref<32x32xf32, #tpu.memory_space<vmem>>, vector<16x4xf32>,
    %c0_96 = arith.constant 0 : index
    %c0_97 = arith.constant 0 : index
    %261 = vector.load %arg5[%c0_96, %c0_97] : memref<32x32xf32, #tpu.memory_space<vmem>>, vector<32x32xf32>
    %cst_98 = arith.constant dense<0.000000e+00> : vector<32x32xf32>
    %262 = tpu.matmul %261, %2, %cst_98 {dimension_numbers = #tpu.dot_dimension_numbers<[1], [0], [0], [1], [0, 0, 1, 1], [], []>} : vector<32x32xf32>, vector<32x32xf32>, vector<32x32xf32> -> vector<32x32xf32>
    %263 = vector.broadcast %3 : vector<1x32xf32> to vector<32x32xf32>
    %264 = arith.addf %262, %263 : vector<32x32xf32>
    %c0_99 = arith.constant 0 : index
    %c0_100 = arith.constant 0 : index
    %265 = vector.load %arg4[%c0_99, %c0_100] : memref<32x32xf32, #tpu.memory_space<vmem>>, vector<32x32xf32>
    tpu.vector_store %arg4[%c0_99, %c0_100], %264 {strides = array<i32>} : memref<32x32xf32, #tpu.memory_space<vmem>>, vector<32x32xf32>,
    return
  }
}

</mosaic_0001>

<llo_original>
// kernel: tpu_custom_call.1
$region0: #{tpu_custom_call.1}
  #allocation0 [shape = 'u32[]', space=smem, size = 0x4, offset = 0x4, fixed_abs, tag = 'smem constant byte address 0x4 - core index']
  #allocation1 [shape = 'u32[144,128]{1,0:T(1,128)}', space=vmem, size = 0x12000, scoped, tag = 'internal scratch']
  #allocation2 [shape = 'f32[32,32]{1,0:T(8,128)}', space=vmem, size = 0x4000, scoped, tag = 'scratch operand']
  %s0 = inlined_call_operand.hbm [shape: f32[32,32], index: 0, kind: input, shape index: {}]
  %s1 = inlined_call_operand.hbm [shape: f32[32,96], index: 1, kind: input, shape index: {}]
  %s2 = inlined_call_operand.hbm [shape: f32[32,32], index: 2, kind: input, shape index: {}]
  %s3 = inlined_call_operand.vmem [shape: f32[1,32], index: 3, kind: input, shape index: {}]
  %s4 = inlined_call_operand.hbm [shape: f32[32,32], index: 4, kind: output, shape index: {}]
  %s5 = sld [smem:[#allocation0]]
  $region38: #{tpu_custom_call.1} parent=0
    _
  %s7 = ssub.s32 1, %s5
  %s8 = scalar_select 0, %s7, %s5
  $region1: #{tpu_custom_call.1} parent=0
    #allocation3 [shape = 'u8[16384]{0}', space=vmem, size = 0x4000, scoped, tag = 'input window, operand 0, single buffered']
    #allocation4 [shape = 's32[1]{0}', space=sflag, size = 0x4, scoped, tag = 'scoped memory for tpu_custom_call.1']
    #allocation5 [shape = 's32[1]{0}', space=sflag, size = 0x4, scoped, tag = 'scoped memory for tpu_custom_call.1']
    #allocation6 [shape = 'u8[16384]{0}', space=vmem, size = 0x4000, scoped, tag = 'input window, operand 1, single buffered']
    #allocation7 [shape = 's32[1]{0}', space=sflag, size = 0x4, scoped, tag = 'scoped memory for tpu_custom_call.1']
    #allocation8 [shape = 'u8[16384]{0}', space=vmem, size = 0x4000, scoped, tag = 'input window, operand 2, single buffered']
    #allocation9 [shape = 'u8[16384]{0}', space=vmem, size = 0x4000, scoped, tag = 'output window, operand 0, single buffered']
    %9 = vsyncpa [#allocation4], 0
    %10 = vsyncpa [#allocation7], 0
    %11 = vsyncpa [#allocation5], 0
    // Predicated region
    $region2: #{tpu_custom_call.1} parent=1 // pred_check
      _
    $region3: #{tpu_custom_call.1} parent=1 // pred_check_branch
      %13 = sbr.rel (0) target = $region5
    $region4: #{tpu_custom_call.1} parent=1 // pred_region
      %s15 = ssub.s32 512, 512
      %16 = vsyncadd [#allocation4], %s15
      %s17 = sshll.u32 [#allocation3], 4
      %s18 = int_to_ptr.vmem [resolvable:$true] %s17
      %23 = dma.hbm_to_vmem [thread:$0]  %s0, 512, %s18, [#allocation4], 128, 128, 8
    $region5: #{tpu_custom_call.1} parent=1 // pred_fallthru
      _
    // Predicated region
    $region6: #{tpu_custom_call.1} parent=1 // pred_check
      _
    $region7: #{tpu_custom_call.1} parent=1 // pred_check_branch
      %25 = sbr.rel (0) target = $region9
    $region8: #{tpu_custom_call.1} parent=1 // pred_region
      %s27 = ssub.s32 512, 512
      %28 = vsyncadd [#allocation7], %s27
      %s29 = sshll.u32 [#allocation6], 4
      %s30 = int_to_ptr.vmem [resolvable:$true] %s29
      %35 = dma.hbm_to_vmem [thread:$0]  %s1, 512, %s30, [#allocation7], 128, 128, 8
    $region9: #{tpu_custom_call.1} parent=1 // pred_fallthru
      _
    // Predicated region
    $region10: #{tpu_custom_call.1} parent=1 // pred_check
      _
    $region11: #{tpu_custom_call.1} parent=1 // pred_check_branch
      %37 = sbr.rel (0) target = $region13
    $region12: #{tpu_custom_call.1} parent=1 // pred_region
      %s39 = ssub.s32 512, 512
      %40 = vsyncadd [#allocation7], %s39
      %s41 = sshll.u32 [#allocation8], 4
      %s42 = int_to_ptr.vmem [resolvable:$true] %s41
      %47 = dma.hbm_to_vmem [thread:$0]  %s2, 512, %s42, [#allocation7], 128, 128, 8
    $region13: #{tpu_custom_call.1} parent=1 // pred_fallthru
      _
    // Predicated region
    $region14: #{tpu_custom_call.1} parent=1 // pred_check
      _
    $region15: #{tpu_custom_call.1} parent=1 // pred_check_branch
      %49 = sbr.rel (0) target = $region17
    $region16: #{tpu_custom_call.1} parent=1 // pred_region
      _
    $region17: #{tpu_custom_call.1} parent=1 // pred_fallthru
      _
    // Predicated region
    $region18: #{tpu_custom_call.1} parent=1 // pred_check
      _
    $region19: #{tpu_custom_call.1} parent=1 // pred_check_branch
      %51 = sbr.rel (0) target = $region21
    $region20: #{tpu_custom_call.1} parent=1 // pred_region
      %52 = dma.done [#allocation4], 512
    $region21: #{tpu_custom_call.1} parent=1 // pred_fallthru
      _
    // Predicated region
    $region22: #{tpu_custom_call.1} parent=1 // pred_check
      _
    $region23: #{tpu_custom_call.1} parent=1 // pred_check_branch
      %54 = sbr.rel (0) target = $region25
    $region24: #{tpu_custom_call.1} parent=1 // pred_region
      %55 = dma.done [#allocation7], 512
    $region25: #{tpu_custom_call.1} parent=1 // pred_fallthru
      _
    // Predicated region
    $region26: #{tpu_custom_call.1} parent=1 // pred_check
      _
    $region27: #{tpu_custom_call.1} parent=1 // pred_check_branch
      %57 = sbr.rel (0) target = $region29
    $region28: #{tpu_custom_call.1} parent=1 // pred_region
      %58 = dma.done [#allocation7], 512
    $region29: #{tpu_custom_call.1} parent=1 // pred_fallthru
      _
    %v59 = vld [vmem:[#allocation3] sm:$0xff]
    %v60 = vld [vmem:[#allocation3 + $0x8] sm:$0xff]
    %v61 = vld [vmem:[#allocation3 + $0x10] sm:$0xff]
    %v62 = vld [vmem:[#allocation3 + $0x18] sm:$0xff]
    %v63 = vld [vmem:[#allocation6] sm:$0xff]
    %v64 = vld [vmem:[#allocation6 + $0x8] sm:$0xff]
    %v65 = vld [vmem:[#allocation6 + $0x10] sm:$0xff]
    %v66 = vld [vmem:[#allocation6 + $0x18] sm:$0xff]
    %v67 = vld [vmem:[#allocation8] sm:$0xff]
    %v68 = vld [vmem:[#allocation8 + $0x8] sm:$0xff]
    %v69 = vld [vmem:[#allocation8 + $0x10] sm:$0xff]
    %v70 = vld [vmem:[#allocation8 + $0x18] sm:$0xff]
    %v71 = vld [vmem:[%s3] sm:$0x1]
    %vm72 = vcmask 261120
    %v74 = vsel %vm72, %v59, 0
    %v77 = vsel %vm72, %v60, 0
    %v80 = vsel %vm72, %v61, 0
    %v83 = vsel %vm72, %v62, 0
    %85 = vmatprep.subr.mxu0 0.0
    %86 = vmatpush1.msra.mxu0 %v63
    %87 = vmatprep.subr.mxu0 0.0
    %88 = vmatpush1.msra.mxu0 %v64
    %89 = vmatprep.subr.mxu0 0.0
    %90 = vmatpush1.msra.mxu0 %v65
    %91 = vmatprep.subr.mxu0 0.0
    %92 = vmatpush1.msra.mxu0 %v66
    %93 = vmatprep.subr.mxu0 0.0
    %94 = vmatpush1.msra.mxu0 0.0
    %95 = vmatprep.subr.mxu0 0.0
    %96 = vmatpush1.msra.mxu0 0.0
    %97 = vmatprep.subr.mxu0 0.0
    %98 = vmatpush1.msra.mxu0 0.0
    %99 = vmatprep.subr.mxu0 0.0
    %100 = vmatpush1.msra.mxu0 0.0
    %101 = vmatprep.subr.mxu0 0.0
    %102 = vmatpush1.msra.mxu0 0.0
    %103 = vmatprep.subr.mxu0 0.0
    %104 = vmatpush1.msra.mxu0 0.0
    %105 = vmatprep.subr.mxu0 0.0
    %106 = vmatpush1.msra.mxu0 0.0
    %107 = vmatprep.subr.mxu0 0.0
    %108 = vmatpush1.msra.mxu0 0.0
    %109 = vmatprep.subr.mxu0 0.0
    %110 = vmatpush1.msra.mxu0 0.0
    %111 = vmatprep.subr.mxu0 0.0
    %112 = vmatpush1.msra.mxu0 0.0
    %113 = vmatprep.subr.mxu0 0.0
    %114 = vmatpush1.msra.mxu0 0.0
    %115 = vmatprep.subr.mxu0 0.0
    %116 = vmatpush1.msra.mxu0 0.0
    %117 = vmatprep.subr.mxu0 0.0
    %118 = vmatpush1.msra.mxu0 0.0
    %119 = vmatprep.subr.mxu0 0.0
    %120 = vmatpush1.msra.mxu0 0.0
    %121 = vmatprep.subr.mxu0 0.0
    %122 = vmatpush1.msra.mxu0 0.0
    %123 = vmatprep.subr.mxu0 0.0
    %124 = vmatpush1.msra.mxu0 0.0
    %125 = vmatprep.subr.mxu0 0.0
    %126 = vmatpush1.msra.mxu0 0.0
    %127 = vmatprep.subr.mxu0 0.0
    %128 = vmatpush1.msra.mxu0 0.0
    %129 = vmatprep.subr.mxu0 0.0
    %130 = vmatpush1.msra.mxu0 0.0
    %131 = vmatprep.subr.mxu0 0.0
    %132 = vmatpush1.msra.mxu0 0.0
    %133 = vmatprep.subr.mxu0 0.0
    %134 = vmatpush1.msra.mxu0 0.0
    %135 = vmatprep.subr.mxu0 0.0
    %136 = vmatpush1.msra.mxu0 0.0
    %137 = vmatprep.subr.mxu0 0.0
    %138 = vmatpush1.msra.mxu0 0.0
    %139 = vmatprep.subr.mxu0 0.0
    %140 = vmatpush1.msra.mxu0 0.0
    %141 = vmatprep.subr.mxu0 0.0
    %142 = vmatpush1.msra.mxu0 0.0
    %143 = vmatprep.subr.mxu0 0.0
    %144 = vmatpush1.msra.mxu0 0.0
    %145 = vmatprep.subr.mxu0 0.0
    %146 = vmatpush1.msra.mxu0 0.0
    %147 = vmatprep.subr.mxu0 0.0
    %148 = vmatpush1.msra.mxu0 0.0
    %149 = vmatprep.mubr.f32.mxu0 0.0
    %150 = vmatmul.mubr.f32.gmra.mrb[0].mxu0 %v74
    %v151 = vpop.f32.mrb[0].mxu0
    %v152 = vadd.f32 0.0, %v151
    %v153 = vpop.f32.mrb[0].mxu0
    %154 = vmatprep.mubr.f32.mxu0 0.0
    %155 = vmatmul.mubr.f32.gmra.mrb[0].mxu0 %v77
    %v156 = vpop.f32.mrb[0].mxu0
    %v157 = vadd.f32 0.0, %v156
    %v158 = vpop.f32.mrb[0].mxu0
    %159 = vmatprep.mubr.f32.mxu0 0.0
    %160 = vmatmul.mubr.f32.gmra.mrb[0].mxu0 %v80
    %v161 = vpop.f32.mrb[0].mxu0
    %v162 = vadd.f32 0.0, %v161
    %v163 = vpop.f32.mrb[0].mxu0
    %164 = vmatprep.mubr.f32.mxu0 0.0
    %165 = vmatmul.mubr.f32.gmra.mrb[0].mxu0 %v83
    %v166 = vpop.f32.mrb[0].mxu0
    %v167 = vadd.f32 0.0, %v166
    %v168 = vpop.f32.mrb[0].mxu0
    %169 = vdwg.mxu0
    %172 = vrot.lane.b32.xlu0 %v152, 96
    %v173 = vpop.permute.xlu0 %172
    %174 = vrot.lane.b32.xlu0 %v157, 96
    %v175 = vpop.permute.xlu0 %174
    %vm176 = vcmask 31744
    %v177 = vsel %vm176, %v152, 0
    %v179 = vsel %vm176, %v157, 0
    %v181 = vsel %vm176, %v173, 0
    %v183 = vsel %vm176, %v175, 0
    %185 = vmatprep.subr.mxu0 0.0
    %186 = vmatpush1.xpose.msra.mxu0 %v181
    %187 = vmatprep.subr.mxu0 0.0
    %188 = vmatpush1.xpose.msra.mxu0 %v183
    %189 = vmatprep.subr.mxu0 0.0
    %190 = vmatpush1.xpose.msra.mxu0 0.0
    %191 = vmatprep.subr.mxu0 0.0
    %192 = vmatpush1.xpose.msra.mxu0 0.0
    %193 = vmatprep.subr.mxu0 0.0
    %194 = vmatpush1.xpose.msra.mxu0 0.0
    %195 = vmatprep.subr.mxu0 0.0
    %196 = vmatpush1.xpose.msra.mxu0 0.0
    %197 = vmatprep.subr.mxu0 0.0
    %198 = vmatpush1.xpose.msra.mxu0 0.0
    %199 = vmatprep.subr.mxu0 0.0
    %200 = vmatpush1.xpose.msra.mxu0 0.0
    %201 = vmatprep.subr.mxu0 0.0
    %202 = vmatpush1.xpose.msra.mxu0 0.0
    %203 = vmatprep.subr.mxu0 0.0
    %204 = vmatpush1.xpose.msra.mxu0 0.0
    %205 = vmatprep.subr.mxu0 0.0
    %206 = vmatpush1.xpose.msra.mxu0 0.0
    %207 = vmatprep.subr.mxu0 0.0
    %208 = vmatpush1.xpose.msra.mxu0 0.0
    %209 = vmatprep.subr.mxu0 0.0
    %210 = vmatpush1.xpose.msra.mxu0 0.0
    %211 = vmatprep.subr.mxu0 0.0
    %212 = vmatpush1.xpose.msra.mxu0 0.0
    %213 = vmatprep.subr.mxu0 0.0
    %214 = vmatpush1.xpose.msra.mxu0 0.0
    %215 = vmatprep.subr.mxu0 0.0
    %216 = vmatpush1.xpose.msra.mxu0 0.0
    %217 = vmatprep.subr.mxu0 0.0
    %218 = vmatpush1.xpose.msra.mxu0 0.0
    %219 = vmatprep.subr.mxu0 0.0
    %220 = vmatpush1.xpose.msra.mxu0 0.0
    %221 = vmatprep.subr.mxu0 0.0
    %222 = vmatpush1.xpose.msra.mxu0 0.0
    %223 = vmatprep.subr.mxu0 0.0
    %224 = vmatpush1.xpose.msra.mxu0 0.0
    %225 = vmatprep.subr.mxu0 0.0
    %226 = vmatpush1.xpose.msra.mxu0 0.0
    %227 = vmatprep.subr.mxu0 0.0
    %228 = vmatpush1.xpose.msra.mxu0 0.0
    %229 = vmatprep.subr.mxu0 0.0
    %230 = vmatpush1.xpose.msra.mxu0 0.0
    %231 = vmatprep.subr.mxu0 0.0
    %232 = vmatpush1.xpose.msra.mxu0 0.0
    %233 = vmatprep.subr.mxu0 0.0
    %234 = vmatpush1.xpose.msra.mxu0 0.0
    %235 = vmatprep.subr.mxu0 0.0
    %236 = vmatpush1.xpose.msra.mxu0 0.0
    %237 = vmatprep.subr.mxu0 0.0
    %238 = vmatpush1.xpose.msra.mxu0 0.0
    %239 = vmatprep.subr.mxu0 0.0
    %240 = vmatpush1.xpose.msra.mxu0 0.0
    %241 = vmatprep.subr.mxu0 0.0
    %242 = vmatpush1.xpose.msra.mxu0 0.0
    %243 = vmatprep.subr.mxu0 0.0
    %244 = vmatpush1.xpose.msra.mxu0 0.0
    %245 = vmatprep.subr.mxu0 0.0
    %246 = vmatpush1.xpose.msra.mxu0 0.0
    %247 = vmatprep.subr.mxu0 0.0
    %248 = vmatpush1.xpose.msra.mxu0 0.0
    %249 = vmatprep.mubr.f32.mxu0 0.0
    %250 = vmatmul.mubr.f32.gmra.mrb[0].mxu0 %v177
    %v251 = vpop.f32.mrb[0].mxu0
    %v252 = vadd.f32 0.0, %v251
    %v253 = vpop.f32.mrb[0].mxu0
    %254 = vmatprep.mubr.f32.mxu0 0.0
    %255 = vmatmul.mubr.f32.gmra.mrb[0].mxu0 %v179
    %v256 = vpop.f32.mrb[0].mxu0
    %v257 = vadd.f32 0.0, %v256
    %v258 = vpop.f32.mrb[0].mxu0
    %259 = vdwg.mxu0
    %vm260 = vcmask 130048
    %v261 = vsel %vm260, %v252, -inf
    %262 = vmax.xlane.f32.xlu0 %v261
    %v263 = vpop.xlane.xlu0 %262
    %v264 = vsel %vm260, %v257, -inf
    %265 = vmax.xlane.f32.xlu0 %v264
    %v266 = vpop.xlane.xlu0 %265
    %v267 = vsub.f32 %v252, %v263
    %v268 = vsub.f32 %v257, %v266
    %v269 = vmul.f32 %v267, 1.442695
    %v270 = vpow.pop %v269
    %v271 = vmul.f32 %v268, 1.442695
    %v272 = vpow.pop %v271
    %v273 = vsel %vm260, %v270, 0.0
    %274 = vadd.xlane.f32.xlu0 %v273
    %v275 = vpop.xlane.xlu0 %274
    %v276 = vsel %vm260, %v272, 0.0
    %277 = vadd.xlane.f32.xlu0 %v276
    %v278 = vpop.xlane.xlu0 %277
    %v279 = vrcp.pop %v275
    %v280 = vrcp.pop %v278
    %v281 = vmul.f32 %v270, %v279
    %v282 = vmul.f32 %v272, %v280
    %283 = vrot.lane.b32.xlu0 %v152, 64
    %v284 = vpop.permute.xlu0 %283
    %285 = vrot.lane.b32.xlu0 %v157, 64
    %v286 = vpop.permute.xlu0 %285
    %v290 = vsel %vm260, %v281, 0
    %v293 = vsel %vm260, %v282, 0
    %295 = vmatprep.subr.mxu0 0.0
    %296 = vmatpush1.msra.mxu0 %v284
    %297 = vmatprep.subr.mxu0 0.0
    %298 = vmatpush1.msra.mxu0 %v286
    %299 = vmatprep.subr.mxu0 0.0
    %300 = vmatpush1.msra.mxu0 0.0
    %301 = vmatprep.subr.mxu0 0.0
    %302 = vmatpush1.msra.mxu0 0.0
    %303 = vmatprep.subr.mxu0 0.0
    %304 = vmatpush1.msra.mxu0 0.0
    %305 = vmatprep.subr.mxu0 0.0
    %306 = vmatpush1.msra.mxu0 0.0
    %307 = vmatprep.subr.mxu0 0.0
    %308 = vmatpush1.msra.mxu0 0.0
    %309 = vmatprep.subr.mxu0 0.0
    %310 = vmatpush1.msra.mxu0 0.0
    %311 = vmatprep.subr.mxu0 0.0
    %312 = vmatpush1.msra.mxu0 0.0
    %313 = vmatprep.subr.mxu0 0.0
    %314 = vmatpush1.msra.mxu0 0.0
    %315 = vmatprep.subr.mxu0 0.0
    %316 = vmatpush1.msra.mxu0 0.0
    %317 = vmatprep.subr.mxu0 0.0
    %318 = vmatpush1.msra.mxu0 0.0
    %319 = vmatprep.subr.mxu0 0.0
    %320 = vmatpush1.msra.mxu0 0.0
    %321 = vmatprep.subr.mxu0 0.0
    %322 = vmatpush1.msra.mxu0 0.0
    %323 = vmatprep.subr.mxu0 0.0
    %324 = vmatpush1.msra.mxu0 0.0
    %325 = vmatprep.subr.mxu0 0.0
    %326 = vmatpush1.msra.mxu0 0.0
    %327 = vmatprep.subr.mxu0 0.0
    %328 = vmatpush1.msra.mxu0 0.0
    %329 = vmatprep.subr.mxu0 0.0
    %330 = vmatpush1.msra.mxu0 0.0
    %331 = vmatprep.subr.mxu0 0.0
    %332 = vmatpush1.msra.mxu0 0.0
    %333 = vmatprep.subr.mxu0 0.0
    %334 = vmatpush1.msra.mxu0 0.0
    %335 = vmatprep.subr.mxu0 0.0
    %336 = vmatpush1.msra.mxu0 0.0
    %337 = vmatprep.subr.mxu0 0.0
    %338 = vmatpush1.msra.mxu0 0.0
    %339 = vmatprep.subr.mxu0 0.0
    %340 = vmatpush1.msra.mxu0 0.0
    %341 = vmatprep.subr.mxu0 0.0
    %342 = vmatpush1.msra.mxu0 0.0
    %343 = vmatprep.subr.mxu0 0.0
    %344 = vmatpush1.msra.mxu0 0.0
    %345 = vmatprep.subr.mxu0 0.0
    %346 = vmatpush1.msra.mxu0 0.0
    %347 = vmatprep.subr.mxu0 0.0
    %348 = vmatpush1.msra.mxu0 0.0
    %349 = vmatprep.subr.mxu0 0.0
    %350 = vmatpush1.msra.mxu0 0.0
    %351 = vmatprep.subr.mxu0 0.0
    %352 = vmatpush1.msra.mxu0 0.0
    %353 = vmatprep.subr.mxu0 0.0
    %354 = vmatpush1.msra.mxu0 0.0
    %355 = vmatprep.subr.mxu0 0.0
    %356 = vmatpush1.msra.mxu0 0.0
    %357 = vmatprep.subr.mxu0 0.0
    %358 = vmatpush1.msra.mxu0 0.0
    %359 = vmatprep.mubr.f32.mxu0 0.0
    %360 = vmatmul.mubr.f32.gmra.mrb[0].mxu0 %v290
    %v361 = vpop.f32.mrb[0].mxu0
    %v362 = vadd.f32 0.0, %v361
    %v363 = vpop.f32.mrb[0].mxu0
    %364 = vmatprep.mubr.f32.mxu0 0.0
    %365 = vmatmul.mubr.f32.gmra.mrb[0].mxu0 %v293
    %v366 = vpop.f32.mrb[0].mxu0
    %v367 = vadd.f32 0.0, %v366
    %v368 = vpop.f32.mrb[0].mxu0
    %369 = vdwg.mxu0
    %370 = vst.msk [vmem:[#allocation2] sm:$0xff] %vm176, %v362
    %371 = vst.msk [vmem:[#allocation2 + $0x8] sm:$0xff] %vm176, %v367
    %372 = vrot.lane.b32.xlu0 %v152, 124
    %v373 = vpop.permute.xlu0 %372
    %374 = vrot.lane.b32.xlu0 %v157, 124
    %v375 = vpop.permute.xlu0 %374
    %376 = vrot.lane.b32.xlu0 %v152, 92
    %v377 = vpop.permute.xlu0 %376
    %378 = vrot.lane.b32.xlu0 %v157, 92
    %v379 = vpop.permute.xlu0 %378
    %v380 = vsel %vm176, %v373, 0
    %v382 = vsel %vm176, %v375, 0
    %v384 = vsel %vm176, %v377, 0
    %v386 = vsel %vm176, %v379, 0
    %388 = vmatprep.subr.mxu0 0.0
    %389 = vmatpush1.xpose.msra.mxu0 %v384
    %390 = vmatprep.subr.mxu0 0.0
    %391 = vmatpush1.xpose.msra.mxu0 %v386
    %392 = vmatprep.subr.mxu0 0.0
    %393 = vmatpush1.xpose.msra.mxu0 0.0
    %394 = vmatprep.subr.mxu0 0.0
    %395 = vmatpush1.xpose.msra.mxu0 0.0
    %396 = vmatprep.subr.mxu0 0.0
    %397 = vmatpush1.xpose.msra.mxu0 0.0
    %398 = vmatprep.subr.mxu0 0.0
    %399 = vmatpush1.xpose.msra.mxu0 0.0
    %400 = vmatprep.subr.mxu0 0.0
    %401 = vmatpush1.xpose.msra.mxu0 0.0
    %402 = vmatprep.subr.mxu0 0.0
    %403 = vmatpush1.xpose.msra.mxu0 0.0
    %404 = vmatprep.subr.mxu0 0.0
    %405 = vmatpush1.xpose.msra.mxu0 0.0
    %406 = vmatprep.subr.mxu0 0.0
    %407 = vmatpush1.xpose.msra.mxu0 0.0
    %408 = vmatprep.subr.mxu0 0.0
    %409 = vmatpush1.xpose.msra.mxu0 0.0
    %410 = vmatprep.subr.mxu0 0.0
    %411 = vmatpush1.xpose.msra.mxu0 0.0
    %412 = vmatprep.subr.mxu0 0.0
    %413 = vmatpush1.xpose.msra.mxu0 0.0
    %414 = vmatprep.subr.mxu0 0.0
    %415 = vmatpush1.xpose.msra.mxu0 0.0
    %416 = vmatprep.subr.mxu0 0.0
    %417 = vmatpush1.xpose.msra.mxu0 0.0
    %418 = vmatprep.subr.mxu0 0.0
    %419 = vmatpush1.xpose.msra.mxu0 0.0
    %420 = vmatprep.subr.mxu0 0.0
    %421 = vmatpush1.xpose.msra.mxu0 0.0
    %422 = vmatprep.subr.mxu0 0.0
    %423 = vmatpush1.xpose.msra.mxu0 0.0
    %424 = vmatprep.subr.mxu0 0.0
    %425 = vmatpush1.xpose.msra.mxu0 0.0
    %426 = vmatprep.subr.mxu0 0.0
    %427 = vmatpush1.xpose.msra.mxu0 0.0
    %428 = vmatprep.subr.mxu0 0.0
    %429 = vmatpush1.xpose.msra.mxu0 0.0
    %430 = vmatprep.subr.mxu0 0.0
    %431 = vmatpush1.xpose.msra.mxu0 0.0
    %432 = vmatprep.subr.mxu0 0.0
    %433 = vmatpush1.xpose.msra.mxu0 0.0
    %434 = vmatprep.subr.mxu0 0.0
    %435 = vmatpush1.xpose.msra.mxu0 0.0
    %436 = vmatprep.subr.mxu0 0.0
    %437 = vmatpush1.xpose.msra.mxu0 0.0
    %438 = vmatprep.subr.mxu0 0.0
    %439 = vmatpush1.xpose.msra.mxu0 0.0
    %440 = vmatprep.subr.mxu0 0.0
    %441 = vmatpush1.xpose.msra.mxu0 0.0
    %442 = vmatprep.subr.mxu0 0.0
    %443 = vmatpush1.xpose.msra.mxu0 0.0
    %444 = vmatprep.subr.mxu0 0.0
    %445 = vmatpush1.xpose.msra.mxu0 0.0
    %446 = vmatprep.subr.mxu0 0.0
    %447 = vmatpush1.xpose.msra.mxu0 0.0
    %448 = vmatprep.subr.mxu0 0.0
    %449 = vmatpush1.xpose.msra.mxu0 0.0
    %450 = vmatprep.subr.mxu0 0.0
    %451 = vmatpush1.xpose.msra.mxu0 0.0
    %452 = vmatprep.mubr.f32.mxu0 0.0
    %453 = vmatmul.mubr.f32.gmra.mrb[0].mxu0 %v380
    %v454 = vpop.f32.mrb[0].mxu0
    %v455 = vadd.f32 0.0, %v454
    %v456 = vpop.f32.mrb[0].mxu0
    %457 = vmatprep.mubr.f32.mxu0 0.0
    %458 = vmatmul.mubr.f32.gmra.mrb[0].mxu0 %v382
    %v459 = vpop.f32.mrb[0].mxu0
    %v460 = vadd.f32 0.0, %v459
    %v461 = vpop.f32.mrb[0].mxu0
    %462 = vdwg.mxu0
    %v463 = vsel %vm260, %v455, -inf
    %464 = vmax.xlane.f32.xlu0 %v463
    %v465 = vpop.xlane.xlu0 %464
    %v466 = vsel %vm260, %v460, -inf
    %467 = vmax.xlane.f32.xlu0 %v466
    %v468 = vpop.xlane.xlu0 %467
    %v469 = vsub.f32 %v455, %v465
    %v470 = vsub.f32 %v460, %v468
    %v471 = vmul.f32 %v469, 1.442695
    %v472 = vpow.pop %v471
    %v473 = vmul.f32 %v470, 1.442695
    %v474 = vpow.pop %v473
    %v475 = vsel %vm260, %v472, 0.0
    %476 = vadd.xlane.f32.xlu0 %v475
    %v477 = vpop.xlane.xlu0 %476
    %v478 = vsel %vm260, %v474, 0.0
    %479 = vadd.xlane.f32.xlu0 %v478
    %v480 = vpop.xlane.xlu0 %479
    %v481 = vrcp.pop %v477
    %v482 = vrcp.pop %v480
    %v483 = vmul.f32 %v472, %v481
    %v484 = vmul.f32 %v474, %v482
    %485 = vrot.lane.b32.xlu0 %v152, 60
    %v486 = vpop.permute.xlu0 %485
    %487 = vrot.lane.b32.xlu0 %v157, 60
    %v488 = vpop.permute.xlu0 %487
    %v492 = vsel %vm260, %v483, 0
    %v495 = vsel %vm260, %v484, 0
    %497 = vmatprep.subr.mxu0 0.0
    %498 = vmatpush1.msra.mxu0 %v486
    %499 = vmatprep.subr.mxu0 0.0
    %500 = vmatpush1.msra.mxu0 %v488
    %501 = vmatprep.subr.mxu0 0.0
    %502 = vmatpush1.msra.mxu0 0.0
    %503 = vmatprep.subr.mxu0 0.0
    %504 = vmatpush1.msra.mxu0 0.0
    %505 = vmatprep.subr.mxu0 0.0
    %506 = vmatpush1.msra.mxu0 0.0
    %507 = vmatprep.subr.mxu0 0.0
    %508 = vmatpush1.msra.mxu0 0.0
    %509 = vmatprep.subr.mxu0 0.0
    %510 = vmatpush1.msra.mxu0 0.0
    %511 = vmatprep.subr.mxu0 0.0
    %512 = vmatpush1.msra.mxu0 0.0
    %513 = vmatprep.subr.mxu0 0.0
    %514 = vmatpush1.msra.mxu0 0.0
    %515 = vmatprep.subr.mxu0 0.0
    %516 = vmatpush1.msra.mxu0 0.0
    %517 = vmatprep.subr.mxu0 0.0
    %518 = vmatpush1.msra.mxu0 0.0
    %519 = vmatprep.subr.mxu0 0.0
    %520 = vmatpush1.msra.mxu0 0.0
    %521 = vmatprep.subr.mxu0 0.0
    %522 = vmatpush1.msra.mxu0 0.0
    %523 = vmatprep.subr.mxu0 0.0
    %524 = vmatpush1.msra.mxu0 0.0
    %525 = vmatprep.subr.mxu0 0.0
    %526 = vmatpush1.msra.mxu0 0.0
    %527 = vmatprep.subr.mxu0 0.0
    %528 = vmatpush1.msra.mxu0 0.0
    %529 = vmatprep.subr.mxu0 0.0
    %530 = vmatpush1.msra.mxu0 0.0
    %531 = vmatprep.subr.mxu0 0.0
    %532 = vmatpush1.msra.mxu0 0.0
    %533 = vmatprep.subr.mxu0 0.0
    %534 = vmatpush1.msra.mxu0 0.0
    %535 = vmatprep.subr.mxu0 0.0
    %536 = vmatpush1.msra.mxu0 0.0
    %537 = vmatprep.subr.mxu0 0.0
    %538 = vmatpush1.msra.mxu0 0.0
    %539 = vmatprep.subr.mxu0 0.0
    %540 = vmatpush1.msra.mxu0 0.0
    %541 = vmatprep.subr.mxu0 0.0
    %542 = vmatpush1.msra.mxu0 0.0
    %543 = vmatprep.subr.mxu0 0.0
    %544 = vmatpush1.msra.mxu0 0.0
    %545 = vmatprep.subr.mxu0 0.0
    %546 = vmatpush1.msra.mxu0 0.0
    %547 = vmatprep.subr.mxu0 0.0
    %548 = vmatpush1.msra.mxu0 0.0
    %549 = vmatprep.subr.mxu0 0.0
    %550 = vmatpush1.msra.mxu0 0.0
    %551 = vmatprep.subr.mxu0 0.0
    %552 = vmatpush1.msra.mxu0 0.0
    %553 = vmatprep.subr.mxu0 0.0
    %554 = vmatpush1.msra.mxu0 0.0
    %555 = vmatprep.subr.mxu0 0.0
    %556 = vmatpush1.msra.mxu0 0.0
    %557 = vmatprep.subr.mxu0 0.0
    %558 = vmatpush1.msra.mxu0 0.0
    %559 = vmatprep.subr.mxu0 0.0
    %560 = vmatpush1.msra.mxu0 0.0
    %561 = vmatprep.mubr.f32.mxu0 0.0
    %562 = vmatmul.mubr.f32.gmra.mrb[0].mxu0 %v492
    %v563 = vpop.f32.mrb[0].mxu0
    %v564 = vadd.f32 0.0, %v563
    %v565 = vpop.f32.mrb[0].mxu0
    %566 = vmatprep.mubr.f32.mxu0 0.0
    %567 = vmatmul.mubr.f32.gmra.mrb[0].mxu0 %v495
    %v568 = vpop.f32.mrb[0].mxu0
    %v569 = vadd.f32 0.0, %v568
    %v570 = vpop.f32.mrb[0].mxu0
    %571 = vdwg.mxu0
    %574 = vrot.lane.b32.xlu0 %v564, 4
    %v575 = vpop.permute.xlu0 %574
    %576 = vrot.lane.b32.xlu0 %v569, 4
    %v577 = vpop.permute.xlu0 %576
    %vm580 = vcmask 64544
    %581 = vst.msk [vmem:[#allocation2] sm:$0xff] %vm580, %v575
    %582 = vst.msk [vmem:[#allocation2 + $0x8] sm:$0xff] %vm580, %v577
    %583 = vrot.lane.b32.xlu0 %v152, 120
    %v584 = vpop.permute.xlu0 %583
    %585 = vrot.lane.b32.xlu0 %v157, 120
    %v586 = vpop.permute.xlu0 %585
    %587 = vrot.lane.b32.xlu0 %v152, 88
    %v588 = vpop.permute.xlu0 %587
    %589 = vrot.lane.b32.xlu0 %v157, 88
    %v590 = vpop.permute.xlu0 %589
    %v591 = vsel %vm176, %v584, 0
    %v593 = vsel %vm176, %v586, 0
    %v595 = vsel %vm176, %v588, 0
    %v597 = vsel %vm176, %v590, 0
    %599 = vmatprep.subr.mxu0 0.0
    %600 = vmatpush1.xpose.msra.mxu0 %v595
    %601 = vmatprep.subr.mxu0 0.0
    %602 = vmatpush1.xpose.msra.mxu0 %v597
    %603 = vmatprep.subr.mxu0 0.0
    %604 = vmatpush1.xpose.msra.mxu0 0.0
    %605 = vmatprep.subr.mxu0 0.0
    %606 = vmatpush1.xpose.msra.mxu0 0.0
    %607 = vmatprep.subr.mxu0 0.0
    %608 = vmatpush1.xpose.msra.mxu0 0.0
    %609 = vmatprep.subr.mxu0 0.0
    %610 = vmatpush1.xpose.msra.mxu0 0.0
    %611 = vmatprep.subr.mxu0 0.0
    %612 = vmatpush1.xpose.msra.mxu0 0.0
    %613 = vmatprep.subr.mxu0 0.0
    %614 = vmatpush1.xpose.msra.mxu0 0.0
    %615 = vmatprep.subr.mxu0 0.0
    %616 = vmatpush1.xpose.msra.mxu0 0.0
    %617 = vmatprep.subr.mxu0 0.0
    %618 = vmatpush1.xpose.msra.mxu0 0.0
    %619 = vmatprep.subr.mxu0 0.0
    %620 = vmatpush1.xpose.msra.mxu0 0.0
    %621 = vmatprep.subr.mxu0 0.0
    %622 = vmatpush1.xpose.msra.mxu0 0.0
    %623 = vmatprep.subr.mxu0 0.0
    %624 = vmatpush1.xpose.msra.mxu0 0.0
    %625 = vmatprep.subr.mxu0 0.0
    %626 = vmatpush1.xpose.msra.mxu0 0.0
    %627 = vmatprep.subr.mxu0 0.0
    %628 = vmatpush1.xpose.msra.mxu0 0.0
    %629 = vmatprep.subr.mxu0 0.0
    %630 = vmatpush1.xpose.msra.mxu0 0.0
    %631 = vmatprep.subr.mxu0 0.0
    %632 = vmatpush1.xpose.msra.mxu0 0.0
    %633 = vmatprep.subr.mxu0 0.0
    %634 = vmatpush1.xpose.msra.mxu0 0.0
    %635 = vmatprep.subr.mxu0 0.0
    %636 = vmatpush1.xpose.msra.mxu0 0.0
    %637 = vmatprep.subr.mxu0 0.0
    %638 = vmatpush1.xpose.msra.mxu0 0.0
    %639 = vmatprep.subr.mxu0 0.0
    %640 = vmatpush1.xpose.msra.mxu0 0.0
    %641 = vmatprep.subr.mxu0 0.0
    %642 = vmatpush1.xpose.msra.mxu0 0.0
    %643 = vmatprep.subr.mxu0 0.0
    %644 = vmatpush1.xpose.msra.mxu0 0.0
    %645 = vmatprep.subr.mxu0 0.0
    %646 = vmatpush1.xpose.msra.mxu0 0.0
    %647 = vmatprep.subr.mxu0 0.0
    %648 = vmatpush1.xpose.msra.mxu0 0.0
    %649 = vmatprep.subr.mxu0 0.0
    %650 = vmatpush1.xpose.msra.mxu0 0.0
    %651 = vmatprep.subr.mxu0 0.0
    %652 = vmatpush1.xpose.msra.mxu0 0.0
    %653 = vmatprep.subr.mxu0 0.0
    %654 = vmatpush1.xpose.msra.mxu0 0.0
    %655 = vmatprep.subr.mxu0 0.0
    %656 = vmatpush1.xpose.msra.mxu0 0.0
    %657 = vmatprep.subr.mxu0 0.0
    %658 = vmatpush1.xpose.msra.mxu0 0.0
    %659 = vmatprep.subr.mxu0 0.0
    %660 = vmatpush1.xpose.msra.mxu0 0.0
    %661 = vmatprep.subr.mxu0 0.0
    %662 = vmatpush1.xpose.msra.mxu0 0.0
    %663 = vmatprep.mubr.f32.mxu0 0.0
    %664 = vmatmul.mubr.f32.gmra.mrb[0].mxu0 %v591
    %v665 = vpop.f32.mrb[0].mxu0
    %v666 = vadd.f32 0.0, %v665
    %v667 = vpop.f32.mrb[0].mxu0
    %668 = vmatprep.mubr.f32.mxu0 0.0
    %669 = vmatmul.mubr.f32.gmra.mrb[0].mxu0 %v593
    %v670 = vpop.f32.mrb[0].mxu0
    %v671 = vadd.f32 0.0, %v670
    %v672 = vpop.f32.mrb[0].mxu0
    %673 = vdwg.mxu0
    %v674 = vsel %vm260, %v666, -inf
    %675 = vmax.xlane.f32.xlu0 %v674
    %v676 = vpop.xlane.xlu0 %675
    %v677 = vsel %vm260, %v671, -inf
    %678 = vmax.xlane.f32.xlu0 %v677
    %v679 = vpop.xlane.xlu0 %678
    %v680 = vsub.f32 %v666, %v676
    %v681 = vsub.f32 %v671, %v679
    %v682 = vmul.f32 %v680, 1.442695
    %v683 = vpow.pop %v682
    %v684 = vmul.f32 %v681, 1.442695
    %v685 = vpow.pop %v684
    %v686 = vsel %vm260, %v683, 0.0
    %687 = vadd.xlane.f32.xlu0 %v686
    %v688 = vpop.xlane.xlu0 %687
    %v689 = vsel %vm260, %v685, 0.0
    %690 = vadd.xlane.f32.xlu0 %v689
    %v691 = vpop.xlane.xlu0 %690
    %v692 = vrcp.pop %v688
    %v693 = vrcp.pop %v691
    %v694 = vmul.f32 %v683, %v692
    %v695 = vmul.f32 %v685, %v693
    %696 = vrot.lane.b32.xlu0 %v152, 56
    %v697 = vpop.permute.xlu0 %696
    %698 = vrot.lane.b32.xlu0 %v157, 56
    %v699 = vpop.permute.xlu0 %698
    %v703 = vsel %vm260, %v694, 0
    %v706 = vsel %vm260, %v695, 0
    %708 = vmatprep.subr.mxu0 0.0
    %709 = vmatpush1.msra.mxu0 %v697
    %710 = vmatprep.subr.mxu0 0.0
    %711 = vmatpush1.msra.mxu0 %v699
    %712 = vmatprep.subr.mxu0 0.0
    %713 = vmatpush1.msra.mxu0 0.0
    %714 = vmatprep.subr.mxu0 0.0
    %715 = vmatpush1.msra.mxu0 0.0
    %716 = vmatprep.subr.mxu0 0.0
    %717 = vmatpush1.msra.mxu0 0.0
    %718 = vmatprep.subr.mxu0 0.0
    %719 = vmatpush1.msra.mxu0 0.0
    %720 = vmatprep.subr.mxu0 0.0
    %721 = vmatpush1.msra.mxu0 0.0
    %722 = vmatprep.subr.mxu0 0.0
    %723 = vmatpush1.msra.mxu0 0.0
    %724 = vmatprep.subr.mxu0 0.0
    %725 = vmatpush1.msra.mxu0 0.0
    %726 = vmatprep.subr.mxu0 0.0
    %727 = vmatpush1.msra.mxu0 0.0
    %728 = vmatprep.subr.mxu0 0.0
    %729 = vmatpush1.msra.mxu0 0.0
    %730 = vmatprep.subr.mxu0 0.0
    %731 = vmatpush1.msra.mxu0 0.0
    %732 = vmatprep.subr.mxu0 0.0
    %733 = vmatpush1.msra.mxu0 0.0
    %734 = vmatprep.subr.mxu0 0.0
    %735 = vmatpush1.msra.mxu0 0.0
    %736 = vmatprep.subr.mxu0 0.0
    %737 = vmatpush1.msra.mxu0 0.0
    %738 = vmatprep.subr.mxu0 0.0
    %739 = vmatpush1.msra.mxu0 0.0
    %740 = vmatprep.subr.mxu0 0.0
    %741 = vmatpush1.msra.mxu0 0.0
    %742 = vmatprep.subr.mxu0 0.0
    %743 = vmatpush1.msra.mxu0 0.0
    %744 = vmatprep.subr.mxu0 0.0
    %745 = vmatpush1.msra.mxu0 0.0
    %746 = vmatprep.subr.mxu0 0.0
    %747 = vmatpush1.msra.mxu0 0.0
    %748 = vmatprep.subr.mxu0 0.0
    %749 = vmatpush1.msra.mxu0 0.0
    %750 = vmatprep.subr.mxu0 0.0
    %751 = vmatpush1.msra.mxu0 0.0
    %752 = vmatprep.subr.mxu0 0.0
    %753 = vmatpush1.msra.mxu0 0.0
    %754 = vmatprep.subr.mxu0 0.0
    %755 = vmatpush1.msra.mxu0 0.0
    %756 = vmatprep.subr.mxu0 0.0
    %757 = vmatpush1.msra.mxu0 0.0
    %758 = vmatprep.subr.mxu0 0.0
    %759 = vmatpush1.msra.mxu0 0.0
    %760 = vmatprep.subr.mxu0 0.0
    %761 = vmatpush1.msra.mxu0 0.0
    %762 = vmatprep.subr.mxu0 0.0
    %763 = vmatpush1.msra.mxu0 0.0
    %764 = vmatprep.subr.mxu0 0.0
    %765 = vmatpush1.msra.mxu0 0.0
    %766 = vmatprep.subr.mxu0 0.0
    %767 = vmatpush1.msra.mxu0 0.0
    %768 = vmatprep.subr.mxu0 0.0
    %769 = vmatpush1.msra.mxu0 0.0
    %770 = vmatprep.subr.mxu0 0.0
    %771 = vmatpush1.msra.mxu0 0.0
    %772 = vmatprep.mubr.f32.mxu0 0.0
    %773 = vmatmul.mubr.f32.gmra.mrb[0].mxu0 %v703
    %v774 = vpop.f32.mrb[0].mxu0
    %v775 = vadd.f32 0.0, %v774
    %v776 = vpop.f32.mrb[0].mxu0
    %777 = vmatprep.mubr.f32.mxu0 0.0
    %778 = vmatmul.mubr.f32.gmra.mrb[0].mxu0 %v706
    %v779 = vpop.f32.mrb[0].mxu0
    %v780 = vadd.f32 0.0, %v779
    %v781 = vpop.f32.mrb[0].mxu0
    %782 = vdwg.mxu0
    %785 = vrot.lane.b32.xlu0 %v775, 8
    %v786 = vpop.permute.xlu0 %785
    %787 = vrot.lane.b32.xlu0 %v780, 8
    %v788 = vpop.permute.xlu0 %787
    %vm791 = vcmask 97344
    %792 = vst.msk [vmem:[#allocation2] sm:$0xff] %vm791, %v786
    %793 = vst.msk [vmem:[#allocation2 + $0x8] sm:$0xff] %vm791, %v788
    %794 = vrot.lane.b32.xlu0 %v152, 116
    %v795 = vpop.permute.xlu0 %794
    %796 = vrot.lane.b32.xlu0 %v157, 116
    %v797 = vpop.permute.xlu0 %796
    %798 = vrot.lane.b32.xlu0 %v152, 84
    %v799 = vpop.permute.xlu0 %798
    %800 = vrot.lane.b32.xlu0 %v157, 84
    %v801 = vpop.permute.xlu0 %800
    %v802 = vsel %vm176, %v795, 0
    %v804 = vsel %vm176, %v797, 0
    %v806 = vsel %vm176, %v799, 0
    %v808 = vsel %vm176, %v801, 0
    %810 = vmatprep.subr.mxu0 0.0
    %811 = vmatpush1.xpose.msra.mxu0 %v806
    %812 = vmatprep.subr.mxu0 0.0
    %813 = vmatpush1.xpose.msra.mxu0 %v808
    %814 = vmatprep.subr.mxu0 0.0
    %815 = vmatpush1.xpose.msra.mxu0 0.0
    %816 = vmatprep.subr.mxu0 0.0
    %817 = vmatpush1.xpose.msra.mxu0 0.0
    %818 = vmatprep.subr.mxu0 0.0
    %819 = vmatpush1.xpose.msra.mxu0 0.0
    %820 = vmatprep.subr.mxu0 0.0
    %821 = vmatpush1.xpose.msra.mxu0 0.0
    %822 = vmatprep.subr.mxu0 0.0
    %823 = vmatpush1.xpose.msra.mxu0 0.0
    %824 = vmatprep.subr.mxu0 0.0
    %825 = vmatpush1.xpose.msra.mxu0 0.0
    %826 = vmatprep.subr.mxu0 0.0
    %827 = vmatpush1.xpose.msra.mxu0 0.0
    %828 = vmatprep.subr.mxu0 0.0
    %829 = vmatpush1.xpose.msra.mxu0 0.0
    %830 = vmatprep.subr.mxu0 0.0
    %831 = vmatpush1.xpose.msra.mxu0 0.0
    %832 = vmatprep.subr.mxu0 0.0
    %833 = vmatpush1.xpose.msra.mxu0 0.0
    %834 = vmatprep.subr.mxu0 0.0
    %835 = vmatpush1.xpose.msra.mxu0 0.0
    %836 = vmatprep.subr.mxu0 0.0
    %837 = vmatpush1.xpose.msra.mxu0 0.0
    %838 = vmatprep.subr.mxu0 0.0
    %839 = vmatpush1.xpose.msra.mxu0 0.0
    %840 = vmatprep.subr.mxu0 0.0
    %841 = vmatpush1.xpose.msra.mxu0 0.0
    %842 = vmatprep.subr.mxu0 0.0
    %843 = vmatpush1.xpose.msra.mxu0 0.0
    %844 = vmatprep.subr.mxu0 0.0
    %845 = vmatpush1.xpose.msra.mxu0 0.0
    %846 = vmatprep.subr.mxu0 0.0
    %847 = vmatpush1.xpose.msra.mxu0 0.0
    %848 = vmatprep.subr.mxu0 0.0
    %849 = vmatpush1.xpose.msra.mxu0 0.0
    %850 = vmatprep.subr.mxu0 0.0
    %851 = vmatpush1.xpose.msra.mxu0 0.0
    %852 = vmatprep.subr.mxu0 0.0
    %853 = vmatpush1.xpose.msra.mxu0 0.0
    %854 = vmatprep.subr.mxu0 0.0
    %855 = vmatpush1.xpose.msra.mxu0 0.0
    %856 = vmatprep.subr.mxu0 0.0
    %857 = vmatpush1.xpose.msra.mxu0 0.0
    %858 = vmatprep.subr.mxu0 0.0
    %859 = vmatpush1.xpose.msra.mxu0 0.0
    %860 = vmatprep.subr.mxu0 0.0
    %861 = vmatpush1.xpose.msra.mxu0 0.0
    %862 = vmatprep.subr.mxu0 0.0
    %863 = vmatpush1.xpose.msra.mxu0 0.0
    %864 = vmatprep.subr.mxu0 0.0
    %865 = vmatpush1.xpose.msra.mxu0 0.0
    %866 = vmatprep.subr.mxu0 0.0
    %867 = vmatpush1.xpose.msra.mxu0 0.0
    %868 = vmatprep.subr.mxu0 0.0
    %869 = vmatpush1.xpose.msra.mxu0 0.0
    %870 = vmatprep.subr.mxu0 0.0
    %871 = vmatpush1.xpose.msra.mxu0 0.0
    %872 = vmatprep.subr.mxu0 0.0
    %873 = vmatpush1.xpose.msra.mxu0 0.0
    %874 = vmatprep.mubr.f32.mxu0 0.0
    %875 = vmatmul.mubr.f32.gmra.mrb[0].mxu0 %v802
    %v876 = vpop.f32.mrb[0].mxu0
    %v877 = vadd.f32 0.0, %v876
    %v878 = vpop.f32.mrb[0].mxu0
    %879 = vmatprep.mubr.f32.mxu0 0.0
    %880 = vmatmul.mubr.f32.gmra.mrb[0].mxu0 %v804
    %v881 = vpop.f32.mrb[0].mxu0
    %v882 = vadd.f32 0.0, %v881
    %v883 = vpop.f32.mrb[0].mxu0
    %884 = vdwg.mxu0
    %v885 = vsel %vm260, %v877, -inf
    %886 = vmax.xlane.f32.xlu0 %v885
    %v887 = vpop.xlane.xlu0 %886
    %v888 = vsel %vm260, %v882, -inf
    %889 = vmax.xlane.f32.xlu0 %v888
    %v890 = vpop.xlane.xlu0 %889
    %v891 = vsub.f32 %v877, %v887
    %v892 = vsub.f32 %v882, %v890
    %v893 = vmul.f32 %v891, 1.442695
    %v894 = vpow.pop %v893
    %v895 = vmul.f32 %v892, 1.442695
    %v896 = vpow.pop %v895
    %v897 = vsel %vm260, %v894, 0.0
    %898 = vadd.xlane.f32.xlu0 %v897
    %v899 = vpop.xlane.xlu0 %898
    %v900 = vsel %vm260, %v896, 0.0
    %901 = vadd.xlane.f32.xlu0 %v900
    %v902 = vpop.xlane.xlu0 %901
    %v903 = vrcp.pop %v899
    %v904 = vrcp.pop %v902
    %v905 = vmul.f32 %v894, %v903
    %v906 = vmul.f32 %v896, %v904
    %907 = vrot.lane.b32.xlu0 %v152, 52
    %v908 = vpop.permute.xlu0 %907
    %909 = vrot.lane.b32.xlu0 %v157, 52
    %v910 = vpop.permute.xlu0 %909
    %v914 = vsel %vm260, %v905, 0
    %v917 = vsel %vm260, %v906, 0
    %919 = vmatprep.subr.mxu0 0.0
    %920 = vmatpush1.msra.mxu0 %v908
    %921 = vmatprep.subr.mxu0 0.0
    %922 = vmatpush1.msra.mxu0 %v910
    %923 = vmatprep.subr.mxu0 0.0
    %924 = vmatpush1.msra.mxu0 0.0
    %925 = vmatprep.subr.mxu0 0.0
    %926 = vmatpush1.msra.mxu0 0.0
    %927 = vmatprep.subr.mxu0 0.0
    %928 = vmatpush1.msra.mxu0 0.0
    %929 = vmatprep.subr.mxu0 0.0
    %930 = vmatpush1.msra.mxu0 0.0
    %931 = vmatprep.subr.mxu0 0.0
    %932 = vmatpush1.msra.mxu0 0.0
    %933 = vmatprep.subr.mxu0 0.0
    %934 = vmatpush1.msra.mxu0 0.0
    %935 = vmatprep.subr.mxu0 0.0
    %936 = vmatpush1.msra.mxu0 0.0
    %937 = vmatprep.subr.mxu0 0.0
    %938 = vmatpush1.msra.mxu0 0.0
    %939 = vmatprep.subr.mxu0 0.0
    %940 = vmatpush1.msra.mxu0 0.0
    %941 = vmatprep.subr.mxu0 0.0
    %942 = vmatpush1.msra.mxu0 0.0
    %943 = vmatprep.subr.mxu0 0.0
    %944 = vmatpush1.msra.mxu0 0.0
    %945 = vmatprep.subr.mxu0 0.0
    %946 = vmatpush1.msra.mxu0 0.0
    %947 = vmatprep.subr.mxu0 0.0
    %948 = vmatpush1.msra.mxu0 0.0
    %949 = vmatprep.subr.mxu0 0.0
    %950 = vmatpush1.msra.mxu0 0.0
    %951 = vmatprep.subr.mxu0 0.0
    %952 = vmatpush1.msra.mxu0 0.0
    %953 = vmatprep.subr.mxu0 0.0
    %954 = vmatpush1.msra.mxu0 0.0
    %955 = vmatprep.subr.mxu0 0.0
    %956 = vmatpush1.msra.mxu0 0.0
    %957 = vmatprep.subr.mxu0 0.0
    %958 = vmatpush1.msra.mxu0 0.0
    %959 = vmatprep.subr.mxu0 0.0
    %960 = vmatpush1.msra.mxu0 0.0
    %961 = vmatprep.subr.mxu0 0.0
    %962 = vmatpush1.msra.mxu0 0.0
    %963 = vmatprep.subr.mxu0 0.0
    %964 = vmatpush1.msra.mxu0 0.0
    %965 = vmatprep.subr.mxu0 0.0
    %966 = vmatpush1.msra.mxu0 0.0
    %967 = vmatprep.subr.mxu0 0.0
    %968 = vmatpush1.msra.mxu0 0.0
    %969 = vmatprep.subr.mxu0 0.0
    %970 = vmatpush1.msra.mxu0 0.0
    %971 = vmatprep.subr.mxu0 0.0
    %972 = vmatpush1.msra.mxu0 0.0
    %973 = vmatprep.subr.mxu0 0.0
    %974 = vmatpush1.msra.mxu0 0.0
    %975 = vmatprep.subr.mxu0 0.0
    %976 = vmatpush1.msra.mxu0 0.0
    %977 = vmatprep.subr.mxu0 0.0
    %978 = vmatpush1.msra.mxu0 0.0
    %979 = vmatprep.subr.mxu0 0.0
    %980 = vmatpush1.msra.mxu0 0.0
    %981 = vmatprep.subr.mxu0 0.0
    %982 = vmatpush1.msra.mxu0 0.0
    %983 = vmatprep.mubr.f32.mxu0 0.0
    %984 = vmatmul.mubr.f32.gmra.mrb[0].mxu0 %v914
    %v985 = vpop.f32.mrb[0].mxu0
    %v986 = vadd.f32 0.0, %v985
    %v987 = vpop.f32.mrb[0].mxu0
    %988 = vmatprep.mubr.f32.mxu0 0.0
    %989 = vmatmul.mubr.f32.gmra.mrb[0].mxu0 %v917
    %v990 = vpop.f32.mrb[0].mxu0
    %v991 = vadd.f32 0.0, %v990
    %v992 = vpop.f32.mrb[0].mxu0
    %993 = vdwg.mxu0
    %996 = vrot.lane.b32.xlu0 %v986, 12
    %v997 = vpop.permute.xlu0 %996
    %998 = vrot.lane.b32.xlu0 %v991, 12
    %v999 = vpop.permute.xlu0 %998
    %vm1002 = vcmask 130144
    %1003 = vst.msk [vmem:[#allocation2] sm:$0xff] %vm1002, %v997
    %1004 = vst.msk [vmem:[#allocation2 + $0x8] sm:$0xff] %vm1002, %v999
    %1005 = vrot.lane.b32.xlu0 %v152, 112
    %v1006 = vpop.permute.xlu0 %1005
    %1007 = vrot.lane.b32.xlu0 %v157, 112
    %v1008 = vpop.permute.xlu0 %1007
    %1009 = vrot.lane.b32.xlu0 %v152, 80
    %v1010 = vpop.permute.xlu0 %1009
    %1011 = vrot.lane.b32.xlu0 %v157, 80
    %v1012 = vpop.permute.xlu0 %1011
    %v1013 = vsel %vm176, %v1006, 0
    %v1015 = vsel %vm176, %v1008, 0
    %v1017 = vsel %vm176, %v1010, 0
    %v1019 = vsel %vm176, %v1012, 0
    %1021 = vmatprep.subr.mxu0 0.0
    %1022 = vmatpush1.xpose.msra.mxu0 %v1017
    %1023 = vmatprep.subr.mxu0 0.0
    %1024 = vmatpush1.xpose.msra.mxu0 %v1019
    %1025 = vmatprep.subr.mxu0 0.0
    %1026 = vmatpush1.xpose.msra.mxu0 0.0
    %1027 = vmatprep.subr.mxu0 0.0
    %1028 = vmatpush1.xpose.msra.mxu0 0.0
    %1029 = vmatprep.subr.mxu0 0.0
    %1030 = vmatpush1.xpose.msra.mxu0 0.0
    %1031 = vmatprep.subr.mxu0 0.0
    %1032 = vmatpush1.xpose.msra.mxu0 0.0
    %1033 = vmatprep.subr.mxu0 0.0
    %1034 = vmatpush1.xpose.msra.mxu0 0.0
    %1035 = vmatprep.subr.mxu0 0.0
    %1036 = vmatpush1.xpose.msra.mxu0 0.0
    %1037 = vmatprep.subr.mxu0 0.0
    %1038 = vmatpush1.xpose.msra.mxu0 0.0
    %1039 = vmatprep.subr.mxu0 0.0
    %1040 = vmatpush1.xpose.msra.mxu0 0.0
    %1041 = vmatprep.subr.mxu0 0.0
    %1042 = vmatpush1.xpose.msra.mxu0 0.0
    %1043 = vmatprep.subr.mxu0 0.0
    %1044 = vmatpush1.xpose.msra.mxu0 0.0
    %1045 = vmatprep.subr.mxu0 0.0
    %1046 = vmatpush1.xpose.msra.mxu0 0.0
    %1047 = vmatprep.subr.mxu0 0.0
    %1048 = vmatpush1.xpose.msra.mxu0 0.0
    %1049 = vmatprep.subr.mxu0 0.0
    %1050 = vmatpush1.xpose.msra.mxu0 0.0
    %1051 = vmatprep.subr.mxu0 0.0
    %1052 = vmatpush1.xpose.msra.mxu0 0.0
    %1053 = vmatprep.subr.mxu0 0.0
    %1054 = vmatpush1.xpose.msra.mxu0 0.0
    %1055 = vmatprep.subr.mxu0 0.0
    %1056 = vmatpush1.xpose.msra.mxu0 0.0
    %1057 = vmatprep.subr.mxu0 0.0
    %1058 = vmatpush1.xpose.msra.mxu0 0.0
    %1059 = vmatprep.subr.mxu0 0.0
    %1060 = vmatpush1.xpose.msra.mxu0 0.0
    %1061 = vmatprep.subr.mxu0 0.0
    %1062 = vmatpush1.xpose.msra.mxu0 0.0
    %1063 = vmatprep.subr.mxu0 0.0
    %1064 = vmatpush1.xpose.msra.mxu0 0.0
    %1065 = vmatprep.subr.mxu0 0.0
    %1066 = vmatpush1.xpose.msra.mxu0 0.0
    %1067 = vmatprep.subr.mxu0 0.0
    %1068 = vmatpush1.xpose.msra.mxu0 0.0
    %1069 = vmatprep.subr.mxu0 0.0
    %1070 = vmatpush1.xpose.msra.mxu0 0.0
    %1071 = vmatprep.subr.mxu0 0.0
    %1072 = vmatpush1.xpose.msra.mxu0 0.0
    %1073 = vmatprep.subr.mxu0 0.0
    %1074 = vmatpush1.xpose.msra.mxu0 0.0
    %1075 = vmatprep.subr.mxu0 0.0
    %1076 = vmatpush1.xpose.msra.mxu0 0.0
    %1077 = vmatprep.subr.mxu0 0.0
    %1078 = vmatpush1.xpose.msra.mxu0 0.0
    %1079 = vmatprep.subr.mxu0 0.0
    %1080 = vmatpush1.xpose.msra.mxu0 0.0
    %1081 = vmatprep.subr.mxu0 0.0
    %1082 = vmatpush1.xpose.msra.mxu0 0.0
    %1083 = vmatprep.subr.mxu0 0.0
    %1084 = vmatpush1.xpose.msra.mxu0 0.0
    %1085 = vmatprep.mubr.f32.mxu0 0.0
    %1086 = vmatmul.mubr.f32.gmra.mrb[0].mxu0 %v1013
    %v1087 = vpop.f32.mrb[0].mxu0
    %v1088 = vadd.f32 0.0, %v1087
    %v1089 = vpop.f32.mrb[0].mxu0
    %1090 = vmatprep.mubr.f32.mxu0 0.0
    %1091 = vmatmul.mubr.f32.gmra.mrb[0].mxu0 %v1015
    %v1092 = vpop.f32.mrb[0].mxu0
    %v1093 = vadd.f32 0.0, %v1092
    %v1094 = vpop.f32.mrb[0].mxu0
    %1095 = vdwg.mxu0
    %v1096 = vsel %vm260, %v1088, -inf
    %1097 = vmax.xlane.f32.xlu0 %v1096
    %v1098 = vpop.xlane.xlu0 %1097
    %v1099 = vsel %vm260, %v1093, -inf
    %1100 = vmax.xlane.f32.xlu0 %v1099
    %v1101 = vpop.xlane.xlu0 %1100
    %v1102 = vsub.f32 %v1088, %v1098
    %v1103 = vsub.f32 %v1093, %v1101
    %v1104 = vmul.f32 %v1102, 1.442695
    %v1105 = vpow.pop %v1104
    %v1106 = vmul.f32 %v1103, 1.442695
    %v1107 = vpow.pop %v1106
    %v1108 = vsel %vm260, %v1105, 0.0
    %1109 = vadd.xlane.f32.xlu0 %v1108
    %v1110 = vpop.xlane.xlu0 %1109
    %v1111 = vsel %vm260, %v1107, 0.0
    %1112 = vadd.xlane.f32.xlu0 %v1111
    %v1113 = vpop.xlane.xlu0 %1112
    %v1114 = vrcp.pop %v1110
    %v1115 = vrcp.pop %v1113
    %v1116 = vmul.f32 %v1105, %v1114
    %v1117 = vmul.f32 %v1107, %v1115
    %1118 = vrot.lane.b32.xlu0 %v152, 48
    %v1119 = vpop.permute.xlu0 %1118
    %1120 = vrot.lane.b32.xlu0 %v157, 48
    %v1121 = vpop.permute.xlu0 %1120
    %v1125 = vsel %vm260, %v1116, 0
    %v1128 = vsel %vm260, %v1117, 0
    %1130 = vmatprep.subr.mxu0 0.0
    %1131 = vmatpush1.msra.mxu0 %v1119
    %1132 = vmatprep.subr.mxu0 0.0
    %1133 = vmatpush1.msra.mxu0 %v1121
    %1134 = vmatprep.subr.mxu0 0.0
    %1135 = vmatpush1.msra.mxu0 0.0
    %1136 = vmatprep.subr.mxu0 0.0
    %1137 = vmatpush1.msra.mxu0 0.0
    %1138 = vmatprep.subr.mxu0 0.0
    %1139 = vmatpush1.msra.mxu0 0.0
    %1140 = vmatprep.subr.mxu0 0.0
    %1141 = vmatpush1.msra.mxu0 0.0
    %1142 = vmatprep.subr.mxu0 0.0
    %1143 = vmatpush1.msra.mxu0 0.0
    %1144 = vmatprep.subr.mxu0 0.0
    %1145 = vmatpush1.msra.mxu0 0.0
    %1146 = vmatprep.subr.mxu0 0.0
    %1147 = vmatpush1.msra.mxu0 0.0
    %1148 = vmatprep.subr.mxu0 0.0
    %1149 = vmatpush1.msra.mxu0 0.0
    %1150 = vmatprep.subr.mxu0 0.0
    %1151 = vmatpush1.msra.mxu0 0.0
    %1152 = vmatprep.subr.mxu0 0.0
    %1153 = vmatpush1.msra.mxu0 0.0
    %1154 = vmatprep.subr.mxu0 0.0
    %1155 = vmatpush1.msra.mxu0 0.0
    %1156 = vmatprep.subr.mxu0 0.0
    %1157 = vmatpush1.msra.mxu0 0.0
    %1158 = vmatprep.subr.mxu0 0.0
    %1159 = vmatpush1.msra.mxu0 0.0
    %1160 = vmatprep.subr.mxu0 0.0
    %1161 = vmatpush1.msra.mxu0 0.0
    %1162 = vmatprep.subr.mxu0 0.0
    %1163 = vmatpush1.msra.mxu0 0.0
    %1164 = vmatprep.subr.mxu0 0.0
    %1165 = vmatpush1.msra.mxu0 0.0
    %1166 = vmatprep.subr.mxu0 0.0
    %1167 = vmatpush1.msra.mxu0 0.0
    %1168 = vmatprep.subr.mxu0 0.0
    %1169 = vmatpush1.msra.mxu0 0.0
    %1170 = vmatprep.subr.mxu0 0.0
    %1171 = vmatpush1.msra.mxu0 0.0
    %1172 = vmatprep.subr.mxu0 0.0
    %1173 = vmatpush1.msra.mxu0 0.0
    %1174 = vmatprep.subr.mxu0 0.0
    %1175 = vmatpush1.msra.mxu0 0.0
    %1176 = vmatprep.subr.mxu0 0.0
    %1177 = vmatpush1.msra.mxu0 0.0
    %1178 = vmatprep.subr.mxu0 0.0
    %1179 = vmatpush1.msra.mxu0 0.0
    %1180 = vmatprep.subr.mxu0 0.0
    %1181 = vmatpush1.msra.mxu0 0.0
    %1182 = vmatprep.subr.mxu0 0.0
    %1183 = vmatpush1.msra.mxu0 0.0
    %1184 = vmatprep.subr.mxu0 0.0
    %1185 = vmatpush1.msra.mxu0 0.0
    %1186 = vmatprep.subr.mxu0 0.0
    %1187 = vmatpush1.msra.mxu0 0.0
    %1188 = vmatprep.subr.mxu0 0.0
    %1189 = vmatpush1.msra.mxu0 0.0
    %1190 = vmatprep.subr.mxu0 0.0
    %1191 = vmatpush1.msra.mxu0 0.0
    %1192 = vmatprep.subr.mxu0 0.0
    %1193 = vmatpush1.msra.mxu0 0.0
    %1194 = vmatprep.mubr.f32.mxu0 0.0
    %1195 = vmatmul.mubr.f32.gmra.mrb[0].mxu0 %v1125
    %v1196 = vpop.f32.mrb[0].mxu0
    %v1197 = vadd.f32 0.0, %v1196
    %v1198 = vpop.f32.mrb[0].mxu0
    %1199 = vmatprep.mubr.f32.mxu0 0.0
    %1200 = vmatmul.mubr.f32.gmra.mrb[0].mxu0 %v1128
    %v1201 = vpop.f32.mrb[0].mxu0
    %v1202 = vadd.f32 0.0, %v1201
    %v1203 = vpop.f32.mrb[0].mxu0
    %1204 = vdwg.mxu0
    %1207 = vrot.lane.b32.xlu0 %v1197, 16
    %v1208 = vpop.permute.xlu0 %1207
    %1209 = vrot.lane.b32.xlu0 %v1202, 16
    %v1210 = vpop.permute.xlu0 %1209
    %vm1213 = vcmask 162944
    %1214 = vst.msk [vmem:[#allocation2] sm:$0xff] %vm1213, %v1208
    %1215 = vst.msk [vmem:[#allocation2 + $0x8] sm:$0xff] %vm1213, %v1210
    %1216 = vrot.lane.b32.xlu0 %v152, 108
    %v1217 = vpop.permute.xlu0 %1216
    %1218 = vrot.lane.b32.xlu0 %v157, 108
    %v1219 = vpop.permute.xlu0 %1218
    %1220 = vrot.lane.b32.xlu0 %v152, 76
    %v1221 = vpop.permute.xlu0 %1220
    %1222 = vrot.lane.b32.xlu0 %v157, 76
    %v1223 = vpop.permute.xlu0 %1222
    %v1224 = vsel %vm176, %v1217, 0
    %v1226 = vsel %vm176, %v1219, 0
    %v1228 = vsel %vm176, %v1221, 0
    %v1230 = vsel %vm176, %v1223, 0
    %1232 = vmatprep.subr.mxu0 0.0
    %1233 = vmatpush1.xpose.msra.mxu0 %v1228
    %1234 = vmatprep.subr.mxu0 0.0
    %1235 = vmatpush1.xpose.msra.mxu0 %v1230
    %1236 = vmatprep.subr.mxu0 0.0
    %1237 = vmatpush1.xpose.msra.mxu0 0.0
    %1238 = vmatprep.subr.mxu0 0.0
    %1239 = vmatpush1.xpose.msra.mxu0 0.0
    %1240 = vmatprep.subr.mxu0 0.0
    %1241 = vmatpush1.xpose.msra.mxu0 0.0
    %1242 = vmatprep.subr.mxu0 0.0
    %1243 = vmatpush1.xpose.msra.mxu0 0.0
    %1244 = vmatprep.subr.mxu0 0.0
    %1245 = vmatpush1.xpose.msra.mxu0 0.0
    %1246 = vmatprep.subr.mxu0 0.0
    %1247 = vmatpush1.xpose.msra.mxu0 0.0
    %1248 = vmatprep.subr.mxu0 0.0
    %1249 = vmatpush1.xpose.msra.mxu0 0.0
    %1250 = vmatprep.subr.mxu0 0.0
    %1251 = vmatpush1.xpose.msra.mxu0 0.0
    %1252 = vmatprep.subr.mxu0 0.0
    %1253 = vmatpush1.xpose.msra.mxu0 0.0
    %1254 = vmatprep.subr.mxu0 0.0
    %1255 = vmatpush1.xpose.msra.mxu0 0.0
    %1256 = vmatprep.subr.mxu0 0.0
    %1257 = vmatpush1.xpose.msra.mxu0 0.0
    %1258 = vmatprep.subr.mxu0 0.0
    %1259 = vmatpush1.xpose.msra.mxu0 0.0
    %1260 = vmatprep.subr.mxu0 0.0
    %1261 = vmatpush1.xpose.msra.mxu0 0.0
    %1262 = vmatprep.subr.mxu0 0.0
    %1263 = vmatpush1.xpose.msra.mxu0 0.0
    %1264 = vmatprep.subr.mxu0 0.0
    %1265 = vmatpush1.xpose.msra.mxu0 0.0
    %1266 = vmatprep.subr.mxu0 0.0
    %1267 = vmatpush1.xpose.msra.mxu0 0.0
    %1268 = vmatprep.subr.mxu0 0.0
    %1269 = vmatpush1.xpose.msra.mxu0 0.0
    %1270 = vmatprep.subr.mxu0 0.0
    %1271 = vmatpush1.xpose.msra.mxu0 0.0
    %1272 = vmatprep.subr.mxu0 0.0
    %1273 = vmatpush1.xpose.msra.mxu0 0.0
    %1274 = vmatprep.subr.mxu0 0.0
    %1275 = vmatpush1.xpose.msra.mxu0 0.0
    %1276 = vmatprep.subr.mxu0 0.0
    %1277 = vmatpush1.xpose.msra.mxu0 0.0
    %1278 = vmatprep.subr.mxu0 0.0
    %1279 = vmatpush1.xpose.msra.mxu0 0.0
    %1280 = vmatprep.subr.mxu0 0.0
    %1281 = vmatpush1.xpose.msra.mxu0 0.0
    %1282 = vmatprep.subr.mxu0 0.0
    %1283 = vmatpush1.xpose.msra.mxu0 0.0
    %1284 = vmatprep.subr.mxu0 0.0
    %1285 = vmatpush1.xpose.msra.mxu0 0.0
    %1286 = vmatprep.subr.mxu0 0.0
    %1287 = vmatpush1.xpose.msra.mxu0 0.0
    %1288 = vmatprep.subr.mxu0 0.0
    %1289 = vmatpush1.xpose.msra.mxu0 0.0
    %1290 = vmatprep.subr.mxu0 0.0
    %1291 = vmatpush1.xpose.msra.mxu0 0.0
    %1292 = vmatprep.subr.mxu0 0.0
    %1293 = vmatpush1.xpose.msra.mxu0 0.0
    %1294 = vmatprep.subr.mxu0 0.0
    %1295 = vmatpush1.xpose.msra.mxu0 0.0
    %1296 = vmatprep.mubr.f32.mxu0 0.0
    %1297 = vmatmul.mubr.f32.gmra.mrb[0].mxu0 %v1224
    %v1298 = vpop.f32.mrb[0].mxu0
    %v1299 = vadd.f32 0.0, %v1298
    %v1300 = vpop.f32.mrb[0].mxu0
    %1301 = vmatprep.mubr.f32.mxu0 0.0
    %1302 = vmatmul.mubr.f32.gmra.mrb[0].mxu0 %v1226
    %v1303 = vpop.f32.mrb[0].mxu0
    %v1304 = vadd.f32 0.0, %v1303
    %v1305 = vpop.f32.mrb[0].mxu0
    %1306 = vdwg.mxu0
    %v1307 = vsel %vm260, %v1299, -inf
    %1308 = vmax.xlane.f32.xlu0 %v1307
    %v1309 = vpop.xlane.xlu0 %1308
    %v1310 = vsel %vm260, %v1304, -inf
    %1311 = vmax.xlane.f32.xlu0 %v1310
    %v1312 = vpop.xlane.xlu0 %1311
    %v1313 = vsub.f32 %v1299, %v1309
    %v1314 = vsub.f32 %v1304, %v1312
    %v1315 = vmul.f32 %v1313, 1.442695
    %v1316 = vpow.pop %v1315
    %v1317 = vmul.f32 %v1314, 1.442695
    %v1318 = vpow.pop %v1317
    %v1319 = vsel %vm260, %v1316, 0.0
    %1320 = vadd.xlane.f32.xlu0 %v1319
    %v1321 = vpop.xlane.xlu0 %1320
    %v1322 = vsel %vm260, %v1318, 0.0
    %1323 = vadd.xlane.f32.xlu0 %v1322
    %v1324 = vpop.xlane.xlu0 %1323
    %v1325 = vrcp.pop %v1321
    %v1326 = vrcp.pop %v1324
    %v1327 = vmul.f32 %v1316, %v1325
    %v1328 = vmul.f32 %v1318, %v1326
    %1329 = vrot.lane.b32.xlu0 %v152, 44
    %v1330 = vpop.permute.xlu0 %1329
    %1331 = vrot.lane.b32.xlu0 %v157, 44
    %v1332 = vpop.permute.xlu0 %1331
    %v1336 = vsel %vm260, %v1327, 0
    %v1339 = vsel %vm260, %v1328, 0
    %1341 = vmatprep.subr.mxu0 0.0
    %1342 = vmatpush1.msra.mxu0 %v1330
    %1343 = vmatprep.subr.mxu0 0.0
    %1344 = vmatpush1.msra.mxu0 %v1332
    %1345 = vmatprep.subr.mxu0 0.0
    %1346 = vmatpush1.msra.mxu0 0.0
    %1347 = vmatprep.subr.mxu0 0.0
    %1348 = vmatpush1.msra.mxu0 0.0
    %1349 = vmatprep.subr.mxu0 0.0
    %1350 = vmatpush1.msra.mxu0 0.0
    %1351 = vmatprep.subr.mxu0 0.0
    %1352 = vmatpush1.msra.mxu0 0.0
    %1353 = vmatprep.subr.mxu0 0.0
    %1354 = vmatpush1.msra.mxu0 0.0
    %1355 = vmatprep.subr.mxu0 0.0
    %1356 = vmatpush1.msra.mxu0 0.0
    %1357 = vmatprep.subr.mxu0 0.0
    %1358 = vmatpush1.msra.mxu0 0.0
    %1359 = vmatprep.subr.mxu0 0.0
    %1360 = vmatpush1.msra.mxu0 0.0
    %1361 = vmatprep.subr.mxu0 0.0
    %1362 = vmatpush1.msra.mxu0 0.0
    %1363 = vmatprep.subr.mxu0 0.0
    %1364 = vmatpush1.msra.mxu0 0.0
    %1365 = vmatprep.subr.mxu0 0.0
    %1366 = vmatpush1.msra.mxu0 0.0
    %1367 = vmatprep.subr.mxu0 0.0
    %1368 = vmatpush1.msra.mxu0 0.0
    %1369 = vmatprep.subr.mxu0 0.0
    %1370 = vmatpush1.msra.mxu0 0.0
    %1371 = vmatprep.subr.mxu0 0.0
    %1372 = vmatpush1.msra.mxu0 0.0
    %1373 = vmatprep.subr.mxu0 0.0
    %1374 = vmatpush1.msra.mxu0 0.0
    %1375 = vmatprep.subr.mxu0 0.0
    %1376 = vmatpush1.msra.mxu0 0.0
    %1377 = vmatprep.subr.mxu0 0.0
    %1378 = vmatpush1.msra.mxu0 0.0
    %1379 = vmatprep.subr.mxu0 0.0
    %1380 = vmatpush1.msra.mxu0 0.0
    %1381 = vmatprep.subr.mxu0 0.0
    %1382 = vmatpush1.msra.mxu0 0.0
    %1383 = vmatprep.subr.mxu0 0.0
    %1384 = vmatpush1.msra.mxu0 0.0
    %1385 = vmatprep.subr.mxu0 0.0
    %1386 = vmatpush1.msra.mxu0 0.0
    %1387 = vmatprep.subr.mxu0 0.0
    %1388 = vmatpush1.msra.mxu0 0.0
    %1389 = vmatprep.subr.mxu0 0.0
    %1390 = vmatpush1.msra.mxu0 0.0
    %1391 = vmatprep.subr.mxu0 0.0
    %1392 = vmatpush1.msra.mxu0 0.0
    %1393 = vmatprep.subr.mxu0 0.0
    %1394 = vmatpush1.msra.mxu0 0.0
    %1395 = vmatprep.subr.mxu0 0.0
    %1396 = vmatpush1.msra.mxu0 0.0
    %1397 = vmatprep.subr.mxu0 0.0
    %1398 = vmatpush1.msra.mxu0 0.0
    %1399 = vmatprep.subr.mxu0 0.0
    %1400 = vmatpush1.msra.mxu0 0.0
    %1401 = vmatprep.subr.mxu0 0.0
    %1402 = vmatpush1.msra.mxu0 0.0
    %1403 = vmatprep.subr.mxu0 0.0
    %1404 = vmatpush1.msra.mxu0 0.0
    %1405 = vmatprep.mubr.f32.mxu0 0.0
    %1406 = vmatmul.mubr.f32.gmra.mrb[0].mxu0 %v1336
    %v1407 = vpop.f32.mrb[0].mxu0
    %v1408 = vadd.f32 0.0, %v1407
    %v1409 = vpop.f32.mrb[0].mxu0
    %1410 = vmatprep.mubr.f32.mxu0 0.0
    %1411 = vmatmul.mubr.f32.gmra.mrb[0].mxu0 %v1339
    %v1412 = vpop.f32.mrb[0].mxu0
    %v1413 = vadd.f32 0.0, %v1412
    %v1414 = vpop.f32.mrb[0].mxu0
    %1415 = vdwg.mxu0
    %1418 = vrot.lane.b32.xlu0 %v1408, 20
    %v1419 = vpop.permute.xlu0 %1418
    %1420 = vrot.lane.b32.xlu0 %v1413, 20
    %v1421 = vpop.permute.xlu0 %1420
    %vm1424 = vcmask 195744
    %1425 = vst.msk [vmem:[#allocation2] sm:$0xff] %vm1424, %v1419
    %1426 = vst.msk [vmem:[#allocation2 + $0x8] sm:$0xff] %vm1424, %v1421
    %1427 = vrot.lane.b32.xlu0 %v152, 104
    %v1428 = vpop.permute.xlu0 %1427
    %1429 = vrot.lane.b32.xlu0 %v157, 104
    %v1430 = vpop.permute.xlu0 %1429
    %1431 = vrot.lane.b32.xlu0 %v152, 72
    %v1432 = vpop.permute.xlu0 %1431
    %1433 = vrot.lane.b32.xlu0 %v157, 72
    %v1434 = vpop.permute.xlu0 %1433
    %v1435 = vsel %vm176, %v1428, 0
    %v1437 = vsel %vm176, %v1430, 0
    %v1439 = vsel %vm176, %v1432, 0
    %v1441 = vsel %vm176, %v1434, 0
    %1443 = vmatprep.subr.mxu0 0.0
    %1444 = vmatpush1.xpose.msra.mxu0 %v1439
    %1445 = vmatprep.subr.mxu0 0.0
    %1446 = vmatpush1.xpose.msra.mxu0 %v1441
    %1447 = vmatprep.subr.mxu0 0.0
    %1448 = vmatpush1.xpose.msra.mxu0 0.0
    %1449 = vmatprep.subr.mxu0 0.0
    %1450 = vmatpush1.xpose.msra.mxu0 0.0
    %1451 = vmatprep.subr.mxu0 0.0
    %1452 = vmatpush1.xpose.msra.mxu0 0.0
    %1453 = vmatprep.subr.mxu0 0.0
    %1454 = vmatpush1.xpose.msra.mxu0 0.0
    %1455 = vmatprep.subr.mxu0 0.0
    %1456 = vmatpush1.xpose.msra.mxu0 0.0
    %1457 = vmatprep.subr.mxu0 0.0
    %1458 = vmatpush1.xpose.msra.mxu0 0.0
    %1459 = vmatprep.subr.mxu0 0.0
    %1460 = vmatpush1.xpose.msra.mxu0 0.0
    %1461 = vmatprep.subr.mxu0 0.0
    %1462 = vmatpush1.xpose.msra.mxu0 0.0
    %1463 = vmatprep.subr.mxu0 0.0
    %1464 = vmatpush1.xpose.msra.mxu0 0.0
    %1465 = vmatprep.subr.mxu0 0.0
    %1466 = vmatpush1.xpose.msra.mxu0 0.0
    %1467 = vmatprep.subr.mxu0 0.0
    %1468 = vmatpush1.xpose.msra.mxu0 0.0
    %1469 = vmatprep.subr.mxu0 0.0
    %1470 = vmatpush1.xpose.msra.mxu0 0.0
    %1471 = vmatprep.subr.mxu0 0.0
    %1472 = vmatpush1.xpose.msra.mxu0 0.0
    %1473 = vmatprep.subr.mxu0 0.0
    %1474 = vmatpush1.xpose.msra.mxu0 0.0
    %1475 = vmatprep.subr.mxu0 0.0
    %1476 = vmatpush1.xpose.msra.mxu0 0.0
    %1477 = vmatprep.subr.mxu0 0.0
    %1478 = vmatpush1.xpose.msra.mxu0 0.0
    %1479 = vmatprep.subr.mxu0 0.0
    %1480 = vmatpush1.xpose.msra.mxu0 0.0
    %1481 = vmatprep.subr.mxu0 0.0
    %1482 = vmatpush1.xpose.msra.mxu0 0.0
    %1483 = vmatprep.subr.mxu0 0.0
    %1484 = vmatpush1.xpose.msra.mxu0 0.0
    %1485 = vmatprep.subr.mxu0 0.0
    %1486 = vmatpush1.xpose.msra.mxu0 0.0
    %1487 = vmatprep.subr.mxu0 0.0
    %1488 = vmatpush1.xpose.msra.mxu0 0.0
    %1489 = vmatprep.subr.mxu0 0.0
    %1490 = vmatpush1.xpose.msra.mxu0 0.0
    %1491 = vmatprep.subr.mxu0 0.0
    %1492 = vmatpush1.xpose.msra.mxu0 0.0
    %1493 = vmatprep.subr.mxu0 0.0
    %1494 = vmatpush1.xpose.msra.mxu0 0.0
    %1495 = vmatprep.subr.mxu0 0.0
    %1496 = vmatpush1.xpose.msra.mxu0 0.0
    %1497 = vmatprep.subr.mxu0 0.0
    %1498 = vmatpush1.xpose.msra.mxu0 0.0
    %1499 = vmatprep.subr.mxu0 0.0
    %1500 = vmatpush1.xpose.msra.mxu0 0.0
    %1501 = vmatprep.subr.mxu0 0.0
    %1502 = vmatpush1.xpose.msra.mxu0 0.0
    %1503 = vmatprep.subr.mxu0 0.0
    %1504 = vmatpush1.xpose.msra.mxu0 0.0
    %1505 = vmatprep.subr.mxu0 0.0
    %1506 = vmatpush1.xpose.msra.mxu0 0.0
    %1507 = vmatprep.mubr.f32.mxu0 0.0
    %1508 = vmatmul.mubr.f32.gmra.mrb[0].mxu0 %v1435
    %v1509 = vpop.f32.mrb[0].mxu0
    %v1510 = vadd.f32 0.0, %v1509
    %v1511 = vpop.f32.mrb[0].mxu0
    %1512 = vmatprep.mubr.f32.mxu0 0.0
    %1513 = vmatmul.mubr.f32.gmra.mrb[0].mxu0 %v1437
    %v1514 = vpop.f32.mrb[0].mxu0
    %v1515 = vadd.f32 0.0, %v1514
    %v1516 = vpop.f32.mrb[0].mxu0
    %1517 = vdwg.mxu0
    %v1518 = vsel %vm260, %v1510, -inf
    %1519 = vmax.xlane.f32.xlu0 %v1518
    %v1520 = vpop.xlane.xlu0 %1519
    %v1521 = vsel %vm260, %v1515, -inf
    %1522 = vmax.xlane.f32.xlu0 %v1521
    %v1523 = vpop.xlane.xlu0 %1522
    %v1524 = vsub.f32 %v1510, %v1520
    %v1525 = vsub.f32 %v1515, %v1523
    %v1526 = vmul.f32 %v1524, 1.442695
    %v1527 = vpow.pop %v1526
    %v1528 = vmul.f32 %v1525, 1.442695
    %v1529 = vpow.pop %v1528
    %v1530 = vsel %vm260, %v1527, 0.0
    %1531 = vadd.xlane.f32.xlu0 %v1530
    %v1532 = vpop.xlane.xlu0 %1531
    %v1533 = vsel %vm260, %v1529, 0.0
    %1534 = vadd.xlane.f32.xlu0 %v1533
    %v1535 = vpop.xlane.xlu0 %1534
    %v1536 = vrcp.pop %v1532
    %v1537 = vrcp.pop %v1535
    %v1538 = vmul.f32 %v1527, %v1536
    %v1539 = vmul.f32 %v1529, %v1537
    %1540 = vrot.lane.b32.xlu0 %v152, 40
    %v1541 = vpop.permute.xlu0 %1540
    %1542 = vrot.lane.b32.xlu0 %v157, 40
    %v1543 = vpop.permute.xlu0 %1542
    %v1547 = vsel %vm260, %v1538, 0
    %v1550 = vsel %vm260, %v1539, 0
    %1552 = vmatprep.subr.mxu0 0.0
    %1553 = vmatpush1.msra.mxu0 %v1541
    %1554 = vmatprep.subr.mxu0 0.0
    %1555 = vmatpush1.msra.mxu0 %v1543
    %1556 = vmatprep.subr.mxu0 0.0
    %1557 = vmatpush1.msra.mxu0 0.0
    %1558 = vmatprep.subr.mxu0 0.0
    %1559 = vmatpush1.msra.mxu0 0.0
    %1560 = vmatprep.subr.mxu0 0.0
    %1561 = vmatpush1.msra.mxu0 0.0
    %1562 = vmatprep.subr.mxu0 0.0
    %1563 = vmatpush1.msra.mxu0 0.0
    %1564 = vmatprep.subr.mxu0 0.0
    %1565 = vmatpush1.msra.mxu0 0.0
    %1566 = vmatprep.subr.mxu0 0.0
    %1567 = vmatpush1.msra.mxu0 0.0
    %1568 = vmatprep.subr.mxu0 0.0
    %1569 = vmatpush1.msra.mxu0 0.0
    %1570 = vmatprep.subr.mxu0 0.0
    %1571 = vmatpush1.msra.mxu0 0.0
    %1572 = vmatprep.subr.mxu0 0.0
    %1573 = vmatpush1.msra.mxu0 0.0
    %1574 = vmatprep.subr.mxu0 0.0
    %1575 = vmatpush1.msra.mxu0 0.0
    %1576 = vmatprep.subr.mxu0 0.0
    %1577 = vmatpush1.msra.mxu0 0.0
    %1578 = vmatprep.subr.mxu0 0.0
    %1579 = vmatpush1.msra.mxu0 0.0
    %1580 = vmatprep.subr.mxu0 0.0
    %1581 = vmatpush1.msra.mxu0 0.0
    %1582 = vmatprep.subr.mxu0 0.0
    %1583 = vmatpush1.msra.mxu0 0.0
    %1584 = vmatprep.subr.mxu0 0.0
    %1585 = vmatpush1.msra.mxu0 0.0
    %1586 = vmatprep.subr.mxu0 0.0
    %1587 = vmatpush1.msra.mxu0 0.0
    %1588 = vmatprep.subr.mxu0 0.0
    %1589 = vmatpush1.msra.mxu0 0.0
    %1590 = vmatprep.subr.mxu0 0.0
    %1591 = vmatpush1.msra.mxu0 0.0
    %1592 = vmatprep.subr.mxu0 0.0
    %1593 = vmatpush1.msra.mxu0 0.0
    %1594 = vmatprep.subr.mxu0 0.0
    %1595 = vmatpush1.msra.mxu0 0.0
    %1596 = vmatprep.subr.mxu0 0.0
    %1597 = vmatpush1.msra.mxu0 0.0
    %1598 = vmatprep.subr.mxu0 0.0
    %1599 = vmatpush1.msra.mxu0 0.0
    %1600 = vmatprep.subr.mxu0 0.0
    %1601 = vmatpush1.msra.mxu0 0.0
    %1602 = vmatprep.subr.mxu0 0.0
    %1603 = vmatpush1.msra.mxu0 0.0
    %1604 = vmatprep.subr.mxu0 0.0
    %1605 = vmatpush1.msra.mxu0 0.0
    %1606 = vmatprep.subr.mxu0 0.0
    %1607 = vmatpush1.msra.mxu0 0.0
    %1608 = vmatprep.subr.mxu0 0.0
    %1609 = vmatpush1.msra.mxu0 0.0
    %1610 = vmatprep.subr.mxu0 0.0
    %1611 = vmatpush1.msra.mxu0 0.0
    %1612 = vmatprep.subr.mxu0 0.0
    %1613 = vmatpush1.msra.mxu0 0.0
    %1614 = vmatprep.subr.mxu0 0.0
    %1615 = vmatpush1.msra.mxu0 0.0
    %1616 = vmatprep.mubr.f32.mxu0 0.0
    %1617 = vmatmul.mubr.f32.gmra.mrb[0].mxu0 %v1547
    %v1618 = vpop.f32.mrb[0].mxu0
    %v1619 = vadd.f32 0.0, %v1618
    %v1620 = vpop.f32.mrb[0].mxu0
    %1621 = vmatprep.mubr.f32.mxu0 0.0
    %1622 = vmatmul.mubr.f32.gmra.mrb[0].mxu0 %v1550
    %v1623 = vpop.f32.mrb[0].mxu0
    %v1624 = vadd.f32 0.0, %v1623
    %v1625 = vpop.f32.mrb[0].mxu0
    %1626 = vdwg.mxu0
    %1629 = vrot.lane.b32.xlu0 %v1619, 24
    %v1630 = vpop.permute.xlu0 %1629
    %1631 = vrot.lane.b32.xlu0 %v1624, 24
    %v1632 = vpop.permute.xlu0 %1631
    %vm1635 = vcmask 228544
    %1636 = vst.msk [vmem:[#allocation2] sm:$0xff] %vm1635, %v1630
    %1637 = vst.msk [vmem:[#allocation2 + $0x8] sm:$0xff] %vm1635, %v1632
    %1638 = vrot.lane.b32.xlu0 %v152, 100
    %v1639 = vpop.permute.xlu0 %1638
    %1640 = vrot.lane.b32.xlu0 %v157, 100
    %v1641 = vpop.permute.xlu0 %1640
    %1642 = vrot.lane.b32.xlu0 %v152, 68
    %v1643 = vpop.permute.xlu0 %1642
    %1644 = vrot.lane.b32.xlu0 %v157, 68
    %v1645 = vpop.permute.xlu0 %1644
    %v1646 = vsel %vm176, %v1639, 0
    %v1648 = vsel %vm176, %v1641, 0
    %v1650 = vsel %vm176, %v1643, 0
    %v1652 = vsel %vm176, %v1645, 0
    %1654 = vmatprep.subr.mxu0 0.0
    %1655 = vmatpush1.xpose.msra.mxu0 %v1650
    %1656 = vmatprep.subr.mxu0 0.0
    %1657 = vmatpush1.xpose.msra.mxu0 %v1652
    %1658 = vmatprep.subr.mxu0 0.0
    %1659 = vmatpush1.xpose.msra.mxu0 0.0
    %1660 = vmatprep.subr.mxu0 0.0
    %1661 = vmatpush1.xpose.msra.mxu0 0.0
    %1662 = vmatprep.subr.mxu0 0.0
    %1663 = vmatpush1.xpose.msra.mxu0 0.0
    %1664 = vmatprep.subr.mxu0 0.0
    %1665 = vmatpush1.xpose.msra.mxu0 0.0
    %1666 = vmatprep.subr.mxu0 0.0
    %1667 = vmatpush1.xpose.msra.mxu0 0.0
    %1668 = vmatprep.subr.mxu0 0.0
    %1669 = vmatpush1.xpose.msra.mxu0 0.0
    %1670 = vmatprep.subr.mxu0 0.0
    %1671 = vmatpush1.xpose.msra.mxu0 0.0
    %1672 = vmatprep.subr.mxu0 0.0
    %1673 = vmatpush1.xpose.msra.mxu0 0.0
    %1674 = vmatprep.subr.mxu0 0.0
    %1675 = vmatpush1.xpose.msra.mxu0 0.0
    %1676 = vmatprep.subr.mxu0 0.0
    %1677 = vmatpush1.xpose.msra.mxu0 0.0
    %1678 = vmatprep.subr.mxu0 0.0
    %1679 = vmatpush1.xpose.msra.mxu0 0.0
    %1680 = vmatprep.subr.mxu0 0.0
    %1681 = vmatpush1.xpose.msra.mxu0 0.0
    %1682 = vmatprep.subr.mxu0 0.0
    %1683 = vmatpush1.xpose.msra.mxu0 0.0
    %1684 = vmatprep.subr.mxu0 0.0
    %1685 = vmatpush1.xpose.msra.mxu0 0.0
    %1686 = vmatprep.subr.mxu0 0.0
    %1687 = vmatpush1.xpose.msra.mxu0 0.0
    %1688 = vmatprep.subr.mxu0 0.0
    %1689 = vmatpush1.xpose.msra.mxu0 0.0
    %1690 = vmatprep.subr.mxu0 0.0
    %1691 = vmatpush1.xpose.msra.mxu0 0.0
    %1692 = vmatprep.subr.mxu0 0.0
    %1693 = vmatpush1.xpose.msra.mxu0 0.0
    %1694 = vmatprep.subr.mxu0 0.0
    %1695 = vmatpush1.xpose.msra.mxu0 0.0
    %1696 = vmatprep.subr.mxu0 0.0
    %1697 = vmatpush1.xpose.msra.mxu0 0.0
    %1698 = vmatprep.subr.mxu0 0.0
    %1699 = vmatpush1.xpose.msra.mxu0 0.0
    %1700 = vmatprep.subr.mxu0 0.0
    %1701 = vmatpush1.xpose.msra.mxu0 0.0
    %1702 = vmatprep.subr.mxu0 0.0
    %1703 = vmatpush1.xpose.msra.mxu0 0.0
    %1704 = vmatprep.subr.mxu0 0.0
    %1705 = vmatpush1.xpose.msra.mxu0 0.0
    %1706 = vmatprep.subr.mxu0 0.0
    %1707 = vmatpush1.xpose.msra.mxu0 0.0
    %1708 = vmatprep.subr.mxu0 0.0
    %1709 = vmatpush1.xpose.msra.mxu0 0.0
    %1710 = vmatprep.subr.mxu0 0.0
    %1711 = vmatpush1.xpose.msra.mxu0 0.0
    %1712 = vmatprep.subr.mxu0 0.0
    %1713 = vmatpush1.xpose.msra.mxu0 0.0
    %1714 = vmatprep.subr.mxu0 0.0
    %1715 = vmatpush1.xpose.msra.mxu0 0.0
    %1716 = vmatprep.subr.mxu0 0.0
    %1717 = vmatpush1.xpose.msra.mxu0 0.0
    %1718 = vmatprep.mubr.f32.mxu0 0.0
    %1719 = vmatmul.mubr.f32.gmra.mrb[0].mxu0 %v1646
    %v1720 = vpop.f32.mrb[0].mxu0
    %v1721 = vadd.f32 0.0, %v1720
    %v1722 = vpop.f32.mrb[0].mxu0
    %1723 = vmatprep.mubr.f32.mxu0 0.0
    %1724 = vmatmul.mubr.f32.gmra.mrb[0].mxu0 %v1648
    %v1725 = vpop.f32.mrb[0].mxu0
    %v1726 = vadd.f32 0.0, %v1725
    %v1727 = vpop.f32.mrb[0].mxu0
    %1728 = vdwg.mxu0
    %v1729 = vsel %vm260, %v1721, -inf
    %1730 = vmax.xlane.f32.xlu0 %v1729
    %v1731 = vpop.xlane.xlu0 %1730
    %v1732 = vsel %vm260, %v1726, -inf
    %1733 = vmax.xlane.f32.xlu0 %v1732
    %v1734 = vpop.xlane.xlu0 %1733
    %v1735 = vsub.f32 %v1721, %v1731
    %v1736 = vsub.f32 %v1726, %v1734
    %v1737 = vmul.f32 %v1735, 1.442695
    %v1738 = vpow.pop %v1737
    %v1739 = vmul.f32 %v1736, 1.442695
    %v1740 = vpow.pop %v1739
    %v1741 = vsel %vm260, %v1738, 0.0
    %1742 = vadd.xlane.f32.xlu0 %v1741
    %v1743 = vpop.xlane.xlu0 %1742
    %v1744 = vsel %vm260, %v1740, 0.0
    %1745 = vadd.xlane.f32.xlu0 %v1744
    %v1746 = vpop.xlane.xlu0 %1745
    %v1747 = vrcp.pop %v1743
    %v1748 = vrcp.pop %v1746
    %v1749 = vmul.f32 %v1738, %v1747
    %v1750 = vmul.f32 %v1740, %v1748
    %1751 = vrot.lane.b32.xlu0 %v152, 36
    %v1752 = vpop.permute.xlu0 %1751
    %1753 = vrot.lane.b32.xlu0 %v157, 36
    %v1754 = vpop.permute.xlu0 %1753
    %v1758 = vsel %vm260, %v1749, 0
    %v1761 = vsel %vm260, %v1750, 0
    %1763 = vmatprep.subr.mxu0 0.0
    %1764 = vmatpush1.msra.mxu0 %v1752
    %1765 = vmatprep.subr.mxu0 0.0
    %1766 = vmatpush1.msra.mxu0 %v1754
    %1767 = vmatprep.subr.mxu0 0.0
    %1768 = vmatpush1.msra.mxu0 0.0
    %1769 = vmatprep.subr.mxu0 0.0
    %1770 = vmatpush1.msra.mxu0 0.0
    %1771 = vmatprep.subr.mxu0 0.0
    %1772 = vmatpush1.msra.mxu0 0.0
    %1773 = vmatprep.subr.mxu0 0.0
    %1774 = vmatpush1.msra.mxu0 0.0
    %1775 = vmatprep.subr.mxu0 0.0
    %1776 = vmatpush1.msra.mxu0 0.0
    %1777 = vmatprep.subr.mxu0 0.0
    %1778 = vmatpush1.msra.mxu0 0.0
    %1779 = vmatprep.subr.mxu0 0.0
    %1780 = vmatpush1.msra.mxu0 0.0
    %1781 = vmatprep.subr.mxu0 0.0
    %1782 = vmatpush1.msra.mxu0 0.0
    %1783 = vmatprep.subr.mxu0 0.0
    %1784 = vmatpush1.msra.mxu0 0.0
    %1785 = vmatprep.subr.mxu0 0.0
    %1786 = vmatpush1.msra.mxu0 0.0
    %1787 = vmatprep.subr.mxu0 0.0
    %1788 = vmatpush1.msra.mxu0 0.0
    %1789 = vmatprep.subr.mxu0 0.0
    %1790 = vmatpush1.msra.mxu0 0.0
    %1791 = vmatprep.subr.mxu0 0.0
    %1792 = vmatpush1.msra.mxu0 0.0
    %1793 = vmatprep.subr.mxu0 0.0
    %1794 = vmatpush1.msra.mxu0 0.0
    %1795 = vmatprep.subr.mxu0 0.0
    %1796 = vmatpush1.msra.mxu0 0.0
    %1797 = vmatprep.subr.mxu0 0.0
    %1798 = vmatpush1.msra.mxu0 0.0
    %1799 = vmatprep.subr.mxu0 0.0
    %1800 = vmatpush1.msra.mxu0 0.0
    %1801 = vmatprep.subr.mxu0 0.0
    %1802 = vmatpush1.msra.mxu0 0.0
    %1803 = vmatprep.subr.mxu0 0.0
    %1804 = vmatpush1.msra.mxu0 0.0
    %1805 = vmatprep.subr.mxu0 0.0
    %1806 = vmatpush1.msra.mxu0 0.0
    %1807 = vmatprep.subr.mxu0 0.0
    %1808 = vmatpush1.msra.mxu0 0.0
    %1809 = vmatprep.subr.mxu0 0.0
    %1810 = vmatpush1.msra.mxu0 0.0
    %1811 = vmatprep.subr.mxu0 0.0
    %1812 = vmatpush1.msra.mxu0 0.0
    %1813 = vmatprep.subr.mxu0 0.0
    %1814 = vmatpush1.msra.mxu0 0.0
    %1815 = vmatprep.subr.mxu0 0.0
    %1816 = vmatpush1.msra.mxu0 0.0
    %1817 = vmatprep.subr.mxu0 0.0
    %1818 = vmatpush1.msra.mxu0 0.0
    %1819 = vmatprep.subr.mxu0 0.0
    %1820 = vmatpush1.msra.mxu0 0.0
    %1821 = vmatprep.subr.mxu0 0.0
    %1822 = vmatpush1.msra.mxu0 0.0
    %1823 = vmatprep.subr.mxu0 0.0
    %1824 = vmatpush1.msra.mxu0 0.0
    %1825 = vmatprep.subr.mxu0 0.0
    %1826 = vmatpush1.msra.mxu0 0.0
    %1827 = vmatprep.mubr.f32.mxu0 0.0
    %1828 = vmatmul.mubr.f32.gmra.mrb[0].mxu0 %v1758
    %v1829 = vpop.f32.mrb[0].mxu0
    %v1830 = vadd.f32 0.0, %v1829
    %v1831 = vpop.f32.mrb[0].mxu0
    %1832 = vmatprep.mubr.f32.mxu0 0.0
    %1833 = vmatmul.mubr.f32.gmra.mrb[0].mxu0 %v1761
    %v1834 = vpop.f32.mrb[0].mxu0
    %v1835 = vadd.f32 0.0, %v1834
    %v1836 = vpop.f32.mrb[0].mxu0
    %1837 = vdwg.mxu0
    %1840 = vrot.lane.b32.xlu0 %v1830, 28
    %v1841 = vpop.permute.xlu0 %1840
    %1842 = vrot.lane.b32.xlu0 %v1835, 28
    %v1843 = vpop.permute.xlu0 %1842
    %vm1846 = vcmask 261344
    %1847 = vst.msk [vmem:[#allocation2] sm:$0xff] %vm1846, %v1841
    %1848 = vst.msk [vmem:[#allocation2 + $0x8] sm:$0xff] %vm1846, %v1843
    %1851 = vrot.lane.b32.xlu0 %v162, 96
    %v1852 = vpop.permute.xlu0 %1851
    %1853 = vrot.lane.b32.xlu0 %v167, 96
    %v1854 = vpop.permute.xlu0 %1853
    %v1855 = vsel %vm176, %v162, 0
    %v1857 = vsel %vm176, %v167, 0
    %v1859 = vsel %vm176, %v1852, 0
    %v1861 = vsel %vm176, %v1854, 0
    %1863 = vmatprep.subr.mxu0 0.0
    %1864 = vmatpush1.xpose.msra.mxu0 %v1859
    %1865 = vmatprep.subr.mxu0 0.0
    %1866 = vmatpush1.xpose.msra.mxu0 %v1861
    %1867 = vmatprep.subr.mxu0 0.0
    %1868 = vmatpush1.xpose.msra.mxu0 0.0
    %1869 = vmatprep.subr.mxu0 0.0
    %1870 = vmatpush1.xpose.msra.mxu0 0.0
    %1871 = vmatprep.subr.mxu0 0.0
    %1872 = vmatpush1.xpose.msra.mxu0 0.0
    %1873 = vmatprep.subr.mxu0 0.0
    %1874 = vmatpush1.xpose.msra.mxu0 0.0
    %1875 = vmatprep.subr.mxu0 0.0
    %1876 = vmatpush1.xpose.msra.mxu0 0.0
    %1877 = vmatprep.subr.mxu0 0.0
    %1878 = vmatpush1.xpose.msra.mxu0 0.0
    %1879 = vmatprep.subr.mxu0 0.0
    %1880 = vmatpush1.xpose.msra.mxu0 0.0
    %1881 = vmatprep.subr.mxu0 0.0
    %1882 = vmatpush1.xpose.msra.mxu0 0.0
    %1883 = vmatprep.subr.mxu0 0.0
    %1884 = vmatpush1.xpose.msra.mxu0 0.0
    %1885 = vmatprep.subr.mxu0 0.0
    %1886 = vmatpush1.xpose.msra.mxu0 0.0
    %1887 = vmatprep.subr.mxu0 0.0
    %1888 = vmatpush1.xpose.msra.mxu0 0.0
    %1889 = vmatprep.subr.mxu0 0.0
    %1890 = vmatpush1.xpose.msra.mxu0 0.0
    %1891 = vmatprep.subr.mxu0 0.0
    %1892 = vmatpush1.xpose.msra.mxu0 0.0
    %1893 = vmatprep.subr.mxu0 0.0
    %1894 = vmatpush1.xpose.msra.mxu0 0.0
    %1895 = vmatprep.subr.mxu0 0.0
    %1896 = vmatpush1.xpose.msra.mxu0 0.0
    %1897 = vmatprep.subr.mxu0 0.0
    %1898 = vmatpush1.xpose.msra.mxu0 0.0
    %1899 = vmatprep.subr.mxu0 0.0
    %1900 = vmatpush1.xpose.msra.mxu0 0.0
    %1901 = vmatprep.subr.mxu0 0.0
    %1902 = vmatpush1.xpose.msra.mxu0 0.0
    %1903 = vmatprep.subr.mxu0 0.0
    %1904 = vmatpush1.xpose.msra.mxu0 0.0
    %1905 = vmatprep.subr.mxu0 0.0
    %1906 = vmatpush1.xpose.msra.mxu0 0.0
    %1907 = vmatprep.subr.mxu0 0.0
    %1908 = vmatpush1.xpose.msra.mxu0 0.0
    %1909 = vmatprep.subr.mxu0 0.0
    %1910 = vmatpush1.xpose.msra.mxu0 0.0
    %1911 = vmatprep.subr.mxu0 0.0
    %1912 = vmatpush1.xpose.msra.mxu0 0.0
    %1913 = vmatprep.subr.mxu0 0.0
    %1914 = vmatpush1.xpose.msra.mxu0 0.0
    %1915 = vmatprep.subr.mxu0 0.0
    %1916 = vmatpush1.xpose.msra.mxu0 0.0
    %1917 = vmatprep.subr.mxu0 0.0
    %1918 = vmatpush1.xpose.msra.mxu0 0.0
    %1919 = vmatprep.subr.mxu0 0.0
    %1920 = vmatpush1.xpose.msra.mxu0 0.0
    %1921 = vmatprep.subr.mxu0 0.0
    %1922 = vmatpush1.xpose.msra.mxu0 0.0
    %1923 = vmatprep.subr.mxu0 0.0
    %1924 = vmatpush1.xpose.msra.mxu0 0.0
    %1925 = vmatprep.subr.mxu0 0.0
    %1926 = vmatpush1.xpose.msra.mxu0 0.0
    %1927 = vmatprep.mubr.f32.mxu0 0.0
    %1928 = vmatmul.mubr.f32.gmra.mrb[0].mxu0 %v1855
    %v1929 = vpop.f32.mrb[0].mxu0
    %v1930 = vadd.f32 0.0, %v1929
    %v1931 = vpop.f32.mrb[0].mxu0
    %1932 = vmatprep.mubr.f32.mxu0 0.0
    %1933 = vmatmul.mubr.f32.gmra.mrb[0].mxu0 %v1857
    %v1934 = vpop.f32.mrb[0].mxu0
    %v1935 = vadd.f32 0.0, %v1934
    %v1936 = vpop.f32.mrb[0].mxu0
    %1937 = vdwg.mxu0
    %v1938 = vsel %vm260, %v1930, -inf
    %1939 = vmax.xlane.f32.xlu0 %v1938
    %v1940 = vpop.xlane.xlu0 %1939
    %v1941 = vsel %vm260, %v1935, -inf
    %1942 = vmax.xlane.f32.xlu0 %v1941
    %v1943 = vpop.xlane.xlu0 %1942
    %v1944 = vsub.f32 %v1930, %v1940
    %v1945 = vsub.f32 %v1935, %v1943
    %v1946 = vmul.f32 %v1944, 1.442695
    %v1947 = vpow.pop %v1946
    %v1948 = vmul.f32 %v1945, 1.442695
    %v1949 = vpow.pop %v1948
    %v1950 = vsel %vm260, %v1947, 0.0
    %1951 = vadd.xlane.f32.xlu0 %v1950
    %v1952 = vpop.xlane.xlu0 %1951
    %v1953 = vsel %vm260, %v1949, 0.0
    %1954 = vadd.xlane.f32.xlu0 %v1953
    %v1955 = vpop.xlane.xlu0 %1954
    %v1956 = vrcp.pop %v1952
    %v1957 = vrcp.pop %v1955
    %v1958 = vmul.f32 %v1947, %v1956
    %v1959 = vmul.f32 %v1949, %v1957
    %1960 = vrot.lane.b32.xlu0 %v162, 64
    %v1961 = vpop.permute.xlu0 %1960
    %1962 = vrot.lane.b32.xlu0 %v167, 64
    %v1963 = vpop.permute.xlu0 %1962
    %v1967 = vsel %vm260, %v1958, 0
    %v1970 = vsel %vm260, %v1959, 0
    %1972 = vmatprep.subr.mxu0 0.0
    %1973 = vmatpush1.msra.mxu0 %v1961
    %1974 = vmatprep.subr.mxu0 0.0
    %1975 = vmatpush1.msra.mxu0 %v1963
    %1976 = vmatprep.subr.mxu0 0.0
    %1977 = vmatpush1.msra.mxu0 0.0
    %1978 = vmatprep.subr.mxu0 0.0
    %1979 = vmatpush1.msra.mxu0 0.0
    %1980 = vmatprep.subr.mxu0 0.0
    %1981 = vmatpush1.msra.mxu0 0.0
    %1982 = vmatprep.subr.mxu0 0.0
    %1983 = vmatpush1.msra.mxu0 0.0
    %1984 = vmatprep.subr.mxu0 0.0
    %1985 = vmatpush1.msra.mxu0 0.0
    %1986 = vmatprep.subr.mxu0 0.0
    %1987 = vmatpush1.msra.mxu0 0.0
    %1988 = vmatprep.subr.mxu0 0.0
    %1989 = vmatpush1.msra.mxu0 0.0
    %1990 = vmatprep.subr.mxu0 0.0
    %1991 = vmatpush1.msra.mxu0 0.0
    %1992 = vmatprep.subr.mxu0 0.0
    %1993 = vmatpush1.msra.mxu0 0.0
    %1994 = vmatprep.subr.mxu0 0.0
    %1995 = vmatpush1.msra.mxu0 0.0
    %1996 = vmatprep.subr.mxu0 0.0
    %1997 = vmatpush1.msra.mxu0 0.0
    %1998 = vmatprep.subr.mxu0 0.0
    %1999 = vmatpush1.msra.mxu0 0.0
    %2000 = vmatprep.subr.mxu0 0.0
    %2001 = vmatpush1.msra.mxu0 0.0
    %2002 = vmatprep.subr.mxu0 0.0
    %2003 = vmatpush1.msra.mxu0 0.0
    %2004 = vmatprep.subr.mxu0 0.0
    %2005 = vmatpush1.msra.mxu0 0.0
    %2006 = vmatprep.subr.mxu0 0.0
    %2007 = vmatpush1.msra.mxu0 0.0
    %2008 = vmatprep.subr.mxu0 0.0
    %2009 = vmatpush1.msra.mxu0 0.0
    %2010 = vmatprep.subr.mxu0 0.0
    %2011 = vmatpush1.msra.mxu0 0.0
    %2012 = vmatprep.subr.mxu0 0.0
    %2013 = vmatpush1.msra.mxu0 0.0
    %2014 = vmatprep.subr.mxu0 0.0
    %2015 = vmatpush1.msra.mxu0 0.0
    %2016 = vmatprep.subr.mxu0 0.0
    %2017 = vmatpush1.msra.mxu0 0.0
    %2018 = vmatprep.subr.mxu0 0.0
    %2019 = vmatpush1.msra.mxu0 0.0
    %2020 = vmatprep.subr.mxu0 0.0
    %2021 = vmatpush1.msra.mxu0 0.0
    %2022 = vmatprep.subr.mxu0 0.0
    %2023 = vmatpush1.msra.mxu0 0.0
    %2024 = vmatprep.subr.mxu0 0.0
    %2025 = vmatpush1.msra.mxu0 0.0
    %2026 = vmatprep.subr.mxu0 0.0
    %2027 = vmatpush1.msra.mxu0 0.0
    %2028 = vmatprep.subr.mxu0 0.0
    %2029 = vmatpush1.msra.mxu0 0.0
    %2030 = vmatprep.subr.mxu0 0.0
    %2031 = vmatpush1.msra.mxu0 0.0
    %2032 = vmatprep.subr.mxu0 0.0
    %2033 = vmatpush1.msra.mxu0 0.0
    %2034 = vmatprep.subr.mxu0 0.0
    %2035 = vmatpush1.msra.mxu0 0.0
    %2036 = vmatprep.mubr.f32.mxu0 0.0
    %2037 = vmatmul.mubr.f32.gmra.mrb[0].mxu0 %v1967
    %v2038 = vpop.f32.mrb[0].mxu0
    %v2039 = vadd.f32 0.0, %v2038
    %v2040 = vpop.f32.mrb[0].mxu0
    %2041 = vmatprep.mubr.f32.mxu0 0.0
    %2042 = vmatmul.mubr.f32.gmra.mrb[0].mxu0 %v1970
    %v2043 = vpop.f32.mrb[0].mxu0
    %v2044 = vadd.f32 0.0, %v2043
    %v2045 = vpop.f32.mrb[0].mxu0
    %2046 = vdwg.mxu0
    %2047 = vst.msk [vmem:[#allocation2 + $0x10] sm:$0xff] %vm176, %v2039
    %2048 = vst.msk [vmem:[#allocation2 + $0x18] sm:$0xff] %vm176, %v2044
    %2049 = vrot.lane.b32.xlu0 %v162, 124
    %v2050 = vpop.permute.xlu0 %2049
    %2051 = vrot.lane.b32.xlu0 %v167, 124
    %v2052 = vpop.permute.xlu0 %2051
    %2053 = vrot.lane.b32.xlu0 %v162, 92
    %v2054 = vpop.permute.xlu0 %2053
    %2055 = vrot.lane.b32.xlu0 %v167, 92
    %v2056 = vpop.permute.xlu0 %2055
    %v2057 = vsel %vm176, %v2050, 0
    %v2059 = vsel %vm176, %v2052, 0
    %v2061 = vsel %vm176, %v2054, 0
    %v2063 = vsel %vm176, %v2056, 0
    %2065 = vmatprep.subr.mxu0 0.0
    %2066 = vmatpush1.xpose.msra.mxu0 %v2061
    %2067 = vmatprep.subr.mxu0 0.0
    %2068 = vmatpush1.xpose.msra.mxu0 %v2063
    %2069 = vmatprep.subr.mxu0 0.0
    %2070 = vmatpush1.xpose.msra.mxu0 0.0
    %2071 = vmatprep.subr.mxu0 0.0
    %2072 = vmatpush1.xpose.msra.mxu0 0.0
    %2073 = vmatprep.subr.mxu0 0.0
    %2074 = vmatpush1.xpose.msra.mxu0 0.0
    %2075 = vmatprep.subr.mxu0 0.0
    %2076 = vmatpush1.xpose.msra.mxu0 0.0
    %2077 = vmatprep.subr.mxu0 0.0
    %2078 = vmatpush1.xpose.msra.mxu0 0.0
    %2079 = vmatprep.subr.mxu0 0.0
    %2080 = vmatpush1.xpose.msra.mxu0 0.0
    %2081 = vmatprep.subr.mxu0 0.0
    %2082 = vmatpush1.xpose.msra.mxu0 0.0
    %2083 = vmatprep.subr.mxu0 0.0
    %2084 = vmatpush1.xpose.msra.mxu0 0.0
    %2085 = vmatprep.subr.mxu0 0.0
    %2086 = vmatpush1.xpose.msra.mxu0 0.0
    %2087 = vmatprep.subr.mxu0 0.0
    %2088 = vmatpush1.xpose.msra.mxu0 0.0
    %2089 = vmatprep.subr.mxu0 0.0
    %2090 = vmatpush1.xpose.msra.mxu0 0.0
    %2091 = vmatprep.subr.mxu0 0.0
    %2092 = vmatpush1.xpose.msra.mxu0 0.0
    %2093 = vmatprep.subr.mxu0 0.0
    %2094 = vmatpush1.xpose.msra.mxu0 0.0
    %2095 = vmatprep.subr.mxu0 0.0
    %2096 = vmatpush1.xpose.msra.mxu0 0.0
    %2097 = vmatprep.subr.mxu0 0.0
    %2098 = vmatpush1.xpose.msra.mxu0 0.0
    %2099 = vmatprep.subr.mxu0 0.0
    %2100 = vmatpush1.xpose.msra.mxu0 0.0
    %2101 = vmatprep.subr.mxu0 0.0
    %2102 = vmatpush1.xpose.msra.mxu0 0.0
    %2103 = vmatprep.subr.mxu0 0.0
    %2104 = vmatpush1.xpose.msra.mxu0 0.0
    %2105 = vmatprep.subr.mxu0 0.0
    %2106 = vmatpush1.xpose.msra.mxu0 0.0
    %2107 = vmatprep.subr.mxu0 0.0
    %2108 = vmatpush1.xpose.msra.mxu0 0.0
    %2109 = vmatprep.subr.mxu0 0.0
    %2110 = vmatpush1.xpose.msra.mxu0 0.0
    %2111 = vmatprep.subr.mxu0 0.0
    %2112 = vmatpush1.xpose.msra.mxu0 0.0
    %2113 = vmatprep.subr.mxu0 0.0
    %2114 = vmatpush1.xpose.msra.mxu0 0.0
    %2115 = vmatprep.subr.mxu0 0.0
    %2116 = vmatpush1.xpose.msra.mxu0 0.0
    %2117 = vmatprep.subr.mxu0 0.0
    %2118 = vmatpush1.xpose.msra.mxu0 0.0
    %2119 = vmatprep.subr.mxu0 0.0
    %2120 = vmatpush1.xpose.msra.mxu0 0.0
    %2121 = vmatprep.subr.mxu0 0.0
    %2122 = vmatpush1.xpose.msra.mxu0 0.0
    %2123 = vmatprep.subr.mxu0 0.0
    %2124 = vmatpush1.xpose.msra.mxu0 0.0
    %2125 = vmatprep.subr.mxu0 0.0
    %2126 = vmatpush1.xpose.msra.mxu0 0.0
    %2127 = vmatprep.subr.mxu0 0.0
    %2128 = vmatpush1.xpose.msra.mxu0 0.0
    %2129 = vmatprep.mubr.f32.mxu0 0.0
    %2130 = vmatmul.mubr.f32.gmra.mrb[0].mxu0 %v2057
    %v2131 = vpop.f32.mrb[0].mxu0
    %v2132 = vadd.f32 0.0, %v2131
    %v2133 = vpop.f32.mrb[0].mxu0
    %2134 = vmatprep.mubr.f32.mxu0 0.0
    %2135 = vmatmul.mubr.f32.gmra.mrb[0].mxu0 %v2059
    %v2136 = vpop.f32.mrb[0].mxu0
    %v2137 = vadd.f32 0.0, %v2136
    %v2138 = vpop.f32.mrb[0].mxu0
    %2139 = vdwg.mxu0
    %v2140 = vsel %vm260, %v2132, -inf
    %2141 = vmax.xlane.f32.xlu0 %v2140
    %v2142 = vpop.xlane.xlu0 %2141
    %v2143 = vsel %vm260, %v2137, -inf
    %2144 = vmax.xlane.f32.xlu0 %v2143
    %v2145 = vpop.xlane.xlu0 %2144
    %v2146 = vsub.f32 %v2132, %v2142
    %v2147 = vsub.f32 %v2137, %v2145
    %v2148 = vmul.f32 %v2146, 1.442695
    %v2149 = vpow.pop %v2148
    %v2150 = vmul.f32 %v2147, 1.442695
    %v2151 = vpow.pop %v2150
    %v2152 = vsel %vm260, %v2149, 0.0
    %2153 = vadd.xlane.f32.xlu0 %v2152
    %v2154 = vpop.xlane.xlu0 %2153
    %v2155 = vsel %vm260, %v2151, 0.0
    %2156 = vadd.xlane.f32.xlu0 %v2155
    %v2157 = vpop.xlane.xlu0 %2156
    %v2158 = vrcp.pop %v2154
    %v2159 = vrcp.pop %v2157
    %v2160 = vmul.f32 %v2149, %v2158
    %v2161 = vmul.f32 %v2151, %v2159
    %2162 = vrot.lane.b32.xlu0 %v162, 60
    %v2163 = vpop.permute.xlu0 %2162
    %2164 = vrot.lane.b32.xlu0 %v167, 60
    %v2165 = vpop.permute.xlu0 %2164
    %v2169 = vsel %vm260, %v2160, 0
    %v2172 = vsel %vm260, %v2161, 0
    %2174 = vmatprep.subr.mxu0 0.0
    %2175 = vmatpush1.msra.mxu0 %v2163
    %2176 = vmatprep.subr.mxu0 0.0
    %2177 = vmatpush1.msra.mxu0 %v2165
    %2178 = vmatprep.subr.mxu0 0.0
    %2179 = vmatpush1.msra.mxu0 0.0
    %2180 = vmatprep.subr.mxu0 0.0
    %2181 = vmatpush1.msra.mxu0 0.0
    %2182 = vmatprep.subr.mxu0 0.0
    %2183 = vmatpush1.msra.mxu0 0.0
    %2184 = vmatprep.subr.mxu0 0.0
    %2185 = vmatpush1.msra.mxu0 0.0
    %2186 = vmatprep.subr.mxu0 0.0
    %2187 = vmatpush1.msra.mxu0 0.0
    %2188 = vmatprep.subr.mxu0 0.0
    %2189 = vmatpush1.msra.mxu0 0.0
    %2190 = vmatprep.subr.mxu0 0.0
    %2191 = vmatpush1.msra.mxu0 0.0
    %2192 = vmatprep.subr.mxu0 0.0
    %2193 = vmatpush1.msra.mxu0 0.0
    %2194 = vmatprep.subr.mxu0 0.0
    %2195 = vmatpush1.msra.mxu0 0.0
    %2196 = vmatprep.subr.mxu0 0.0
    %2197 = vmatpush1.msra.mxu0 0.0
    %2198 = vmatprep.subr.mxu0 0.0
    %2199 = vmatpush1.msra.mxu0 0.0
    %2200 = vmatprep.subr.mxu0 0.0
    %2201 = vmatpush1.msra.mxu0 0.0
    %2202 = vmatprep.subr.mxu0 0.0
    %2203 = vmatpush1.msra.mxu0 0.0
    %2204 = vmatprep.subr.mxu0 0.0
    %2205 = vmatpush1.msra.mxu0 0.0
    %2206 = vmatprep.subr.mxu0 0.0
    %2207 = vmatpush1.msra.mxu0 0.0
    %2208 = vmatprep.subr.mxu0 0.0
    %2209 = vmatpush1.msra.mxu0 0.0
    %2210 = vmatprep.subr.mxu0 0.0
    %2211 = vmatpush1.msra.mxu0 0.0
    %2212 = vmatprep.subr.mxu0 0.0
    %2213 = vmatpush1.msra.mxu0 0.0
    %2214 = vmatprep.subr.mxu0 0.0
    %2215 = vmatpush1.msra.mxu0 0.0
    %2216 = vmatprep.subr.mxu0 0.0
    %2217 = vmatpush1.msra.mxu0 0.0
    %2218 = vmatprep.subr.mxu0 0.0
    %2219 = vmatpush1.msra.mxu0 0.0
    %2220 = vmatprep.subr.mxu0 0.0
    %2221 = vmatpush1.msra.mxu0 0.0
    %2222 = vmatprep.subr.mxu0 0.0
    %2223 = vmatpush1.msra.mxu0 0.0
    %2224 = vmatprep.subr.mxu0 0.0
    %2225 = vmatpush1.msra.mxu0 0.0
    %2226 = vmatprep.subr.mxu0 0.0
    %2227 = vmatpush1.msra.mxu0 0.0
    %2228 = vmatprep.subr.mxu0 0.0
    %2229 = vmatpush1.msra.mxu0 0.0
    %2230 = vmatprep.subr.mxu0 0.0
    %2231 = vmatpush1.msra.mxu0 0.0
    %2232 = vmatprep.subr.mxu0 0.0
    %2233 = vmatpush1.msra.mxu0 0.0
    %2234 = vmatprep.subr.mxu0 0.0
    %2235 = vmatpush1.msra.mxu0 0.0
    %2236 = vmatprep.subr.mxu0 0.0
    %2237 = vmatpush1.msra.mxu0 0.0
    %2238 = vmatprep.mubr.f32.mxu0 0.0
    %2239 = vmatmul.mubr.f32.gmra.mrb[0].mxu0 %v2169
    %v2240 = vpop.f32.mrb[0].mxu0
    %v2241 = vadd.f32 0.0, %v2240
    %v2242 = vpop.f32.mrb[0].mxu0
    %2243 = vmatprep.mubr.f32.mxu0 0.0
    %2244 = vmatmul.mubr.f32.gmra.mrb[0].mxu0 %v2172
    %v2245 = vpop.f32.mrb[0].mxu0
    %v2246 = vadd.f32 0.0, %v2245
    %v2247 = vpop.f32.mrb[0].mxu0
    %2248 = vdwg.mxu0
    %2251 = vrot.lane.b32.xlu0 %v2241, 4
    %v2252 = vpop.permute.xlu0 %2251
    %2253 = vrot.lane.b32.xlu0 %v2246, 4
    %v2254 = vpop.permute.xlu0 %2253
    %2257 = vst.msk [vmem:[#allocation2 + $0x10] sm:$0xff] %vm580, %v2252
    %2258 = vst.msk [vmem:[#allocation2 + $0x18] sm:$0xff] %vm580, %v2254
    %2259 = vrot.lane.b32.xlu0 %v162, 120
    %v2260 = vpop.permute.xlu0 %2259
    %2261 = vrot.lane.b32.xlu0 %v167, 120
    %v2262 = vpop.permute.xlu0 %2261
    %2263 = vrot.lane.b32.xlu0 %v162, 88
    %v2264 = vpop.permute.xlu0 %2263
    %2265 = vrot.lane.b32.xlu0 %v167, 88
    %v2266 = vpop.permute.xlu0 %2265
    %v2267 = vsel %vm176, %v2260, 0
    %v2269 = vsel %vm176, %v2262, 0
    %v2271 = vsel %vm176, %v2264, 0
    %v2273 = vsel %vm176, %v2266, 0
    %2275 = vmatprep.subr.mxu0 0.0
    %2276 = vmatpush1.xpose.msra.mxu0 %v2271
    %2277 = vmatprep.subr.mxu0 0.0
    %2278 = vmatpush1.xpose.msra.mxu0 %v2273
    %2279 = vmatprep.subr.mxu0 0.0
    %2280 = vmatpush1.xpose.msra.mxu0 0.0
    %2281 = vmatprep.subr.mxu0 0.0
    %2282 = vmatpush1.xpose.msra.mxu0 0.0
    %2283 = vmatprep.subr.mxu0 0.0
    %2284 = vmatpush1.xpose.msra.mxu0 0.0
    %2285 = vmatprep.subr.mxu0 0.0
    %2286 = vmatpush1.xpose.msra.mxu0 0.0
    %2287 = vmatprep.subr.mxu0 0.0
    %2288 = vmatpush1.xpose.msra.mxu0 0.0
    %2289 = vmatprep.subr.mxu0 0.0
    %2290 = vmatpush1.xpose.msra.mxu0 0.0
    %2291 = vmatprep.subr.mxu0 0.0
    %2292 = vmatpush1.xpose.msra.mxu0 0.0
    %2293 = vmatprep.subr.mxu0 0.0
    %2294 = vmatpush1.xpose.msra.mxu0 0.0
    %2295 = vmatprep.subr.mxu0 0.0
    %2296 = vmatpush1.xpose.msra.mxu0 0.0
    %2297 = vmatprep.subr.mxu0 0.0
    %2298 = vmatpush1.xpose.msra.mxu0 0.0
    %2299 = vmatprep.subr.mxu0 0.0
    %2300 = vmatpush1.xpose.msra.mxu0 0.0
    %2301 = vmatprep.subr.mxu0 0.0
    %2302 = vmatpush1.xpose.msra.mxu0 0.0
    %2303 = vmatprep.subr.mxu0 0.0
    %2304 = vmatpush1.xpose.msra.mxu0 0.0
    %2305 = vmatprep.subr.mxu0 0.0
    %2306 = vmatpush1.xpose.msra.mxu0 0.0
    %2307 = vmatprep.subr.mxu0 0.0
    %2308 = vmatpush1.xpose.msra.mxu0 0.0
    %2309 = vmatprep.subr.mxu0 0.0
    %2310 = vmatpush1.xpose.msra.mxu0 0.0
    %2311 = vmatprep.subr.mxu0 0.0
    %2312 = vmatpush1.xpose.msra.mxu0 0.0
    %2313 = vmatprep.subr.mxu0 0.0
    %2314 = vmatpush1.xpose.msra.mxu0 0.0
    %2315 = vmatprep.subr.mxu0 0.0
    %2316 = vmatpush1.xpose.msra.mxu0 0.0
    %2317 = vmatprep.subr.mxu0 0.0
    %2318 = vmatpush1.xpose.msra.mxu0 0.0
    %2319 = vmatprep.subr.mxu0 0.0
    %2320 = vmatpush1.xpose.msra.mxu0 0.0
    %2321 = vmatprep.subr.mxu0 0.0
    %2322 = vmatpush1.xpose.msra.mxu0 0.0
    %2323 = vmatprep.subr.mxu0 0.0
    %2324 = vmatpush1.xpose.msra.mxu0 0.0
    %2325 = vmatprep.subr.mxu0 0.0
    %2326 = vmatpush1.xpose.msra.mxu0 0.0
    %2327 = vmatprep.subr.mxu0 0.0
    %2328 = vmatpush1.xpose.msra.mxu0 0.0
    %2329 = vmatprep.subr.mxu0 0.0
    %2330 = vmatpush1.xpose.msra.mxu0 0.0
    %2331 = vmatprep.subr.mxu0 0.0
    %2332 = vmatpush1.xpose.msra.mxu0 0.0
    %2333 = vmatprep.subr.mxu0 0.0
    %2334 = vmatpush1.xpose.msra.mxu0 0.0
    %2335 = vmatprep.subr.mxu0 0.0
    %2336 = vmatpush1.xpose.msra.mxu0 0.0
    %2337 = vmatprep.subr.mxu0 0.0
    %2338 = vmatpush1.xpose.msra.mxu0 0.0
    %2339 = vmatprep.mubr.f32.mxu0 0.0
    %2340 = vmatmul.mubr.f32.gmra.mrb[0].mxu0 %v2267
    %v2341 = vpop.f32.mrb[0].mxu0
    %v2342 = vadd.f32 0.0, %v2341
    %v2343 = vpop.f32.mrb[0].mxu0
    %2344 = vmatprep.mubr.f32.mxu0 0.0
    %2345 = vmatmul.mubr.f32.gmra.mrb[0].mxu0 %v2269
    %v2346 = vpop.f32.mrb[0].mxu0
    %v2347 = vadd.f32 0.0, %v2346
    %v2348 = vpop.f32.mrb[0].mxu0
    %2349 = vdwg.mxu0
    %v2350 = vsel %vm260, %v2342, -inf
    %2351 = vmax.xlane.f32.xlu0 %v2350
    %v2352 = vpop.xlane.xlu0 %2351
    %v2353 = vsel %vm260, %v2347, -inf
    %2354 = vmax.xlane.f32.xlu0 %v2353
    %v2355 = vpop.xlane.xlu0 %2354
    %v2356 = vsub.f32 %v2342, %v2352
    %v2357 = vsub.f32 %v2347, %v2355
    %v2358 = vmul.f32 %v2356, 1.442695
    %v2359 = vpow.pop %v2358
    %v2360 = vmul.f32 %v2357, 1.442695
    %v2361 = vpow.pop %v2360
    %v2362 = vsel %vm260, %v2359, 0.0
    %2363 = vadd.xlane.f32.xlu0 %v2362
    %v2364 = vpop.xlane.xlu0 %2363
    %v2365 = vsel %vm260, %v2361, 0.0
    %2366 = vadd.xlane.f32.xlu0 %v2365
    %v2367 = vpop.xlane.xlu0 %2366
    %v2368 = vrcp.pop %v2364
    %v2369 = vrcp.pop %v2367
    %v2370 = vmul.f32 %v2359, %v2368
    %v2371 = vmul.f32 %v2361, %v2369
    %2372 = vrot.lane.b32.xlu0 %v162, 56
    %v2373 = vpop.permute.xlu0 %2372
    %2374 = vrot.lane.b32.xlu0 %v167, 56
    %v2375 = vpop.permute.xlu0 %2374
    %v2379 = vsel %vm260, %v2370, 0
    %v2382 = vsel %vm260, %v2371, 0
    %2384 = vmatprep.subr.mxu0 0.0
    %2385 = vmatpush1.msra.mxu0 %v2373
    %2386 = vmatprep.subr.mxu0 0.0
    %2387 = vmatpush1.msra.mxu0 %v2375
    %2388 = vmatprep.subr.mxu0 0.0
    %2389 = vmatpush1.msra.mxu0 0.0
    %2390 = vmatprep.subr.mxu0 0.0
    %2391 = vmatpush1.msra.mxu0 0.0
    %2392 = vmatprep.subr.mxu0 0.0
    %2393 = vmatpush1.msra.mxu0 0.0
    %2394 = vmatprep.subr.mxu0 0.0
    %2395 = vmatpush1.msra.mxu0 0.0
    %2396 = vmatprep.subr.mxu0 0.0
    %2397 = vmatpush1.msra.mxu0 0.0
    %2398 = vmatprep.subr.mxu0 0.0
    %2399 = vmatpush1.msra.mxu0 0.0
    %2400 = vmatprep.subr.mxu0 0.0
    %2401 = vmatpush1.msra.mxu0 0.0
    %2402 = vmatprep.subr.mxu0 0.0
    %2403 = vmatpush1.msra.mxu0 0.0
    %2404 = vmatprep.subr.mxu0 0.0
    %2405 = vmatpush1.msra.mxu0 0.0
    %2406 = vmatprep.subr.mxu0 0.0
    %2407 = vmatpush1.msra.mxu0 0.0
    %2408 = vmatprep.subr.mxu0 0.0
    %2409 = vmatpush1.msra.mxu0 0.0
    %2410 = vmatprep.subr.mxu0 0.0
    %2411 = vmatpush1.msra.mxu0 0.0
    %2412 = vmatprep.subr.mxu0 0.0
    %2413 = vmatpush1.msra.mxu0 0.0
    %2414 = vmatprep.subr.mxu0 0.0
    %2415 = vmatpush1.msra.mxu0 0.0
    %2416 = vmatprep.subr.mxu0 0.0
    %2417 = vmatpush1.msra.mxu0 0.0
    %2418 = vmatprep.subr.mxu0 0.0
    %2419 = vmatpush1.msra.mxu0 0.0
    %2420 = vmatprep.subr.mxu0 0.0
    %2421 = vmatpush1.msra.mxu0 0.0
    %2422 = vmatprep.subr.mxu0 0.0
    %2423 = vmatpush1.msra.mxu0 0.0
    %2424 = vmatprep.subr.mxu0 0.0
    %2425 = vmatpush1.msra.mxu0 0.0
    %2426 = vmatprep.subr.mxu0 0.0
    %2427 = vmatpush1.msra.mxu0 0.0
    %2428 = vmatprep.subr.mxu0 0.0
    %2429 = vmatpush1.msra.mxu0 0.0
    %2430 = vmatprep.subr.mxu0 0.0
    %2431 = vmatpush1.msra.mxu0 0.0
    %2432 = vmatprep.subr.mxu0 0.0
    %2433 = vmatpush1.msra.mxu0 0.0
    %2434 = vmatprep.subr.mxu0 0.0
    %2435 = vmatpush1.msra.mxu0 0.0
    %2436 = vmatprep.subr.mxu0 0.0
    %2437 = vmatpush1.msra.mxu0 0.0
    %2438 = vmatprep.subr.mxu0 0.0
    %2439 = vmatpush1.msra.mxu0 0.0
    %2440 = vmatprep.subr.mxu0 0.0
    %2441 = vmatpush1.msra.mxu0 0.0
    %2442 = vmatprep.subr.mxu0 0.0
    %2443 = vmatpush1.msra.mxu0 0.0
    %2444 = vmatprep.subr.mxu0 0.0
    %2445 = vmatpush1.msra.mxu0 0.0
    %2446 = vmatprep.subr.mxu0 0.0
    %2447 = vmatpush1.msra.mxu0 0.0
    %2448 = vmatprep.mubr.f32.mxu0 0.0
    %2449 = vmatmul.mubr.f32.gmra.mrb[0].mxu0 %v2379
    %v2450 = vpop.f32.mrb[0].mxu0
    %v2451 = vadd.f32 0.0, %v2450
    %v2452 = vpop.f32.mrb[0].mxu0
    %2453 = vmatprep.mubr.f32.mxu0 0.0
    %2454 = vmatmul.mubr.f32.gmra.mrb[0].mxu0 %v2382
    %v2455 = vpop.f32.mrb[0].mxu0
    %v2456 = vadd.f32 0.0, %v2455
    %v2457 = vpop.f32.mrb[0].mxu0
    %2458 = vdwg.mxu0
    %2461 = vrot.lane.b32.xlu0 %v2451, 8
    %v2462 = vpop.permute.xlu0 %2461
    %2463 = vrot.lane.b32.xlu0 %v2456, 8
    %v2464 = vpop.permute.xlu0 %2463
    %2467 = vst.msk [vmem:[#allocation2 + $0x10] sm:$0xff] %vm791, %v2462
    %2468 = vst.msk [vmem:[#allocation2 + $0x18] sm:$0xff] %vm791, %v2464
    %2469 = vrot.lane.b32.xlu0 %v162, 116
    %v2470 = vpop.permute.xlu0 %2469
    %2471 = vrot.lane.b32.xlu0 %v167, 116
    %v2472 = vpop.permute.xlu0 %2471
    %2473 = vrot.lane.b32.xlu0 %v162, 84
    %v2474 = vpop.permute.xlu0 %2473
    %2475 = vrot.lane.b32.xlu0 %v167, 84
    %v2476 = vpop.permute.xlu0 %2475
    %v2477 = vsel %vm176, %v2470, 0
    %v2479 = vsel %vm176, %v2472, 0
    %v2481 = vsel %vm176, %v2474, 0
    %v2483 = vsel %vm176, %v2476, 0
    %2485 = vmatprep.subr.mxu0 0.0
    %2486 = vmatpush1.xpose.msra.mxu0 %v2481
    %2487 = vmatprep.subr.mxu0 0.0
    %2488 = vmatpush1.xpose.msra.mxu0 %v2483
    %2489 = vmatprep.subr.mxu0 0.0
    %2490 = vmatpush1.xpose.msra.mxu0 0.0
    %2491 = vmatprep.subr.mxu0 0.0
    %2492 = vmatpush1.xpose.msra.mxu0 0.0
    %2493 = vmatprep.subr.mxu0 0.0
    %2494 = vmatpush1.xpose.msra.mxu0 0.0
    %2495 = vmatprep.subr.mxu0 0.0
    %2496 = vmatpush1.xpose.msra.mxu0 0.0
    %2497 = vmatprep.subr.mxu0 0.0
    %2498 = vmatpush1.xpose.msra.mxu0 0.0
    %2499 = vmatprep.subr.mxu0 0.0
    %2500 = vmatpush1.xpose.msra.mxu0 0.0
    %2501 = vmatprep.subr.mxu0 0.0
    %2502 = vmatpush1.xpose.msra.mxu0 0.0
    %2503 = vmatprep.subr.mxu0 0.0
    %2504 = vmatpush1.xpose.msra.mxu0 0.0
    %2505 = vmatprep.subr.mxu0 0.0
    %2506 = vmatpush1.xpose.msra.mxu0 0.0
    %2507 = vmatprep.subr.mxu0 0.0
    %2508 = vmatpush1.xpose.msra.mxu0 0.0
    %2509 = vmatprep.subr.mxu0 0.0
    %2510 = vmatpush1.xpose.msra.mxu0 0.0
    %2511 = vmatprep.subr.mxu0 0.0
    %2512 = vmatpush1.xpose.msra.mxu0 0.0
    %2513 = vmatprep.subr.mxu0 0.0
    %2514 = vmatpush1.xpose.msra.mxu0 0.0
    %2515 = vmatprep.subr.mxu0 0.0
    %2516 = vmatpush1.xpose.msra.mxu0 0.0
    %2517 = vmatprep.subr.mxu0 0.0
    %2518 = vmatpush1.xpose.msra.mxu0 0.0
    %2519 = vmatprep.subr.mxu0 0.0
    %2520 = vmatpush1.xpose.msra.mxu0 0.0
    %2521 = vmatprep.subr.mxu0 0.0
    %2522 = vmatpush1.xpose.msra.mxu0 0.0
    %2523 = vmatprep.subr.mxu0 0.0
    %2524 = vmatpush1.xpose.msra.mxu0 0.0
    %2525 = vmatprep.subr.mxu0 0.0
    %2526 = vmatpush1.xpose.msra.mxu0 0.0
    %2527 = vmatprep.subr.mxu0 0.0
    %2528 = vmatpush1.xpose.msra.mxu0 0.0
    %2529 = vmatprep.subr.mxu0 0.0
    %2530 = vmatpush1.xpose.msra.mxu0 0.0
    %2531 = vmatprep.subr.mxu0 0.0
    %2532 = vmatpush1.xpose.msra.mxu0 0.0
    %2533 = vmatprep.subr.mxu0 0.0
    %2534 = vmatpush1.xpose.msra.mxu0 0.0
    %2535 = vmatprep.subr.mxu0 0.0
    %2536 = vmatpush1.xpose.msra.mxu0 0.0
    %2537 = vmatprep.subr.mxu0 0.0
    %2538 = vmatpush1.xpose.msra.mxu0 0.0
    %2539 = vmatprep.subr.mxu0 0.0
    %2540 = vmatpush1.xpose.msra.mxu0 0.0
    %2541 = vmatprep.subr.mxu0 0.0
    %2542 = vmatpush1.xpose.msra.mxu0 0.0
    %2543 = vmatprep.subr.mxu0 0.0
    %2544 = vmatpush1.xpose.msra.mxu0 0.0
    %2545 = vmatprep.subr.mxu0 0.0
    %2546 = vmatpush1.xpose.msra.mxu0 0.0
    %2547 = vmatprep.subr.mxu0 0.0
    %2548 = vmatpush1.xpose.msra.mxu0 0.0
    %2549 = vmatprep.mubr.f32.mxu0 0.0
    %2550 = vmatmul.mubr.f32.gmra.mrb[0].mxu0 %v2477
    %v2551 = vpop.f32.mrb[0].mxu0
    %v2552 = vadd.f32 0.0, %v2551
    %v2553 = vpop.f32.mrb[0].mxu0
    %2554 = vmatprep.mubr.f32.mxu0 0.0
    %2555 = vmatmul.mubr.f32.gmra.mrb[0].mxu0 %v2479
    %v2556 = vpop.f32.mrb[0].mxu0
    %v2557 = vadd.f32 0.0, %v2556
    %v2558 = vpop.f32.mrb[0].mxu0
    %2559 = vdwg.mxu0
    %v2560 = vsel %vm260, %v2552, -inf
    %2561 = vmax.xlane.f32.xlu0 %v2560
    %v2562 = vpop.xlane.xlu0 %2561
    %v2563 = vsel %vm260, %v2557, -inf
    %2564 = vmax.xlane.f32.xlu0 %v2563
    %v2565 = vpop.xlane.xlu0 %2564
    %v2566 = vsub.f32 %v2552, %v2562
    %v2567 = vsub.f32 %v2557, %v2565
    %v2568 = vmul.f32 %v2566, 1.442695
    %v2569 = vpow.pop %v2568
    %v2570 = vmul.f32 %v2567, 1.442695
    %v2571 = vpow.pop %v2570
    %v2572 = vsel %vm260, %v2569, 0.0
    %2573 = vadd.xlane.f32.xlu0 %v2572
    %v2574 = vpop.xlane.xlu0 %2573
    %v2575 = vsel %vm260, %v2571, 0.0
    %2576 = vadd.xlane.f32.xlu0 %v2575
    %v2577 = vpop.xlane.xlu0 %2576
    %v2578 = vrcp.pop %v2574
    %v2579 = vrcp.pop %v2577
    %v2580 = vmul.f32 %v2569, %v2578
    %v2581 = vmul.f32 %v2571, %v2579
    %2582 = vrot.lane.b32.xlu0 %v162, 52
    %v2583 = vpop.permute.xlu0 %2582
    %2584 = vrot.lane.b32.xlu0 %v167, 52
    %v2585 = vpop.permute.xlu0 %2584
    %v2589 = vsel %vm260, %v2580, 0
    %v2592 = vsel %vm260, %v2581, 0
    %2594 = vmatprep.subr.mxu0 0.0
    %2595 = vmatpush1.msra.mxu0 %v2583
    %2596 = vmatprep.subr.mxu0 0.0
    %2597 = vmatpush1.msra.mxu0 %v2585
    %2598 = vmatprep.subr.mxu0 0.0
    %2599 = vmatpush1.msra.mxu0 0.0
    %2600 = vmatprep.subr.mxu0 0.0
    %2601 = vmatpush1.msra.mxu0 0.0
    %2602 = vmatprep.subr.mxu0 0.0
    %2603 = vmatpush1.msra.mxu0 0.0
    %2604 = vmatprep.subr.mxu0 0.0
    %2605 = vmatpush1.msra.mxu0 0.0
    %2606 = vmatprep.subr.mxu0 0.0
    %2607 = vmatpush1.msra.mxu0 0.0
    %2608 = vmatprep.subr.mxu0 0.0
    %2609 = vmatpush1.msra.mxu0 0.0
    %2610 = vmatprep.subr.mxu0 0.0
    %2611 = vmatpush1.msra.mxu0 0.0
    %2612 = vmatprep.subr.mxu0 0.0
    %2613 = vmatpush1.msra.mxu0 0.0
    %2614 = vmatprep.subr.mxu0 0.0
    %2615 = vmatpush1.msra.mxu0 0.0
    %2616 = vmatprep.subr.mxu0 0.0
    %2617 = vmatpush1.msra.mxu0 0.0
    %2618 = vmatprep.subr.mxu0 0.0
    %2619 = vmatpush1.msra.mxu0 0.0
    %2620 = vmatprep.subr.mxu0 0.0
    %2621 = vmatpush1.msra.mxu0 0.0
    %2622 = vmatprep.subr.mxu0 0.0
    %2623 = vmatpush1.msra.mxu0 0.0
    %2624 = vmatprep.subr.mxu0 0.0
    %2625 = vmatpush1.msra.mxu0 0.0
    %2626 = vmatprep.subr.mxu0 0.0
    %2627 = vmatpush1.msra.mxu0 0.0
    %2628 = vmatprep.subr.mxu0 0.0
    %2629 = vmatpush1.msra.mxu0 0.0
    %2630 = vmatprep.subr.mxu0 0.0
    %2631 = vmatpush1.msra.mxu0 0.0
    %2632 = vmatprep.subr.mxu0 0.0
    %2633 = vmatpush1.msra.mxu0 0.0
    %2634 = vmatprep.subr.mxu0 0.0
    %2635 = vmatpush1.msra.mxu0 0.0
    %2636 = vmatprep.subr.mxu0 0.0
    %2637 = vmatpush1.msra.mxu0 0.0
    %2638 = vmatprep.subr.mxu0 0.0
    %2639 = vmatpush1.msra.mxu0 0.0
    %2640 = vmatprep.subr.mxu0 0.0
    %2641 = vmatpush1.msra.mxu0 0.0
    %2642 = vmatprep.subr.mxu0 0.0
    %2643 = vmatpush1.msra.mxu0 0.0
    %2644 = vmatprep.subr.mxu0 0.0
    %2645 = vmatpush1.msra.mxu0 0.0
    %2646 = vmatprep.subr.mxu0 0.0
    %2647 = vmatpush1.msra.mxu0 0.0
    %2648 = vmatprep.subr.mxu0 0.0
    %2649 = vmatpush1.msra.mxu0 0.0
    %2650 = vmatprep.subr.mxu0 0.0
    %2651 = vmatpush1.msra.mxu0 0.0
    %2652 = vmatprep.subr.mxu0 0.0
    %2653 = vmatpush1.msra.mxu0 0.0
    %2654 = vmatprep.subr.mxu0 0.0
    %2655 = vmatpush1.msra.mxu0 0.0
    %2656 = vmatprep.subr.mxu0 0.0
    %2657 = vmatpush1.msra.mxu0 0.0
    %2658 = vmatprep.mubr.f32.mxu0 0.0
    %2659 = vmatmul.mubr.f32.gmra.mrb[0].mxu0 %v2589
    %v2660 = vpop.f32.mrb[0].mxu0
    %v2661 = vadd.f32 0.0, %v2660
    %v2662 = vpop.f32.mrb[0].mxu0
    %2663 = vmatprep.mubr.f32.mxu0 0.0
    %2664 = vmatmul.mubr.f32.gmra.mrb[0].mxu0 %v2592
    %v2665 = vpop.f32.mrb[0].mxu0
    %v2666 = vadd.f32 0.0, %v2665
    %v2667 = vpop.f32.mrb[0].mxu0
    %2668 = vdwg.mxu0
    %2671 = vrot.lane.b32.xlu0 %v2661, 12
    %v2672 = vpop.permute.xlu0 %2671
    %2673 = vrot.lane.b32.xlu0 %v2666, 12
    %v2674 = vpop.permute.xlu0 %2673
    %2677 = vst.msk [vmem:[#allocation2 + $0x10] sm:$0xff] %vm1002, %v2672
    %2678 = vst.msk [vmem:[#allocation2 + $0x18] sm:$0xff] %vm1002, %v2674
    %2679 = vrot.lane.b32.xlu0 %v162, 112
    %v2680 = vpop.permute.xlu0 %2679
    %2681 = vrot.lane.b32.xlu0 %v167, 112
    %v2682 = vpop.permute.xlu0 %2681
    %2683 = vrot.lane.b32.xlu0 %v162, 80
    %v2684 = vpop.permute.xlu0 %2683
    %2685 = vrot.lane.b32.xlu0 %v167, 80
    %v2686 = vpop.permute.xlu0 %2685
    %v2687 = vsel %vm176, %v2680, 0
    %v2689 = vsel %vm176, %v2682, 0
    %v2691 = vsel %vm176, %v2684, 0
    %v2693 = vsel %vm176, %v2686, 0
    %2695 = vmatprep.subr.mxu0 0.0
    %2696 = vmatpush1.xpose.msra.mxu0 %v2691
    %2697 = vmatprep.subr.mxu0 0.0
    %2698 = vmatpush1.xpose.msra.mxu0 %v2693
    %2699 = vmatprep.subr.mxu0 0.0
    %2700 = vmatpush1.xpose.msra.mxu0 0.0
    %2701 = vmatprep.subr.mxu0 0.0
    %2702 = vmatpush1.xpose.msra.mxu0 0.0
    %2703 = vmatprep.subr.mxu0 0.0
    %2704 = vmatpush1.xpose.msra.mxu0 0.0
    %2705 = vmatprep.subr.mxu0 0.0
    %2706 = vmatpush1.xpose.msra.mxu0 0.0
    %2707 = vmatprep.subr.mxu0 0.0
    %2708 = vmatpush1.xpose.msra.mxu0 0.0
    %2709 = vmatprep.subr.mxu0 0.0
    %2710 = vmatpush1.xpose.msra.mxu0 0.0
    %2711 = vmatprep.subr.mxu0 0.0
    %2712 = vmatpush1.xpose.msra.mxu0 0.0
    %2713 = vmatprep.subr.mxu0 0.0
    %2714 = vmatpush1.xpose.msra.mxu0 0.0
    %2715 = vmatprep.subr.mxu0 0.0
    %2716 = vmatpush1.xpose.msra.mxu0 0.0
    %2717 = vmatprep.subr.mxu0 0.0
    %2718 = vmatpush1.xpose.msra.mxu0 0.0
    %2719 = vmatprep.subr.mxu0 0.0
    %2720 = vmatpush1.xpose.msra.mxu0 0.0
    %2721 = vmatprep.subr.mxu0 0.0
    %2722 = vmatpush1.xpose.msra.mxu0 0.0
    %2723 = vmatprep.subr.mxu0 0.0
    %2724 = vmatpush1.xpose.msra.mxu0 0.0
    %2725 = vmatprep.subr.mxu0 0.0
    %2726 = vmatpush1.xpose.msra.mxu0 0.0
    %2727 = vmatprep.subr.mxu0 0.0
    %2728 = vmatpush1.xpose.msra.mxu0 0.0
    %2729 = vmatprep.subr.mxu0 0.0
    %2730 = vmatpush1.xpose.msra.mxu0 0.0
    %2731 = vmatprep.subr.mxu0 0.0
    %2732 = vmatpush1.xpose.msra.mxu0 0.0
    %2733 = vmatprep.subr.mxu0 0.0
    %2734 = vmatpush1.xpose.msra.mxu0 0.0
    %2735 = vmatprep.subr.mxu0 0.0
    %2736 = vmatpush1.xpose.msra.mxu0 0.0
    %2737 = vmatprep.subr.mxu0 0.0
    %2738 = vmatpush1.xpose.msra.mxu0 0.0
    %2739 = vmatprep.subr.mxu0 0.0
    %2740 = vmatpush1.xpose.msra.mxu0 0.0
    %2741 = vmatprep.subr.mxu0 0.0
    %2742 = vmatpush1.xpose.msra.mxu0 0.0
    %2743 = vmatprep.subr.mxu0 0.0
    %2744 = vmatpush1.xpose.msra.mxu0 0.0
    %2745 = vmatprep.subr.mxu0 0.0
    %2746 = vmatpush1.xpose.msra.mxu0 0.0
    %2747 = vmatprep.subr.mxu0 0.0
    %2748 = vmatpush1.xpose.msra.mxu0 0.0
    %2749 = vmatprep.subr.mxu0 0.0
    %2750 = vmatpush1.xpose.msra.mxu0 0.0
    %2751 = vmatprep.subr.mxu0 0.0
    %2752 = vmatpush1.xpose.msra.mxu0 0.0
    %2753 = vmatprep.subr.mxu0 0.0
    %2754 = vmatpush1.xpose.msra.mxu0 0.0
    %2755 = vmatprep.subr.mxu0 0.0
    %2756 = vmatpush1.xpose.msra.mxu0 0.0
    %2757 = vmatprep.subr.mxu0 0.0
    %2758 = vmatpush1.xpose.msra.mxu0 0.0
    %2759 = vmatprep.mubr.f32.mxu0 0.0
    %2760 = vmatmul.mubr.f32.gmra.mrb[0].mxu0 %v2687
    %v2761 = vpop.f32.mrb[0].mxu0
    %v2762 = vadd.f32 0.0, %v2761
    %v2763 = vpop.f32.mrb[0].mxu0
    %2764 = vmatprep.mubr.f32.mxu0 0.0
    %2765 = vmatmul.mubr.f32.gmra.mrb[0].mxu0 %v2689
    %v2766 = vpop.f32.mrb[0].mxu0
    %v2767 = vadd.f32 0.0, %v2766
    %v2768 = vpop.f32.mrb[0].mxu0
    %2769 = vdwg.mxu0
    %v2770 = vsel %vm260, %v2762, -inf
    %2771 = vmax.xlane.f32.xlu0 %v2770
    %v2772 = vpop.xlane.xlu0 %2771
    %v2773 = vsel %vm260, %v2767, -inf
    %2774 = vmax.xlane.f32.xlu0 %v2773
    %v2775 = vpop.xlane.xlu0 %2774
    %v2776 = vsub.f32 %v2762, %v2772
    %v2777 = vsub.f32 %v2767, %v2775
    %v2778 = vmul.f32 %v2776, 1.442695
    %v2779 = vpow.pop %v2778
    %v2780 = vmul.f32 %v2777, 1.442695
    %v2781 = vpow.pop %v2780
    %v2782 = vsel %vm260, %v2779, 0.0
    %2783 = vadd.xlane.f32.xlu0 %v2782
    %v2784 = vpop.xlane.xlu0 %2783
    %v2785 = vsel %vm260, %v2781, 0.0
    %2786 = vadd.xlane.f32.xlu0 %v2785
    %v2787 = vpop.xlane.xlu0 %2786
    %v2788 = vrcp.pop %v2784
    %v2789 = vrcp.pop %v2787
    %v2790 = vmul.f32 %v2779, %v2788
    %v2791 = vmul.f32 %v2781, %v2789
    %2792 = vrot.lane.b32.xlu0 %v162, 48
    %v2793 = vpop.permute.xlu0 %2792
    %2794 = vrot.lane.b32.xlu0 %v167, 48
    %v2795 = vpop.permute.xlu0 %2794
    %v2799 = vsel %vm260, %v2790, 0
    %v2802 = vsel %vm260, %v2791, 0
    %2804 = vmatprep.subr.mxu0 0.0
    %2805 = vmatpush1.msra.mxu0 %v2793
    %2806 = vmatprep.subr.mxu0 0.0
    %2807 = vmatpush1.msra.mxu0 %v2795
    %2808 = vmatprep.subr.mxu0 0.0
    %2809 = vmatpush1.msra.mxu0 0.0
    %2810 = vmatprep.subr.mxu0 0.0
    %2811 = vmatpush1.msra.mxu0 0.0
    %2812 = vmatprep.subr.mxu0 0.0
    %2813 = vmatpush1.msra.mxu0 0.0
    %2814 = vmatprep.subr.mxu0 0.0
    %2815 = vmatpush1.msra.mxu0 0.0
    %2816 = vmatprep.subr.mxu0 0.0
    %2817 = vmatpush1.msra.mxu0 0.0
    %2818 = vmatprep.subr.mxu0 0.0
    %2819 = vmatpush1.msra.mxu0 0.0
    %2820 = vmatprep.subr.mxu0 0.0
    %2821 = vmatpush1.msra.mxu0 0.0
    %2822 = vmatprep.subr.mxu0 0.0
    %2823 = vmatpush1.msra.mxu0 0.0
    %2824 = vmatprep.subr.mxu0 0.0
    %2825 = vmatpush1.msra.mxu0 0.0
    %2826 = vmatprep.subr.mxu0 0.0
    %2827 = vmatpush1.msra.mxu0 0.0
    %2828 = vmatprep.subr.mxu0 0.0
    %2829 = vmatpush1.msra.mxu0 0.0
    %2830 = vmatprep.subr.mxu0 0.0
    %2831 = vmatpush1.msra.mxu0 0.0
    %2832 = vmatprep.subr.mxu0 0.0
    %2833 = vmatpush1.msra.mxu0 0.0
    %2834 = vmatprep.subr.mxu0 0.0
    %2835 = vmatpush1.msra.mxu0 0.0
    %2836 = vmatprep.subr.mxu0 0.0
    %2837 = vmatpush1.msra.mxu0 0.0
    %2838 = vmatprep.subr.mxu0 0.0
    %2839 = vmatpush1.msra.mxu0 0.0
    %2840 = vmatprep.subr.mxu0 0.0
    %2841 = vmatpush1.msra.mxu0 0.0
    %2842 = vmatprep.subr.mxu0 0.0
    %2843 = vmatpush1.msra.mxu0 0.0
    %2844 = vmatprep.subr.mxu0 0.0
    %2845 = vmatpush1.msra.mxu0 0.0
    %2846 = vmatprep.subr.mxu0 0.0
    %2847 = vmatpush1.msra.mxu0 0.0
    %2848 = vmatprep.subr.mxu0 0.0
    %2849 = vmatpush1.msra.mxu0 0.0
    %2850 = vmatprep.subr.mxu0 0.0
    %2851 = vmatpush1.msra.mxu0 0.0
    %2852 = vmatprep.subr.mxu0 0.0
    %2853 = vmatpush1.msra.mxu0 0.0
    %2854 = vmatprep.subr.mxu0 0.0
    %2855 = vmatpush1.msra.mxu0 0.0
    %2856 = vmatprep.subr.mxu0 0.0
    %2857 = vmatpush1.msra.mxu0 0.0
    %2858 = vmatprep.subr.mxu0 0.0
    %2859 = vmatpush1.msra.mxu0 0.0
    %2860 = vmatprep.subr.mxu0 0.0
    %2861 = vmatpush1.msra.mxu0 0.0
    %2862 = vmatprep.subr.mxu0 0.0
    %2863 = vmatpush1.msra.mxu0 0.0
    %2864 = vmatprep.subr.mxu0 0.0
    %2865 = vmatpush1.msra.mxu0 0.0
    %2866 = vmatprep.subr.mxu0 0.0
    %2867 = vmatpush1.msra.mxu0 0.0
    %2868 = vmatprep.mubr.f32.mxu0 0.0
    %2869 = vmatmul.mubr.f32.gmra.mrb[0].mxu0 %v2799
    %v2870 = vpop.f32.mrb[0].mxu0
    %v2871 = vadd.f32 0.0, %v2870
    %v2872 = vpop.f32.mrb[0].mxu0
    %2873 = vmatprep.mubr.f32.mxu0 0.0
    %2874 = vmatmul.mubr.f32.gmra.mrb[0].mxu0 %v2802
    %v2875 = vpop.f32.mrb[0].mxu0
    %v2876 = vadd.f32 0.0, %v2875
    %v2877 = vpop.f32.mrb[0].mxu0
    %2878 = vdwg.mxu0
    %2881 = vrot.lane.b32.xlu0 %v2871, 16
    %v2882 = vpop.permute.xlu0 %2881
    %2883 = vrot.lane.b32.xlu0 %v2876, 16
    %v2884 = vpop.permute.xlu0 %2883
    %2887 = vst.msk [vmem:[#allocation2 + $0x10] sm:$0xff] %vm1213, %v2882
    %2888 = vst.msk [vmem:[#allocation2 + $0x18] sm:$0xff] %vm1213, %v2884
    %2889 = vrot.lane.b32.xlu0 %v162, 108
    %v2890 = vpop.permute.xlu0 %2889
    %2891 = vrot.lane.b32.xlu0 %v167, 108
    %v2892 = vpop.permute.xlu0 %2891
    %2893 = vrot.lane.b32.xlu0 %v162, 76
    %v2894 = vpop.permute.xlu0 %2893
    %2895 = vrot.lane.b32.xlu0 %v167, 76
    %v2896 = vpop.permute.xlu0 %2895
    %v2897 = vsel %vm176, %v2890, 0
    %v2899 = vsel %vm176, %v2892, 0
    %v2901 = vsel %vm176, %v2894, 0
    %v2903 = vsel %vm176, %v2896, 0
    %2905 = vmatprep.subr.mxu0 0.0
    %2906 = vmatpush1.xpose.msra.mxu0 %v2901
    %2907 = vmatprep.subr.mxu0 0.0
    %2908 = vmatpush1.xpose.msra.mxu0 %v2903
    %2909 = vmatprep.subr.mxu0 0.0
    %2910 = vmatpush1.xpose.msra.mxu0 0.0
    %2911 = vmatprep.subr.mxu0 0.0
    %2912 = vmatpush1.xpose.msra.mxu0 0.0
    %2913 = vmatprep.subr.mxu0 0.0
    %2914 = vmatpush1.xpose.msra.mxu0 0.0
    %2915 = vmatprep.subr.mxu0 0.0
    %2916 = vmatpush1.xpose.msra.mxu0 0.0
    %2917 = vmatprep.subr.mxu0 0.0
    %2918 = vmatpush1.xpose.msra.mxu0 0.0
    %2919 = vmatprep.subr.mxu0 0.0
    %2920 = vmatpush1.xpose.msra.mxu0 0.0
    %2921 = vmatprep.subr.mxu0 0.0
    %2922 = vmatpush1.xpose.msra.mxu0 0.0
    %2923 = vmatprep.subr.mxu0 0.0
    %2924 = vmatpush1.xpose.msra.mxu0 0.0
    %2925 = vmatprep.subr.mxu0 0.0
    %2926 = vmatpush1.xpose.msra.mxu0 0.0
    %2927 = vmatprep.subr.mxu0 0.0
    %2928 = vmatpush1.xpose.msra.mxu0 0.0
    %2929 = vmatprep.subr.mxu0 0.0
    %2930 = vmatpush1.xpose.msra.mxu0 0.0
    %2931 = vmatprep.subr.mxu0 0.0
    %2932 = vmatpush1.xpose.msra.mxu0 0.0
    %2933 = vmatprep.subr.mxu0 0.0
    %2934 = vmatpush1.xpose.msra.mxu0 0.0
    %2935 = vmatprep.subr.mxu0 0.0
    %2936 = vmatpush1.xpose.msra.mxu0 0.0
    %2937 = vmatprep.subr.mxu0 0.0
    %2938 = vmatpush1.xpose.msra.mxu0 0.0
    %2939 = vmatprep.subr.mxu0 0.0
    %2940 = vmatpush1.xpose.msra.mxu0 0.0
    %2941 = vmatprep.subr.mxu0 0.0
    %2942 = vmatpush1.xpose.msra.mxu0 0.0
    %2943 = vmatprep.subr.mxu0 0.0
    %2944 = vmatpush1.xpose.msra.mxu0 0.0
    %2945 = vmatprep.subr.mxu0 0.0
    %2946 = vmatpush1.xpose.msra.mxu0 0.0
    %2947 = vmatprep.subr.mxu0 0.0
    %2948 = vmatpush1.xpose.msra.mxu0 0.0
    %2949 = vmatprep.subr.mxu0 0.0
    %2950 = vmatpush1.xpose.msra.mxu0 0.0
    %2951 = vmatprep.subr.mxu0 0.0
    %2952 = vmatpush1.xpose.msra.mxu0 0.0
    %2953 = vmatprep.subr.mxu0 0.0
    %2954 = vmatpush1.xpose.msra.mxu0 0.0
    %2955 = vmatprep.subr.mxu0 0.0
    %2956 = vmatpush1.xpose.msra.mxu0 0.0
    %2957 = vmatprep.subr.mxu0 0.0
    %2958 = vmatpush1.xpose.msra.mxu0 0.0
    %2959 = vmatprep.subr.mxu0 0.0
    %2960 = vmatpush1.xpose.msra.mxu0 0.0
    %2961 = vmatprep.subr.mxu0 0.0
    %2962 = vmatpush1.xpose.msra.mxu0 0.0
    %2963 = vmatprep.subr.mxu0 0.0
    %2964 = vmatpush1.xpose.msra.mxu0 0.0
    %2965 = vmatprep.subr.mxu0 0.0
    %2966 = vmatpush1.xpose.msra.mxu0 0.0
    %2967 = vmatprep.subr.mxu0 0.0
    %2968 = vmatpush1.xpose.msra.mxu0 0.0
    %2969 = vmatprep.mubr.f32.mxu0 0.0
    %2970 = vmatmul.mubr.f32.gmra.mrb[0].mxu0 %v2897
    %v2971 = vpop.f32.mrb[0].mxu0
    %v2972 = vadd.f32 0.0, %v2971
    %v2973 = vpop.f32.mrb[0].mxu0
    %2974 = vmatprep.mubr.f32.mxu0 0.0
    %2975 = vmatmul.mubr.f32.gmra.mrb[0].mxu0 %v2899
    %v2976 = vpop.f32.mrb[0].mxu0
    %v2977 = vadd.f32 0.0, %v2976
    %v2978 = vpop.f32.mrb[0].mxu0
    %2979 = vdwg.mxu0
    %v2980 = vsel %vm260, %v2972, -inf
    %2981 = vmax.xlane.f32.xlu0 %v2980
    %v2982 = vpop.xlane.xlu0 %2981
    %v2983 = vsel %vm260, %v2977, -inf
    %2984 = vmax.xlane.f32.xlu0 %v2983
    %v2985 = vpop.xlane.xlu0 %2984
    %v2986 = vsub.f32 %v2972, %v2982
    %v2987 = vsub.f32 %v2977, %v2985
    %v2988 = vmul.f32 %v2986, 1.442695
    %v2989 = vpow.pop %v2988
    %v2990 = vmul.f32 %v2987, 1.442695
    %v2991 = vpow.pop %v2990
    %v2992 = vsel %vm260, %v2989, 0.0
    %2993 = vadd.xlane.f32.xlu0 %v2992
    %v2994 = vpop.xlane.xlu0 %2993
    %v2995 = vsel %vm260, %v2991, 0.0
    %2996 = vadd.xlane.f32.xlu0 %v2995
    %v2997 = vpop.xlane.xlu0 %2996
    %v2998 = vrcp.pop %v2994
    %v2999 = vrcp.pop %v2997
    %v3000 = vmul.f32 %v2989, %v2998
    %v3001 = vmul.f32 %v2991, %v2999
    %3002 = vrot.lane.b32.xlu0 %v162, 44
    %v3003 = vpop.permute.xlu0 %3002
    %3004 = vrot.lane.b32.xlu0 %v167, 44
    %v3005 = vpop.permute.xlu0 %3004
    %v3009 = vsel %vm260, %v3000, 0
    %v3012 = vsel %vm260, %v3001, 0
    %3014 = vmatprep.subr.mxu0 0.0
    %3015 = vmatpush1.msra.mxu0 %v3003
    %3016 = vmatprep.subr.mxu0 0.0
    %3017 = vmatpush1.msra.mxu0 %v3005
    %3018 = vmatprep.subr.mxu0 0.0
    %3019 = vmatpush1.msra.mxu0 0.0
    %3020 = vmatprep.subr.mxu0 0.0
    %3021 = vmatpush1.msra.mxu0 0.0
    %3022 = vmatprep.subr.mxu0 0.0
    %3023 = vmatpush1.msra.mxu0 0.0
    %3024 = vmatprep.subr.mxu0 0.0
    %3025 = vmatpush1.msra.mxu0 0.0
    %3026 = vmatprep.subr.mxu0 0.0
    %3027 = vmatpush1.msra.mxu0 0.0
    %3028 = vmatprep.subr.mxu0 0.0
    %3029 = vmatpush1.msra.mxu0 0.0
    %3030 = vmatprep.subr.mxu0 0.0
    %3031 = vmatpush1.msra.mxu0 0.0
    %3032 = vmatprep.subr.mxu0 0.0
    %3033 = vmatpush1.msra.mxu0 0.0
    %3034 = vmatprep.subr.mxu0 0.0
    %3035 = vmatpush1.msra.mxu0 0.0
    %3036 = vmatprep.subr.mxu0 0.0
    %3037 = vmatpush1.msra.mxu0 0.0
    %3038 = vmatprep.subr.mxu0 0.0
    %3039 = vmatpush1.msra.mxu0 0.0
    %3040 = vmatprep.subr.mxu0 0.0
    %3041 = vmatpush1.msra.mxu0 0.0
    %3042 = vmatprep.subr.mxu0 0.0
    %3043 = vmatpush1.msra.mxu0 0.0
    %3044 = vmatprep.subr.mxu0 0.0
    %3045 = vmatpush1.msra.mxu0 0.0
    %3046 = vmatprep.subr.mxu0 0.0
    %3047 = vmatpush1.msra.mxu0 0.0
    %3048 = vmatprep.subr.mxu0 0.0
    %3049 = vmatpush1.msra.mxu0 0.0
    %3050 = vmatprep.subr.mxu0 0.0
    %3051 = vmatpush1.msra.mxu0 0.0
    %3052 = vmatprep.subr.mxu0 0.0
    %3053 = vmatpush1.msra.mxu0 0.0
    %3054 = vmatprep.subr.mxu0 0.0
    %3055 = vmatpush1.msra.mxu0 0.0
    %3056 = vmatprep.subr.mxu0 0.0
    %3057 = vmatpush1.msra.mxu0 0.0
    %3058 = vmatprep.subr.mxu0 0.0
    %3059 = vmatpush1.msra.mxu0 0.0
    %3060 = vmatprep.subr.mxu0 0.0
    %3061 = vmatpush1.msra.mxu0 0.0
    %3062 = vmatprep.subr.mxu0 0.0
    %3063 = vmatpush1.msra.mxu0 0.0
    %3064 = vmatprep.subr.mxu0 0.0
    %3065 = vmatpush1.msra.mxu0 0.0
    %3066 = vmatprep.subr.mxu0 0.0
    %3067 = vmatpush1.msra.mxu0 0.0
    %3068 = vmatprep.subr.mxu0 0.0
    %3069 = vmatpush1.msra.mxu0 0.0
    %3070 = vmatprep.subr.mxu0 0.0
    %3071 = vmatpush1.msra.mxu0 0.0
    %3072 = vmatprep.subr.mxu0 0.0
    %3073 = vmatpush1.msra.mxu0 0.0
    %3074 = vmatprep.subr.mxu0 0.0
    %3075 = vmatpush1.msra.mxu0 0.0
    %3076 = vmatprep.subr.mxu0 0.0
    %3077 = vmatpush1.msra.mxu0 0.0
    %3078 = vmatprep.mubr.f32.mxu0 0.0
    %3079 = vmatmul.mubr.f32.gmra.mrb[0].mxu0 %v3009
    %v3080 = vpop.f32.mrb[0].mxu0
    %v3081 = vadd.f32 0.0, %v3080
    %v3082 = vpop.f32.mrb[0].mxu0
    %3083 = vmatprep.mubr.f32.mxu0 0.0
    %3084 = vmatmul.mubr.f32.gmra.mrb[0].mxu0 %v3012
    %v3085 = vpop.f32.mrb[0].mxu0
    %v3086 = vadd.f32 0.0, %v3085
    %v3087 = vpop.f32.mrb[0].mxu0
    %3088 = vdwg.mxu0
    %3091 = vrot.lane.b32.xlu0 %v3081, 20
    %v3092 = vpop.permute.xlu0 %3091
    %3093 = vrot.lane.b32.xlu0 %v3086, 20
    %v3094 = vpop.permute.xlu0 %3093
    %3097 = vst.msk [vmem:[#allocation2 + $0x10] sm:$0xff] %vm1424, %v3092
    %3098 = vst.msk [vmem:[#allocation2 + $0x18] sm:$0xff] %vm1424, %v3094
    %3099 = vrot.lane.b32.xlu0 %v162, 104
    %v3100 = vpop.permute.xlu0 %3099
    %3101 = vrot.lane.b32.xlu0 %v167, 104
    %v3102 = vpop.permute.xlu0 %3101
    %3103 = vrot.lane.b32.xlu0 %v162, 72
    %v3104 = vpop.permute.xlu0 %3103
    %3105 = vrot.lane.b32.xlu0 %v167, 72
    %v3106 = vpop.permute.xlu0 %3105
    %v3107 = vsel %vm176, %v3100, 0
    %v3109 = vsel %vm176, %v3102, 0
    %v3111 = vsel %vm176, %v3104, 0
    %v3113 = vsel %vm176, %v3106, 0
    %3115 = vmatprep.subr.mxu0 0.0
    %3116 = vmatpush1.xpose.msra.mxu0 %v3111
    %3117 = vmatprep.subr.mxu0 0.0
    %3118 = vmatpush1.xpose.msra.mxu0 %v3113
    %3119 = vmatprep.subr.mxu0 0.0
    %3120 = vmatpush1.xpose.msra.mxu0 0.0
    %3121 = vmatprep.subr.mxu0 0.0
    %3122 = vmatpush1.xpose.msra.mxu0 0.0
    %3123 = vmatprep.subr.mxu0 0.0
    %3124 = vmatpush1.xpose.msra.mxu0 0.0
    %3125 = vmatprep.subr.mxu0 0.0
    %3126 = vmatpush1.xpose.msra.mxu0 0.0
    %3127 = vmatprep.subr.mxu0 0.0
    %3128 = vmatpush1.xpose.msra.mxu0 0.0
    %3129 = vmatprep.subr.mxu0 0.0
    %3130 = vmatpush1.xpose.msra.mxu0 0.0
    %3131 = vmatprep.subr.mxu0 0.0
    %3132 = vmatpush1.xpose.msra.mxu0 0.0
    %3133 = vmatprep.subr.mxu0 0.0
    %3134 = vmatpush1.xpose.msra.mxu0 0.0
    %3135 = vmatprep.subr.mxu0 0.0
    %3136 = vmatpush1.xpose.msra.mxu0 0.0
    %3137 = vmatprep.subr.mxu0 0.0
    %3138 = vmatpush1.xpose.msra.mxu0 0.0
    %3139 = vmatprep.subr.mxu0 0.0
    %3140 = vmatpush1.xpose.msra.mxu0 0.0
    %3141 = vmatprep.subr.mxu0 0.0
    %3142 = vmatpush1.xpose.msra.mxu0 0.0
    %3143 = vmatprep.subr.mxu0 0.0
    %3144 = vmatpush1.xpose.msra.mxu0 0.0
    %3145 = vmatprep.subr.mxu0 0.0
    %3146 = vmatpush1.xpose.msra.mxu0 0.0
    %3147 = vmatprep.subr.mxu0 0.0
    %3148 = vmatpush1.xpose.msra.mxu0 0.0
    %3149 = vmatprep.subr.mxu0 0.0
    %3150 = vmatpush1.xpose.msra.mxu0 0.0
    %3151 = vmatprep.subr.mxu0 0.0
    %3152 = vmatpush1.xpose.msra.mxu0 0.0
    %3153 = vmatprep.subr.mxu0 0.0
    %3154 = vmatpush1.xpose.msra.mxu0 0.0
    %3155 = vmatprep.subr.mxu0 0.0
    %3156 = vmatpush1.xpose.msra.mxu0 0.0
    %3157 = vmatprep.subr.mxu0 0.0
    %3158 = vmatpush1.xpose.msra.mxu0 0.0
    %3159 = vmatprep.subr.mxu0 0.0
    %3160 = vmatpush1.xpose.msra.mxu0 0.0
    %3161 = vmatprep.subr.mxu0 0.0
    %3162 = vmatpush1.xpose.msra.mxu0 0.0
    %3163 = vmatprep.subr.mxu0 0.0
    %3164 = vmatpush1.xpose.msra.mxu0 0.0
    %3165 = vmatprep.subr.mxu0 0.0
    %3166 = vmatpush1.xpose.msra.mxu0 0.0
    %3167 = vmatprep.subr.mxu0 0.0
    %3168 = vmatpush1.xpose.msra.mxu0 0.0
    %3169 = vmatprep.subr.mxu0 0.0
    %3170 = vmatpush1.xpose.msra.mxu0 0.0
    %3171 = vmatprep.subr.mxu0 0.0
    %3172 = vmatpush1.xpose.msra.mxu0 0.0
    %3173 = vmatprep.subr.mxu0 0.0
    %3174 = vmatpush1.xpose.msra.mxu0 0.0
    %3175 = vmatprep.subr.mxu0 0.0
    %3176 = vmatpush1.xpose.msra.mxu0 0.0
    %3177 = vmatprep.subr.mxu0 0.0
    %3178 = vmatpush1.xpose.msra.mxu0 0.0
    %3179 = vmatprep.mubr.f32.mxu0 0.0
    %3180 = vmatmul.mubr.f32.gmra.mrb[0].mxu0 %v3107
    %v3181 = vpop.f32.mrb[0].mxu0
    %v3182 = vadd.f32 0.0, %v3181
    %v3183 = vpop.f32.mrb[0].mxu0
    %3184 = vmatprep.mubr.f32.mxu0 0.0
    %3185 = vmatmul.mubr.f32.gmra.mrb[0].mxu0 %v3109
    %v3186 = vpop.f32.mrb[0].mxu0
    %v3187 = vadd.f32 0.0, %v3186
    %v3188 = vpop.f32.mrb[0].mxu0
    %3189 = vdwg.mxu0
    %v3190 = vsel %vm260, %v3182, -inf
    %3191 = vmax.xlane.f32.xlu0 %v3190
    %v3192 = vpop.xlane.xlu0 %3191
    %v3193 = vsel %vm260, %v3187, -inf
    %3194 = vmax.xlane.f32.xlu0 %v3193
    %v3195 = vpop.xlane.xlu0 %3194
    %v3196 = vsub.f32 %v3182, %v3192
    %v3197 = vsub.f32 %v3187, %v3195
    %v3198 = vmul.f32 %v3196, 1.442695
    %v3199 = vpow.pop %v3198
    %v3200 = vmul.f32 %v3197, 1.442695
    %v3201 = vpow.pop %v3200
    %v3202 = vsel %vm260, %v3199, 0.0
    %3203 = vadd.xlane.f32.xlu0 %v3202
    %v3204 = vpop.xlane.xlu0 %3203
    %v3205 = vsel %vm260, %v3201, 0.0
    %3206 = vadd.xlane.f32.xlu0 %v3205
    %v3207 = vpop.xlane.xlu0 %3206
    %v3208 = vrcp.pop %v3204
    %v3209 = vrcp.pop %v3207
    %v3210 = vmul.f32 %v3199, %v3208
    %v3211 = vmul.f32 %v3201, %v3209
    %3212 = vrot.lane.b32.xlu0 %v162, 40
    %v3213 = vpop.permute.xlu0 %3212
    %3214 = vrot.lane.b32.xlu0 %v167, 40
    %v3215 = vpop.permute.xlu0 %3214
    %v3219 = vsel %vm260, %v3210, 0
    %v3222 = vsel %vm260, %v3211, 0
    %3224 = vmatprep.subr.mxu0 0.0
    %3225 = vmatpush1.msra.mxu0 %v3213
    %3226 = vmatprep.subr.mxu0 0.0
    %3227 = vmatpush1.msra.mxu0 %v3215
    %3228 = vmatprep.subr.mxu0 0.0
    %3229 = vmatpush1.msra.mxu0 0.0
    %3230 = vmatprep.subr.mxu0 0.0
    %3231 = vmatpush1.msra.mxu0 0.0
    %3232 = vmatprep.subr.mxu0 0.0
    %3233 = vmatpush1.msra.mxu0 0.0
    %3234 = vmatprep.subr.mxu0 0.0
    %3235 = vmatpush1.msra.mxu0 0.0
    %3236 = vmatprep.subr.mxu0 0.0
    %3237 = vmatpush1.msra.mxu0 0.0
    %3238 = vmatprep.subr.mxu0 0.0
    %3239 = vmatpush1.msra.mxu0 0.0
    %3240 = vmatprep.subr.mxu0 0.0
    %3241 = vmatpush1.msra.mxu0 0.0
    %3242 = vmatprep.subr.mxu0 0.0
    %3243 = vmatpush1.msra.mxu0 0.0
    %3244 = vmatprep.subr.mxu0 0.0
    %3245 = vmatpush1.msra.mxu0 0.0
    %3246 = vmatprep.subr.mxu0 0.0
    %3247 = vmatpush1.msra.mxu0 0.0
    %3248 = vmatprep.subr.mxu0 0.0
    %3249 = vmatpush1.msra.mxu0 0.0
    %3250 = vmatprep.subr.mxu0 0.0
    %3251 = vmatpush1.msra.mxu0 0.0
    %3252 = vmatprep.subr.mxu0 0.0
    %3253 = vmatpush1.msra.mxu0 0.0
    %3254 = vmatprep.subr.mxu0 0.0
    %3255 = vmatpush1.msra.mxu0 0.0
    %3256 = vmatprep.subr.mxu0 0.0
    %3257 = vmatpush1.msra.mxu0 0.0
    %3258 = vmatprep.subr.mxu0 0.0
    %3259 = vmatpush1.msra.mxu0 0.0
    %3260 = vmatprep.subr.mxu0 0.0
    %3261 = vmatpush1.msra.mxu0 0.0
    %3262 = vmatprep.subr.mxu0 0.0
    %3263 = vmatpush1.msra.mxu0 0.0
    %3264 = vmatprep.subr.mxu0 0.0
    %3265 = vmatpush1.msra.mxu0 0.0
    %3266 = vmatprep.subr.mxu0 0.0
    %3267 = vmatpush1.msra.mxu0 0.0
    %3268 = vmatprep.subr.mxu0 0.0
    %3269 = vmatpush1.msra.mxu0 0.0
    %3270 = vmatprep.subr.mxu0 0.0
    %3271 = vmatpush1.msra.mxu0 0.0
    %3272 = vmatprep.subr.mxu0 0.0
    %3273 = vmatpush1.msra.mxu0 0.0
    %3274 = vmatprep.subr.mxu0 0.0
    %3275 = vmatpush1.msra.mxu0 0.0
    %3276 = vmatprep.subr.mxu0 0.0
    %3277 = vmatpush1.msra.mxu0 0.0
    %3278 = vmatprep.subr.mxu0 0.0
    %3279 = vmatpush1.msra.mxu0 0.0
    %3280 = vmatprep.subr.mxu0 0.0
    %3281 = vmatpush1.msra.mxu0 0.0
    %3282 = vmatprep.subr.mxu0 0.0
    %3283 = vmatpush1.msra.mxu0 0.0
    %3284 = vmatprep.subr.mxu0 0.0
    %3285 = vmatpush1.msra.mxu0 0.0
    %3286 = vmatprep.subr.mxu0 0.0
    %3287 = vmatpush1.msra.mxu0 0.0
    %3288 = vmatprep.mubr.f32.mxu0 0.0
    %3289 = vmatmul.mubr.f32.gmra.mrb[0].mxu0 %v3219
    %v3290 = vpop.f32.mrb[0].mxu0
    %v3291 = vadd.f32 0.0, %v3290
    %v3292 = vpop.f32.mrb[0].mxu0
    %3293 = vmatprep.mubr.f32.mxu0 0.0
    %3294 = vmatmul.mubr.f32.gmra.mrb[0].mxu0 %v3222
    %v3295 = vpop.f32.mrb[0].mxu0
    %v3296 = vadd.f32 0.0, %v3295
    %v3297 = vpop.f32.mrb[0].mxu0
    %3298 = vdwg.mxu0
    %3301 = vrot.lane.b32.xlu0 %v3291, 24
    %v3302 = vpop.permute.xlu0 %3301
    %3303 = vrot.lane.b32.xlu0 %v3296, 24
    %v3304 = vpop.permute.xlu0 %3303
    %3307 = vst.msk [vmem:[#allocation2 + $0x10] sm:$0xff] %vm1635, %v3302
    %3308 = vst.msk [vmem:[#allocation2 + $0x18] sm:$0xff] %vm1635, %v3304
    %3309 = vrot.lane.b32.xlu0 %v162, 100
    %v3310 = vpop.permute.xlu0 %3309
    %3311 = vrot.lane.b32.xlu0 %v167, 100
    %v3312 = vpop.permute.xlu0 %3311
    %3313 = vrot.lane.b32.xlu0 %v162, 68
    %v3314 = vpop.permute.xlu0 %3313
    %3315 = vrot.lane.b32.xlu0 %v167, 68
    %v3316 = vpop.permute.xlu0 %3315
    %v3317 = vsel %vm176, %v3310, 0
    %v3319 = vsel %vm176, %v3312, 0
    %v3321 = vsel %vm176, %v3314, 0
    %v3323 = vsel %vm176, %v3316, 0
    %3325 = vmatprep.subr.mxu0 0.0
    %3326 = vmatpush1.xpose.msra.mxu0 %v3321
    %3327 = vmatprep.subr.mxu0 0.0
    %3328 = vmatpush1.xpose.msra.mxu0 %v3323
    %3329 = vmatprep.subr.mxu0 0.0
    %3330 = vmatpush1.xpose.msra.mxu0 0.0
    %3331 = vmatprep.subr.mxu0 0.0
    %3332 = vmatpush1.xpose.msra.mxu0 0.0
    %3333 = vmatprep.subr.mxu0 0.0
    %3334 = vmatpush1.xpose.msra.mxu0 0.0
    %3335 = vmatprep.subr.mxu0 0.0
    %3336 = vmatpush1.xpose.msra.mxu0 0.0
    %3337 = vmatprep.subr.mxu0 0.0
    %3338 = vmatpush1.xpose.msra.mxu0 0.0
    %3339 = vmatprep.subr.mxu0 0.0
    %3340 = vmatpush1.xpose.msra.mxu0 0.0
    %3341 = vmatprep.subr.mxu0 0.0
    %3342 = vmatpush1.xpose.msra.mxu0 0.0
    %3343 = vmatprep.subr.mxu0 0.0
    %3344 = vmatpush1.xpose.msra.mxu0 0.0
    %3345 = vmatprep.subr.mxu0 0.0
    %3346 = vmatpush1.xpose.msra.mxu0 0.0
    %3347 = vmatprep.subr.mxu0 0.0
    %3348 = vmatpush1.xpose.msra.mxu0 0.0
    %3349 = vmatprep.subr.mxu0 0.0
    %3350 = vmatpush1.xpose.msra.mxu0 0.0
    %3351 = vmatprep.subr.mxu0 0.0
    %3352 = vmatpush1.xpose.msra.mxu0 0.0
    %3353 = vmatprep.subr.mxu0 0.0
    %3354 = vmatpush1.xpose.msra.mxu0 0.0
    %3355 = vmatprep.subr.mxu0 0.0
    %3356 = vmatpush1.xpose.msra.mxu0 0.0
    %3357 = vmatprep.subr.mxu0 0.0
    %3358 = vmatpush1.xpose.msra.mxu0 0.0
    %3359 = vmatprep.subr.mxu0 0.0
    %3360 = vmatpush1.xpose.msra.mxu0 0.0
    %3361 = vmatprep.subr.mxu0 0.0
    %3362 = vmatpush1.xpose.msra.mxu0 0.0
    %3363 = vmatprep.subr.mxu0 0.0
    %3364 = vmatpush1.xpose.msra.mxu0 0.0
    %3365 = vmatprep.subr.mxu0 0.0
    %3366 = vmatpush1.xpose.msra.mxu0 0.0
    %3367 = vmatprep.subr.mxu0 0.0
    %3368 = vmatpush1.xpose.msra.mxu0 0.0
    %3369 = vmatprep.subr.mxu0 0.0
    %3370 = vmatpush1.xpose.msra.mxu0 0.0
    %3371 = vmatprep.subr.mxu0 0.0
    %3372 = vmatpush1.xpose.msra.mxu0 0.0
    %3373 = vmatprep.subr.mxu0 0.0
    %3374 = vmatpush1.xpose.msra.mxu0 0.0
    %3375 = vmatprep.subr.mxu0 0.0
    %3376 = vmatpush1.xpose.msra.mxu0 0.0
    %3377 = vmatprep.subr.mxu0 0.0
    %3378 = vmatpush1.xpose.msra.mxu0 0.0
    %3379 = vmatprep.subr.mxu0 0.0
    %3380 = vmatpush1.xpose.msra.mxu0 0.0
    %3381 = vmatprep.subr.mxu0 0.0
    %3382 = vmatpush1.xpose.msra.mxu0 0.0
    %3383 = vmatprep.subr.mxu0 0.0
    %3384 = vmatpush1.xpose.msra.mxu0 0.0
    %3385 = vmatprep.subr.mxu0 0.0
    %3386 = vmatpush1.xpose.msra.mxu0 0.0
    %3387 = vmatprep.subr.mxu0 0.0
    %3388 = vmatpush1.xpose.msra.mxu0 0.0
    %3389 = vmatprep.mubr.f32.mxu0 0.0
    %3390 = vmatmul.mubr.f32.gmra.mrb[0].mxu0 %v3317
    %v3391 = vpop.f32.mrb[0].mxu0
    %v3392 = vadd.f32 0.0, %v3391
    %v3393 = vpop.f32.mrb[0].mxu0
    %3394 = vmatprep.mubr.f32.mxu0 0.0
    %3395 = vmatmul.mubr.f32.gmra.mrb[0].mxu0 %v3319
    %v3396 = vpop.f32.mrb[0].mxu0
    %v3397 = vadd.f32 0.0, %v3396
    %v3398 = vpop.f32.mrb[0].mxu0
    %3399 = vdwg.mxu0
    %v3400 = vsel %vm260, %v3392, -inf
    %3401 = vmax.xlane.f32.xlu0 %v3400
    %v3402 = vpop.xlane.xlu0 %3401
    %v3403 = vsel %vm260, %v3397, -inf
    %3404 = vmax.xlane.f32.xlu0 %v3403
    %v3405 = vpop.xlane.xlu0 %3404
    %v3406 = vsub.f32 %v3392, %v3402
    %v3407 = vsub.f32 %v3397, %v3405
    %v3408 = vmul.f32 %v3406, 1.442695
    %v3409 = vpow.pop %v3408
    %v3410 = vmul.f32 %v3407, 1.442695
    %v3411 = vpow.pop %v3410
    %v3412 = vsel %vm260, %v3409, 0.0
    %3413 = vadd.xlane.f32.xlu0 %v3412
    %v3414 = vpop.xlane.xlu0 %3413
    %v3415 = vsel %vm260, %v3411, 0.0
    %3416 = vadd.xlane.f32.xlu0 %v3415
    %v3417 = vpop.xlane.xlu0 %3416
    %v3418 = vrcp.pop %v3414
    %v3419 = vrcp.pop %v3417
    %v3420 = vmul.f32 %v3409, %v3418
    %v3421 = vmul.f32 %v3411, %v3419
    %3422 = vrot.lane.b32.xlu0 %v162, 36
    %v3423 = vpop.permute.xlu0 %3422
    %3424 = vrot.lane.b32.xlu0 %v167, 36
    %v3425 = vpop.permute.xlu0 %3424
    %v3429 = vsel %vm260, %v3420, 0
    %v3432 = vsel %vm260, %v3421, 0
    %3434 = vmatprep.subr.mxu0 0.0
    %3435 = vmatpush1.msra.mxu0 %v3423
    %3436 = vmatprep.subr.mxu0 0.0
    %3437 = vmatpush1.msra.mxu0 %v3425
    %3438 = vmatprep.subr.mxu0 0.0
    %3439 = vmatpush1.msra.mxu0 0.0
    %3440 = vmatprep.subr.mxu0 0.0
    %3441 = vmatpush1.msra.mxu0 0.0
    %3442 = vmatprep.subr.mxu0 0.0
    %3443 = vmatpush1.msra.mxu0 0.0
    %3444 = vmatprep.subr.mxu0 0.0
    %3445 = vmatpush1.msra.mxu0 0.0
    %3446 = vmatprep.subr.mxu0 0.0
    %3447 = vmatpush1.msra.mxu0 0.0
    %3448 = vmatprep.subr.mxu0 0.0
    %3449 = vmatpush1.msra.mxu0 0.0
    %3450 = vmatprep.subr.mxu0 0.0
    %3451 = vmatpush1.msra.mxu0 0.0
    %3452 = vmatprep.subr.mxu0 0.0
    %3453 = vmatpush1.msra.mxu0 0.0
    %3454 = vmatprep.subr.mxu0 0.0
    %3455 = vmatpush1.msra.mxu0 0.0
    %3456 = vmatprep.subr.mxu0 0.0
    %3457 = vmatpush1.msra.mxu0 0.0
    %3458 = vmatprep.subr.mxu0 0.0
    %3459 = vmatpush1.msra.mxu0 0.0
    %3460 = vmatprep.subr.mxu0 0.0
    %3461 = vmatpush1.msra.mxu0 0.0
    %3462 = vmatprep.subr.mxu0 0.0
    %3463 = vmatpush1.msra.mxu0 0.0
    %3464 = vmatprep.subr.mxu0 0.0
    %3465 = vmatpush1.msra.mxu0 0.0
    %3466 = vmatprep.subr.mxu0 0.0
    %3467 = vmatpush1.msra.mxu0 0.0
    %3468 = vmatprep.subr.mxu0 0.0
    %3469 = vmatpush1.msra.mxu0 0.0
    %3470 = vmatprep.subr.mxu0 0.0
    %3471 = vmatpush1.msra.mxu0 0.0
    %3472 = vmatprep.subr.mxu0 0.0
    %3473 = vmatpush1.msra.mxu0 0.0
    %3474 = vmatprep.subr.mxu0 0.0
    %3475 = vmatpush1.msra.mxu0 0.0
    %3476 = vmatprep.subr.mxu0 0.0
    %3477 = vmatpush1.msra.mxu0 0.0
    %3478 = vmatprep.subr.mxu0 0.0
    %3479 = vmatpush1.msra.mxu0 0.0
    %3480 = vmatprep.subr.mxu0 0.0
    %3481 = vmatpush1.msra.mxu0 0.0
    %3482 = vmatprep.subr.mxu0 0.0
    %3483 = vmatpush1.msra.mxu0 0.0
    %3484 = vmatprep.subr.mxu0 0.0
    %3485 = vmatpush1.msra.mxu0 0.0
    %3486 = vmatprep.subr.mxu0 0.0
    %3487 = vmatpush1.msra.mxu0 0.0
    %3488 = vmatprep.subr.mxu0 0.0
    %3489 = vmatpush1.msra.mxu0 0.0
    %3490 = vmatprep.subr.mxu0 0.0
    %3491 = vmatpush1.msra.mxu0 0.0
    %3492 = vmatprep.subr.mxu0 0.0
    %3493 = vmatpush1.msra.mxu0 0.0
    %3494 = vmatprep.subr.mxu0 0.0
    %3495 = vmatpush1.msra.mxu0 0.0
    %3496 = vmatprep.subr.mxu0 0.0
    %3497 = vmatpush1.msra.mxu0 0.0
    %3498 = vmatprep.mubr.f32.mxu0 0.0
    %3499 = vmatmul.mubr.f32.gmra.mrb[0].mxu0 %v3429
    %v3500 = vpop.f32.mrb[0].mxu0
    %v3501 = vadd.f32 0.0, %v3500
    %v3502 = vpop.f32.mrb[0].mxu0
    %3503 = vmatprep.mubr.f32.mxu0 0.0
    %3504 = vmatmul.mubr.f32.gmra.mrb[0].mxu0 %v3432
    %v3505 = vpop.f32.mrb[0].mxu0
    %v3506 = vadd.f32 0.0, %v3505
    %v3507 = vpop.f32.mrb[0].mxu0
    %3508 = vdwg.mxu0
    %3511 = vrot.lane.b32.xlu0 %v3501, 28
    %v3512 = vpop.permute.xlu0 %3511
    %3513 = vrot.lane.b32.xlu0 %v3506, 28
    %v3514 = vpop.permute.xlu0 %3513
    %3517 = vst.msk [vmem:[#allocation2 + $0x10] sm:$0xff] %vm1846, %v3512
    %3518 = vst.msk [vmem:[#allocation2 + $0x18] sm:$0xff] %vm1846, %v3514
    %v3519 = vld [vmem:[#allocation2] sm:$0xff]
    %v3520 = vld [vmem:[#allocation2 + $0x8] sm:$0xff]
    %v3521 = vld [vmem:[#allocation2 + $0x10] sm:$0xff]
    %v3522 = vld [vmem:[#allocation2 + $0x18] sm:$0xff]
    %v3524 = vlaneseq
    %v3525 = vshrl.u32 %v3524, 7
    %v3526 = vsub.s32 0, %v3525
    %v3527 = vrot.slane %v71, %v3526
    %v3530 = vsel %vm72, %v3519, 0
    %v3533 = vsel %vm72, %v3520, 0
    %v3536 = vsel %vm72, %v3521, 0
    %v3539 = vsel %vm72, %v3522, 0
    %3541 = vmatprep.subr.mxu0 0.0
    %3542 = vmatpush1.msra.mxu0 %v67
    %3543 = vmatprep.subr.mxu0 0.0
    %3544 = vmatpush1.msra.mxu0 %v68
    %3545 = vmatprep.subr.mxu0 0.0
    %3546 = vmatpush1.msra.mxu0 %v69
    %3547 = vmatprep.subr.mxu0 0.0
    %3548 = vmatpush1.msra.mxu0 %v70
    %3549 = vmatprep.subr.mxu0 0.0
    %3550 = vmatpush1.msra.mxu0 0.0
    %3551 = vmatprep.subr.mxu0 0.0
    %3552 = vmatpush1.msra.mxu0 0.0
    %3553 = vmatprep.subr.mxu0 0.0
    %3554 = vmatpush1.msra.mxu0 0.0
    %3555 = vmatprep.subr.mxu0 0.0
    %3556 = vmatpush1.msra.mxu0 0.0
    %3557 = vmatprep.subr.mxu0 0.0
    %3558 = vmatpush1.msra.mxu0 0.0
    %3559 = vmatprep.subr.mxu0 0.0
    %3560 = vmatpush1.msra.mxu0 0.0
    %3561 = vmatprep.subr.mxu0 0.0
    %3562 = vmatpush1.msra.mxu0 0.0
    %3563 = vmatprep.subr.mxu0 0.0
    %3564 = vmatpush1.msra.mxu0 0.0
    %3565 = vmatprep.subr.mxu0 0.0
    %3566 = vmatpush1.msra.mxu0 0.0
    %3567 = vmatprep.subr.mxu0 0.0
    %3568 = vmatpush1.msra.mxu0 0.0
    %3569 = vmatprep.subr.mxu0 0.0
    %3570 = vmatpush1.msra.mxu0 0.0
    %3571 = vmatprep.subr.mxu0 0.0
    %3572 = vmatpush1.msra.mxu0 0.0
    %3573 = vmatprep.subr.mxu0 0.0
    %3574 = vmatpush1.msra.mxu0 0.0
    %3575 = vmatprep.subr.mxu0 0.0
    %3576 = vmatpush1.msra.mxu0 0.0
    %3577 = vmatprep.subr.mxu0 0.0
    %3578 = vmatpush1.msra.mxu0 0.0
    %3579 = vmatprep.subr.mxu0 0.0
    %3580 = vmatpush1.msra.mxu0 0.0
    %3581 = vmatprep.subr.mxu0 0.0
    %3582 = vmatpush1.msra.mxu0 0.0
    %3583 = vmatprep.subr.mxu0 0.0
    %3584 = vmatpush1.msra.mxu0 0.0
    %3585 = vmatprep.subr.mxu0 0.0
    %3586 = vmatpush1.msra.mxu0 0.0
    %3587 = vmatprep.subr.mxu0 0.0
    %3588 = vmatpush1.msra.mxu0 0.0
    %3589 = vmatprep.subr.mxu0 0.0
    %3590 = vmatpush1.msra.mxu0 0.0
    %3591 = vmatprep.subr.mxu0 0.0
    %3592 = vmatpush1.msra.mxu0 0.0
    %3593 = vmatprep.subr.mxu0 0.0
    %3594 = vmatpush1.msra.mxu0 0.0
    %3595 = vmatprep.subr.mxu0 0.0
    %3596 = vmatpush1.msra.mxu0 0.0
    %3597 = vmatprep.subr.mxu0 0.0
    %3598 = vmatpush1.msra.mxu0 0.0
    %3599 = vmatprep.subr.mxu0 0.0
    %3600 = vmatpush1.msra.mxu0 0.0
    %3601 = vmatprep.subr.mxu0 0.0
    %3602 = vmatpush1.msra.mxu0 0.0
    %3603 = vmatprep.subr.mxu0 0.0
    %3604 = vmatpush1.msra.mxu0 0.0
    %3605 = vmatprep.mubr.f32.mxu0 0.0
    %3606 = vmatmul.mubr.f32.gmra.mrb[0].mxu0 %v3530
    %v3607 = vpop.f32.mrb[0].mxu0
    %v3608 = vadd.f32 %v3527, %v3607
    %v3609 = vpop.f32.mrb[0].mxu0
    %3610 = vmatprep.mubr.f32.mxu0 0.0
    %3611 = vmatmul.mubr.f32.gmra.mrb[0].mxu0 %v3533
    %v3612 = vpop.f32.mrb[0].mxu0
    %v3613 = vadd.f32 %v3527, %v3612
    %v3614 = vpop.f32.mrb[0].mxu0
    %3615 = vmatprep.mubr.f32.mxu0 0.0
    %3616 = vmatmul.mubr.f32.gmra.mrb[0].mxu0 %v3536
    %v3617 = vpop.f32.mrb[0].mxu0
    %v3618 = vadd.f32 %v3527, %v3617
    %v3619 = vpop.f32.mrb[0].mxu0
    %3620 = vmatprep.mubr.f32.mxu0 0.0
    %3621 = vmatmul.mubr.f32.gmra.mrb[0].mxu0 %v3539
    %v3622 = vpop.f32.mrb[0].mxu0
    %v3623 = vadd.f32 %v3527, %v3622
    %v3624 = vpop.f32.mrb[0].mxu0
    %3625 = vdwg.mxu0
    %3626 = vst.msk [vmem:[#allocation9] sm:$0xff] %vm72, %v3608
    %3627 = vst.msk [vmem:[#allocation9 + $0x8] sm:$0xff] %vm72, %v3613
    %3628 = vst.msk [vmem:[#allocation9 + $0x10] sm:$0xff] %vm72, %v3618
    %3629 = vst.msk [vmem:[#allocation9 + $0x18] sm:$0xff] %vm72, %v3623
    // Predicated region
    $region30: #{tpu_custom_call.1} parent=1 // pred_check
      _
    $region31: #{tpu_custom_call.1} parent=1 // pred_check_branch
      %3631 = sbr.rel (0) target = $region33
    $region32: #{tpu_custom_call.1} parent=1 // pred_region
      %s3633 = ssub.s32 512, 512
      %3634 = vsyncadd [#allocation5], %s3633
      %s3635 = sshll.u32 [#allocation9], 4
      %s3636 = int_to_ptr.vmem [resolvable:$true] %s3635
      %3641 = dma.vmem_to_hbm [thread:$0]  %s3636, 512, %s4, [#allocation5], 128, 128, 8
    $region33: #{tpu_custom_call.1} parent=1 // pred_fallthru
      _
    // Predicated region
    $region34: #{tpu_custom_call.1} parent=1 // pred_check
      _
    $region35: #{tpu_custom_call.1} parent=1 // pred_check_branch
      %3643 = sbr.rel (0) target = $region37
    $region36: #{tpu_custom_call.1} parent=1 // pred_region
      %3644 = dma.done [#allocation5], 512
    $region37: #{tpu_custom_call.1} parent=1 // pred_fallthru
      _
    %3645 = vsyncpa [#allocation4], 1
    %3646 = vsyncpa [#allocation7], 1
    %3647 = vsyncpa [#allocation5], 1

</llo_original>
